<compile_context>
chip_gen: v5e
topology: v5e:2x2
jax: 0.10.0
libtpu: 0.0.40
codegen_flags: <defaults>
</compile_context>

<pallas_src>
import functools

import jax
import jax.numpy as jnp
import numpy as np
from jax import lax
from jax.experimental import pallas as pl
from jax.experimental.pallas import tpu as pltpu


# ----------------------------- Pallas kernel ------------------------------ #

def _tkg_kernel(norm_p, max_step,
                pH_ref, pR_ref, pT_ref,
                nH_ref, nR_ref, nT_ref,
                Rh_ref, Rt_ref, steps_ref, trans_ref,
                out_ref):
    """One batch tile: TransE triple scores + relation-pair scores."""

    def l2_normalize(x):
        # matches torch.nn.functional.normalize(x, 2, 1) with eps=1e-12
        n2 = jnp.sum(x * x, axis=1, keepdims=True)
        return x * lax.rsqrt(jnp.maximum(n2, 1e-24))

    def p_norm(x):
        # matches torch.norm(x, p, dim=1); kept as a (Bt, 1) column here
        if norm_p == 1:
            return jnp.sum(jnp.abs(x), axis=1, keepdims=True)
        return jnp.sqrt(jnp.sum(x * x, axis=1, keepdims=True))

    # ---- TransE triple losses ----
    pH = l2_normalize(pH_ref[...])
    pT = l2_normalize(pT_ref[...])
    nH = l2_normalize(nH_ref[...])
    nT = l2_normalize(nT_ref[...])
    pos = p_norm(pH + pR_ref[...] - pT)               # (Bt, 1)
    neg = p_norm(nH + nR_ref[...] - nT)               # (Bt, 1)

    # ---- relation-pair losses ----
    Rh = l2_normalize(Rh_ref[...])                    # (Bt, R)
    Rt = l2_normalize(Rt_ref[...])                    # (Bt, R)
    steps = steps_ref[...]                            # (Bt, 1) f32, int-valued
    T = trans_ref[...]                                # (R, R)

    bt = Rh.shape[0]
    X0 = jnp.concatenate([Rh, Rt], axis=0)            # (2*Bt, R)
    steps2 = jnp.concatenate([steps, steps], axis=0)  # (2*Bt, 1)

    # For each integer step value s, apply T**s (elementwise power, built by
    # repeated multiplication) only to the rows whose step == s, as a masked
    # MXU matmul, and accumulate.  No (B, R, R) temporaries, no exp/log.
    acc = jnp.zeros_like(X0)
    T_pow = jnp.ones_like(T)                          # T**0
    for s in range(max_step + 1):
        Xs = jnp.where(steps2 == float(s), X0, 0.0)
        acc = acc + jnp.dot(Xs, T_pow, preferred_element_type=jnp.float32)
        if s < max_step:
            T_pow = T_pow * T
    # TODO(synk): for v5e at production R, zero-pad the contraction dim to 128
    # before the matmuls to avoid MXU drain-dominated tiny contractions.

    Rh_new = acc[:bt]                                 # (Bt, R)
    Rt_new = acc[bt:]                                 # (Bt, R)

    pos_rel = p_norm(Rh_new - Rt)
    neg_rel = p_norm(Rt_new - Rh)

    # ---- lane-dense packed output: rows 0..3 hold the four score vectors ----
    scores = jnp.concatenate(
        [pos, neg, pos_rel, neg_rel, jnp.zeros((bt, 4), jnp.float32)], axis=1)
    out_ref[...] = scores.T                           # (8, Bt), B on lane axis


# ------------------------------ host wrapper ------------------------------ #

def tkg_forward(entity_emb, relation_emb, relation_trans,
                pos_h, pos_r, pos_t, neg_h, neg_r, neg_t,
                rel_pair_h, rel_pair_t, rel_pair_step,
                norm=2, max_step=None, block_b=128):
    B = pos_h.shape[0]
    De = entity_emb.shape[1]
    Dr = relation_emb.shape[1]
    R = relation_trans.shape[0]

    if max_step is None:
        # static upper bound on the integer step values (loop is unrolled)
        max_step = int(jax.device_get(jnp.max(rel_pair_step)))
    # TODO(synk): negative / fractional steps (torch std::pow semantics) are
    # not supported by the integer-step enumeration; only 0 <= step <= max_step.

    Bt = int(block_b)
    B_pad = ((B + Bt - 1) // Bt) * Bt
    pad = B_pad - B

    def pad_idx(ix):
        return jnp.pad(ix, (0, pad)) if pad else ix

    pos_h, pos_r, pos_t = (pad_idx(x) for x in (pos_h, pos_r, pos_t))
    neg_h, neg_r, neg_t = (pad_idx(x) for x in (neg_h, neg_r, neg_t))
    rel_pair_h = pad_idx(rel_pair_h)
    rel_pair_t = pad_idx(rel_pair_t)
    steps = pad_idx(rel_pair_step).astype(jnp.float32).reshape(B_pad, 1)

    # TODO(synk): fold these gathers into the kernel (PrefetchScalarGridSpec +
    # pl.Element row indexing) to avoid materializing the gathered rows in HBM.
    pH = jnp.take(entity_emb, pos_h, axis=0)
    pR = jnp.take(relation_emb, pos_r, axis=0)
    pT = jnp.take(entity_emb, pos_t, axis=0)
    nH = jnp.take(entity_emb, neg_h, axis=0)
    nR = jnp.take(relation_emb, neg_r, axis=0)
    nT = jnp.take(entity_emb, neg_t, axis=0)
    Rh = jnp.take(relation_emb, rel_pair_h, axis=0)
    Rt = jnp.take(relation_emb, rel_pair_t, axis=0)

    def row_spec(d):
        return pl.BlockSpec((Bt, d), lambda i: (i, 0))

    in_specs = [row_spec(De), row_spec(Dr), row_spec(De),     # pH pR pT
                row_spec(De), row_spec(Dr), row_spec(De),     # nH nR nT
                row_spec(Dr), row_spec(Dr),                   # Rh Rt
                pl.BlockSpec((Bt, 1), lambda i: (i, 0)),      # steps
                pl.BlockSpec((R, R), lambda i: (0, 0))]       # trans (shared)

    kernel = functools.partial(_tkg_kernel, norm, max_step)
    packed = pl.pallas_call(
        kernel,
        out_shape=jax.ShapeDtypeStruct((8, B_pad), jnp.float32),
        grid=(B_pad // Bt,),
        in_specs=in_specs,
        out_specs=pl.BlockSpec((8, Bt), lambda i: (0, i)),
        compiler_params=pltpu.CompilerParams(
            dimension_semantics=("parallel",)),
    )(pH, pR, pT, nH, nR, nT, Rh, Rt, steps, relation_trans)

    # torch.norm(..., dim=1) returns shape (B,)
    return (packed[0, :B], packed[1, :B], packed[2, :B], packed[3, :B])


# ------------------------- deterministic parameters ----------------------- #

def _row_l2_normalize(x, eps=1e-12):
    n = jnp.sqrt(jnp.sum(x * x, axis=1, keepdims=True))
    return x / jnp.maximum(n, eps)


def init_params(num_entity, num_relation, ent_dim, rel_dim, key):
    sqrtR = rel_dim ** 0.5
    sqrtE = ent_dim ** 0.5
    k1, k2, k3 = jax.random.split(key, 3)
    rel = jax.random.uniform(k1, (num_relation, rel_dim), jnp.float32,
                             minval=-6.0 / sqrtR, maxval=6.0 / sqrtR)
    rel = _row_l2_normalize(rel)
    ent = jax.random.uniform(k2, (num_entity, ent_dim), jnp.float32,
                             minval=-6.0 / sqrtE, maxval=6.0 / sqrtE)
    ent = _row_l2_normalize(ent)
    # NB: original module uses sqrtE bound for relation_trans -- reproduced.
    trans = jax.random.uniform(k3, (rel_dim, rel_dim), jnp.float32,
                               minval=-6.0 / sqrtE, maxval=6.0 / sqrtE)
    trans = _row_l2_normalize(trans)
    return ent, rel, trans


# --------------------------- pure-JAX reference ---------------------------- #

def _reference(entity_emb, relation_emb, relation_trans,
               pos_h, pos_r, pos_t, neg_h, neg_r, neg_t,
               rel_pair_h, rel_pair_t, rel_pair_step, norm=2):
    pnorm = (lambda x: jnp.sum(jnp.abs(x), 1)) if norm == 1 else (
        lambda x: jnp.sqrt(jnp.sum(x * x, 1)))
    pH = _row_l2_normalize(entity_emb[pos_h]); pR = relation_emb[pos_r]
    pT = _row_l2_normalize(entity_emb[pos_t])
    nH = _row_l2_normalize(entity_emb[neg_h]); nR = relation_emb[neg_r]
    nT = _row_l2_normalize(entity_emb[neg_t])
    pos = pnorm(pH + pR - pT); neg = pnorm(nH + nR - nT)
    Rh = _row_l2_normalize(relation_emb[rel_pair_h])
    Rt = _row_l2_normalize(relation_emb[rel_pair_t])
    s = rel_pair_step.astype(jnp.int32)
    M = jnp.power(relation_trans[None, :, :], s[:, None, None])  # int exponent
    Rh_new = jnp.einsum('br,brc->bc', Rh, M)
    Rt_new = jnp.einsum('br,brc->bc', Rt, M)
    return pos, neg, pnorm(Rh_new - Rt), pnorm(Rt_new - Rh)


# ----------------------------------- main ---------------------------------- #

if __name__ == "__main__":
    numOfEntity, numOfRelation = 32, 16
    entityDimension = relationDimension = 32   # TransE add requires equal dims
    norm = 2
    B = 8

    ent, rel, trans = init_params(numOfEntity, numOfRelation,
                                  entityDimension, relationDimension,
                                  jax.random.PRNGKey(42))

    key = jax.random.PRNGKey(0)
    ks = jax.random.split(key, 9)
    pos_h = jax.random.randint(ks[0], (B,), 0, numOfEntity, jnp.int32)
    pos_r = jax.random.randint(ks[1], (B,), 0, numOfRelation, jnp.int32)
    pos_t = jax.random.randint(ks[2], (B,), 0, numOfEntity, jnp.int32)
    neg_h = jax.random.randint(ks[3], (B,), 0, numOfEntity, jnp.int32)
    neg_r = jax.random.randint(ks[4], (B,), 0, numOfRelation, jnp.int32)
    neg_t = jax.random.randint(ks[5], (B,), 0, numOfEntity, jnp.int32)
    rel_pair_h = jax.random.randint(ks[6], (B,), 0, numOfRelation, jnp.int32)
    rel_pair_t = jax.random.randint(ks[7], (B,), 0, numOfRelation, jnp.int32)
    rel_pair_step = jax.random.randint(ks[8], (B,), 1, 5, jnp.int32)

    outs = tkg_forward(ent, rel, trans,
                       pos_h, pos_r, pos_t, neg_h, neg_r, neg_t,
                       rel_pair_h, rel_pair_t, rel_pair_step, norm=norm)
    outs = jax.block_until_ready(outs)

    refs = _reference(ent, rel, trans,
                      pos_h, pos_r, pos_t, neg_h, neg_r, neg_t,
                      rel_pair_h, rel_pair_t, rel_pair_step, norm=norm)
    for o, r in zip(outs, refs):
        np.testing.assert_allclose(np.asarray(o), np.asarray(r),
                                   rtol=1e-4, atol=1e-4)

    print("KERNEL_OK")
</pallas_src>

<mosaic_0001>
module attributes {stable_mosaic.version = 11 : i64} {
  func.func @_tkg_kernel(%arg0: i32, %arg1: memref<128x32xf32, #tpu.memory_space<vmem>>, %arg2: memref<128x32xf32, #tpu.memory_space<vmem>>, %arg3: memref<128x32xf32, #tpu.memory_space<vmem>>, %arg4: memref<128x32xf32, #tpu.memory_space<vmem>>, %arg5: memref<128x32xf32, #tpu.memory_space<vmem>>, %arg6: memref<128x32xf32, #tpu.memory_space<vmem>>, %arg7: memref<128x32xf32, #tpu.memory_space<vmem>>, %arg8: memref<128x32xf32, #tpu.memory_space<vmem>>, %arg9: memref<128x1xf32, #tpu.memory_space<vmem>>, %arg10: memref<32x32xf32, #tpu.memory_space<vmem>>, %arg11: memref<8x128xf32, #tpu.memory_space<vmem>>) attributes {dimension_semantics = [#tpu.dimension_semantics<parallel>], iteration_bounds = array<i64: 1>, scalar_prefetch = 0 : i64, scratch_operands = 0 : i64, tpu.core_type = #tpu.core_type<tc>, window_params = [{transform_indices = @transform_0, window_bounds = array<i64: 128, 32>}, {transform_indices = @transform_1, window_bounds = array<i64: 128, 32>}, {transform_indices = @transform_2, window_bounds = array<i64: 128, 32>}, {transform_indices = @transform_3, window_bounds = array<i64: 128, 32>}, {transform_indices = @transform_4, window_bounds = array<i64: 128, 32>}, {transform_indices = @transform_5, window_bounds = array<i64: 128, 32>}, {transform_indices = @transform_6, window_bounds = array<i64: 128, 32>}, {transform_indices = @transform_7, window_bounds = array<i64: 128, 32>}, {transform_indices = @transform_8, window_bounds = array<i64: 128, 1>}, {pipeline_mode = #tpu.pipeline_mode<synchronous>, transform_indices = @transform_9, window_bounds = array<i64: 32, 32>}, {transform_indices = @transform_10, window_bounds = array<i64: 8, 128>}]} {
    %c0 = arith.constant 0 : index
    %c0_0 = arith.constant 0 : index
    %0 = vector.load %arg1[%c0, %c0_0] : memref<128x32xf32, #tpu.memory_space<vmem>>, vector<128x32xf32>
    %1 = arith.mulf %0, %0 : vector<128x32xf32>
    %cst = arith.constant dense<0.000000e+00> : vector<128xf32>
    %2 = vector.multi_reduction <add>, %1, %cst [1] : vector<128x32xf32> to vector<128xf32>
    %3 = vector.shape_cast %2 : vector<128xf32> to vector<128x1xf32>
    %cst_1 = arith.constant 1.000000e-24 : f32
    %4 = vector.broadcast %cst_1 : f32 to vector<128x1xf32>
    %5 = arith.maximumf %3, %4 : vector<128x1xf32>
    %6 = math.rsqrt %5 : vector<128x1xf32>
    %7 = vector.broadcast %6 : vector<128x1xf32> to vector<128x32xf32>
    %8 = arith.mulf %0, %7 : vector<128x32xf32>
    %c0_2 = arith.constant 0 : index
    %c0_3 = arith.constant 0 : index
    %9 = vector.load %arg3[%c0_2, %c0_3] : memref<128x32xf32, #tpu.memory_space<vmem>>, vector<128x32xf32>
    %10 = arith.mulf %9, %9 : vector<128x32xf32>
    %cst_4 = arith.constant dense<0.000000e+00> : vector<128xf32>
    %11 = vector.multi_reduction <add>, %10, %cst_4 [1] : vector<128x32xf32> to vector<128xf32>
    %12 = vector.shape_cast %11 : vector<128xf32> to vector<128x1xf32>
    %cst_5 = arith.constant 1.000000e-24 : f32
    %13 = vector.broadcast %cst_5 : f32 to vector<128x1xf32>
    %14 = arith.maximumf %12, %13 : vector<128x1xf32>
    %15 = math.rsqrt %14 : vector<128x1xf32>
    %16 = vector.broadcast %15 : vector<128x1xf32> to vector<128x32xf32>
    %17 = arith.mulf %9, %16 : vector<128x32xf32>
    %c0_6 = arith.constant 0 : index
    %c0_7 = arith.constant 0 : index
    %18 = vector.load %arg4[%c0_6, %c0_7] : memref<128x32xf32, #tpu.memory_space<vmem>>, vector<128x32xf32>
    %19 = arith.mulf %18, %18 : vector<128x32xf32>
    %cst_8 = arith.constant dense<0.000000e+00> : vector<128xf32>
    %20 = vector.multi_reduction <add>, %19, %cst_8 [1] : vector<128x32xf32> to vector<128xf32>
    %21 = vector.shape_cast %20 : vector<128xf32> to vector<128x1xf32>
    %cst_9 = arith.constant 1.000000e-24 : f32
    %22 = vector.broadcast %cst_9 : f32 to vector<128x1xf32>
    %23 = arith.maximumf %21, %22 : vector<128x1xf32>
    %24 = math.rsqrt %23 : vector<128x1xf32>
    %25 = vector.broadcast %24 : vector<128x1xf32> to vector<128x32xf32>
    %26 = arith.mulf %18, %25 : vector<128x32xf32>
    %c0_10 = arith.constant 0 : index
    %c0_11 = arith.constant 0 : index
    %27 = vector.load %arg6[%c0_10, %c0_11] : memref<128x32xf32, #tpu.memory_space<vmem>>, vector<128x32xf32>
    %28 = arith.mulf %27, %27 : vector<128x32xf32>
    %cst_12 = arith.constant dense<0.000000e+00> : vector<128xf32>
    %29 = vector.multi_reduction <add>, %28, %cst_12 [1] : vector<128x32xf32> to vector<128xf32>
    %30 = vector.shape_cast %29 : vector<128xf32> to vector<128x1xf32>
    %cst_13 = arith.constant 1.000000e-24 : f32
    %31 = vector.broadcast %cst_13 : f32 to vector<128x1xf32>
    %32 = arith.maximumf %30, %31 : vector<128x1xf32>
    %33 = math.rsqrt %32 : vector<128x1xf32>
    %34 = vector.broadcast %33 : vector<128x1xf32> to vector<128x32xf32>
    %35 = arith.mulf %27, %34 : vector<128x32xf32>
    %c0_14 = arith.constant 0 : index
    %c0_15 = arith.constant 0 : index
    %36 = vector.load %arg2[%c0_14, %c0_15] : memref<128x32xf32, #tpu.memory_space<vmem>>, vector<128x32xf32>
    %37 = arith.addf %8, %36 : vector<128x32xf32>
    %38 = arith.subf %37, %17 : vector<128x32xf32>
    %39 = arith.mulf %38, %38 : vector<128x32xf32>
    %cst_16 = arith.constant dense<0.000000e+00> : vector<128xf32>
    %40 = vector.multi_reduction <add>, %39, %cst_16 [1] : vector<128x32xf32> to vector<128xf32>
    %41 = vector.shape_cast %40 : vector<128xf32> to vector<128x1xf32>
    %42 = math.sqrt %41 : vector<128x1xf32>
    %c0_17 = arith.constant 0 : index
    %c0_18 = arith.constant 0 : index
    %43 = vector.load %arg5[%c0_17, %c0_18] : memref<128x32xf32, #tpu.memory_space<vmem>>, vector<128x32xf32>
    %44 = arith.addf %26, %43 : vector<128x32xf32>
    %45 = arith.subf %44, %35 : vector<128x32xf32>
    %46 = arith.mulf %45, %45 : vector<128x32xf32>
    %cst_19 = arith.constant dense<0.000000e+00> : vector<128xf32>
    %47 = vector.multi_reduction <add>, %46, %cst_19 [1] : vector<128x32xf32> to vector<128xf32>
    %48 = vector.shape_cast %47 : vector<128xf32> to vector<128x1xf32>
    %49 = math.sqrt %48 : vector<128x1xf32>
    %c0_20 = arith.constant 0 : index
    %c0_21 = arith.constant 0 : index
    %50 = vector.load %arg7[%c0_20, %c0_21] : memref<128x32xf32, #tpu.memory_space<vmem>>, vector<128x32xf32>
    %51 = arith.mulf %50, %50 : vector<128x32xf32>
    %cst_22 = arith.constant dense<0.000000e+00> : vector<128xf32>
    %52 = vector.multi_reduction <add>, %51, %cst_22 [1] : vector<128x32xf32> to vector<128xf32>
    %53 = vector.shape_cast %52 : vector<128xf32> to vector<128x1xf32>
    %cst_23 = arith.constant 1.000000e-24 : f32
    %54 = vector.broadcast %cst_23 : f32 to vector<128x1xf32>
    %55 = arith.maximumf %53, %54 : vector<128x1xf32>
    %56 = math.rsqrt %55 : vector<128x1xf32>
    %57 = vector.broadcast %56 : vector<128x1xf32> to vector<128x32xf32>
    %58 = arith.mulf %50, %57 : vector<128x32xf32>
    %c0_24 = arith.constant 0 : index
    %c0_25 = arith.constant 0 : index
    %59 = vector.load %arg8[%c0_24, %c0_25] : memref<128x32xf32, #tpu.memory_space<vmem>>, vector<128x32xf32>
    %60 = arith.mulf %59, %59 : vector<128x32xf32>
    %cst_26 = arith.constant dense<0.000000e+00> : vector<128xf32>
    %61 = vector.multi_reduction <add>, %60, %cst_26 [1] : vector<128x32xf32> to vector<128xf32>
    %62 = vector.shape_cast %61 : vector<128xf32> to vector<128x1xf32>
    %cst_27 = arith.constant 1.000000e-24 : f32
    %63 = vector.broadcast %cst_27 : f32 to vector<128x1xf32>
    %64 = arith.maximumf %62, %63 : vector<128x1xf32>
    %65 = math.rsqrt %64 : vector<128x1xf32>
    %66 = vector.broadcast %65 : vector<128x1xf32> to vector<128x32xf32>
    %67 = arith.mulf %59, %66 : vector<128x32xf32>
    %c0_28 = arith.constant 0 : index
    %c0_29 = arith.constant 0 : index
    %68 = vector.load %arg9[%c0_28, %c0_29] : memref<128x1xf32, #tpu.memory_space<vmem>>, vector<128x1xf32>
    %c0_30 = arith.constant 0 : index
    %c0_31 = arith.constant 0 : index
    %69 = vector.load %arg10[%c0_30, %c0_31] : memref<32x32xf32, #tpu.memory_space<vmem>>, vector<32x32xf32>
    %70 = tpu.concatenate %58, %67 in 0 : vector<128x32xf32>, vector<128x32xf32> -> vector<256x32xf32>
    %71 = tpu.concatenate %68, %68 in 0 : vector<128x1xf32>, vector<128x1xf32> -> vector<256x1xf32>
    %cst_32 = arith.constant 0.000000e+00 : f32
    %72 = vector.broadcast %cst_32 : f32 to vector<256x32xf32>
    %cst_33 = arith.constant 1.000000e+00 : f32
    %73 = vector.broadcast %cst_33 : f32 to vector<32x32xf32>
    %cst_34 = arith.constant 0.000000e+00 : f32
    %74 = vector.broadcast %cst_34 : f32 to vector<256x1xf32>
    %75 = arith.cmpf oeq, %71, %74 : vector<256x1xf32>
    %cst_35 = arith.constant 0.000000e+00 : f32
    %76 = vector.shape_cast %75 : vector<256x1xi1> to vector<256x1xi1>
    %77 = vector.broadcast %76 : vector<256x1xi1> to vector<256x32xi1>
    %78 = vector.broadcast %cst_35 : f32 to vector<256x32xf32>
    %79 = arith.select %77, %70, %78 : vector<256x32xi1>, vector<256x32xf32>
    %cst_36 = arith.constant dense<0.000000e+00> : vector<256x32xf32>
    %80 = tpu.matmul %79, %73, %cst_36 {dimension_numbers = #tpu.dot_dimension_numbers<[1], [0], [0], [1], [0, 0, 1, 1], [], []>} : vector<256x32xf32>, vector<32x32xf32>, vector<256x32xf32> -> vector<256x32xf32>
    %81 = arith.addf %72, %80 : vector<256x32xf32>
    %82 = arith.mulf %73, %69 : vector<32x32xf32>
    %cst_37 = arith.constant 1.000000e+00 : f32
    %83 = vector.broadcast %cst_37 : f32 to vector<256x1xf32>
    %84 = arith.cmpf oeq, %71, %83 : vector<256x1xf32>
    %cst_38 = arith.constant 0.000000e+00 : f32
    %85 = vector.shape_cast %84 : vector<256x1xi1> to vector<256x1xi1>
    %86 = vector.broadcast %85 : vector<256x1xi1> to vector<256x32xi1>
    %87 = vector.broadcast %cst_38 : f32 to vector<256x32xf32>
    %88 = arith.select %86, %70, %87 : vector<256x32xi1>, vector<256x32xf32>
    %cst_39 = arith.constant dense<0.000000e+00> : vector<256x32xf32>
    %89 = tpu.matmul %88, %82, %cst_39 {dimension_numbers = #tpu.dot_dimension_numbers<[1], [0], [0], [1], [0, 0, 1, 1], [], []>} : vector<256x32xf32>, vector<32x32xf32>, vector<256x32xf32> -> vector<256x32xf32>
    %90 = arith.addf %81, %89 : vector<256x32xf32>
    %91 = arith.mulf %82, %69 : vector<32x32xf32>
    %cst_40 = arith.constant 2.000000e+00 : f32
    %92 = vector.broadcast %cst_40 : f32 to vector<256x1xf32>
    %93 = arith.cmpf oeq, %71, %92 : vector<256x1xf32>
    %cst_41 = arith.constant 0.000000e+00 : f32
    %94 = vector.shape_cast %93 : vector<256x1xi1> to vector<256x1xi1>
    %95 = vector.broadcast %94 : vector<256x1xi1> to vector<256x32xi1>
    %96 = vector.broadcast %cst_41 : f32 to vector<256x32xf32>
    %97 = arith.select %95, %70, %96 : vector<256x32xi1>, vector<256x32xf32>
    %cst_42 = arith.constant dense<0.000000e+00> : vector<256x32xf32>
    %98 = tpu.matmul %97, %91, %cst_42 {dimension_numbers = #tpu.dot_dimension_numbers<[1], [0], [0], [1], [0, 0, 1, 1], [], []>} : vector<256x32xf32>, vector<32x32xf32>, vector<256x32xf32> -> vector<256x32xf32>
    %99 = arith.addf %90, %98 : vector<256x32xf32>
    %100 = arith.mulf %91, %69 : vector<32x32xf32>
    %cst_43 = arith.constant 3.000000e+00 : f32
    %101 = vector.broadcast %cst_43 : f32 to vector<256x1xf32>
    %102 = arith.cmpf oeq, %71, %101 : vector<256x1xf32>
    %cst_44 = arith.constant 0.000000e+00 : f32
    %103 = vector.shape_cast %102 : vector<256x1xi1> to vector<256x1xi1>
    %104 = vector.broadcast %103 : vector<256x1xi1> to vector<256x32xi1>
    %105 = vector.broadcast %cst_44 : f32 to vector<256x32xf32>
    %106 = arith.select %104, %70, %105 : vector<256x32xi1>, vector<256x32xf32>
    %cst_45 = arith.constant dense<0.000000e+00> : vector<256x32xf32>
    %107 = tpu.matmul %106, %100, %cst_45 {dimension_numbers = #tpu.dot_dimension_numbers<[1], [0], [0], [1], [0, 0, 1, 1], [], []>} : vector<256x32xf32>, vector<32x32xf32>, vector<256x32xf32> -> vector<256x32xf32>
    %108 = arith.addf %99, %107 : vector<256x32xf32>
    %109 = arith.mulf %100, %69 : vector<32x32xf32>
    %cst_46 = arith.constant 4.000000e+00 : f32
    %110 = vector.broadcast %cst_46 : f32 to vector<256x1xf32>
    %111 = arith.cmpf oeq, %71, %110 : vector<256x1xf32>
    %cst_47 = arith.constant 0.000000e+00 : f32
    %112 = vector.shape_cast %111 : vector<256x1xi1> to vector<256x1xi1>
    %113 = vector.broadcast %112 : vector<256x1xi1> to vector<256x32xi1>
    %114 = vector.broadcast %cst_47 : f32 to vector<256x32xf32>
    %115 = arith.select %113, %70, %114 : vector<256x32xi1>, vector<256x32xf32>
    %cst_48 = arith.constant dense<0.000000e+00> : vector<256x32xf32>
    %116 = tpu.matmul %115, %109, %cst_48 {dimension_numbers = #tpu.dot_dimension_numbers<[1], [0], [0], [1], [0, 0, 1, 1], [], []>} : vector<256x32xf32>, vector<32x32xf32>, vector<256x32xf32> -> vector<256x32xf32>
    %117 = arith.addf %108, %116 : vector<256x32xf32>
    %118 = vector.extract_strided_slice %117 {offsets = [0, 0], sizes = [128, 32], strides = [1, 1]} : vector<256x32xf32> to vector<128x32xf32>
    %119 = vector.extract_strided_slice %117 {offsets = [128, 0], sizes = [128, 32], strides = [1, 1]} : vector<256x32xf32> to vector<128x32xf32>
    %120 = arith.subf %118, %67 : vector<128x32xf32>
    %121 = arith.mulf %120, %120 : vector<128x32xf32>
    %cst_49 = arith.constant dense<0.000000e+00> : vector<128xf32>
    %122 = vector.multi_reduction <add>, %121, %cst_49 [1] : vector<128x32xf32> to vector<128xf32>
    %123 = vector.shape_cast %122 : vector<128xf32> to vector<128x1xf32>
    %124 = math.sqrt %123 : vector<128x1xf32>
    %125 = arith.subf %119, %58 : vector<128x32xf32>
    %126 = arith.mulf %125, %125 : vector<128x32xf32>
    %cst_50 = arith.constant dense<0.000000e+00> : vector<128xf32>
    %127 = vector.multi_reduction <add>, %126, %cst_50 [1] : vector<128x32xf32> to vector<128xf32>
    %128 = vector.shape_cast %127 : vector<128xf32> to vector<128x1xf32>
    %129 = math.sqrt %128 : vector<128x1xf32>
    %cst_51 = arith.constant 0.000000e+00 : f32
    %130 = vector.broadcast %cst_51 : f32 to vector<128x4xf32>
    %131 = tpu.concatenate %42, %49, %124, %129, %130 in 1 : vector<128x1xf32>, vector<128x1xf32>, vector<128x1xf32>, vector<128x1xf32>, vector<128x4xf32> -> vector<128x8xf32>
    %132 = tpu.transpose %131, [1, 0] : vector<128x8xf32> -> vector<8x128xf32>
    %c0_52 = arith.constant 0 : index
    %c0_53 = arith.constant 0 : index
    %133 = vector.load %arg11[%c0_52, %c0_53] : memref<8x128xf32, #tpu.memory_space<vmem>>, vector<8x128xf32>
    tpu.vector_store %arg11[%c0_52, %c0_53], %132 {strides = array<i32>} : memref<8x128xf32, #tpu.memory_space<vmem>>, vector<8x128xf32>,
    return
  }
  func.func @transform_0(%arg0: i32) -> (i32, i32) {
    %c0_i32 = arith.constant 0 : i32
    %c0_i32_0 = arith.constant 0 : i32
    return %arg0, %c0_i32 : i32, i32
  }
  func.func @transform_1(%arg0: i32) -> (i32, i32) {
    %c0_i32 = arith.constant 0 : i32
    %c0_i32_0 = arith.constant 0 : i32
    return %arg0, %c0_i32 : i32, i32
  }
  func.func @transform_2(%arg0: i32) -> (i32, i32) {
    %c0_i32 = arith.constant 0 : i32
    %c0_i32_0 = arith.constant 0 : i32
    return %arg0, %c0_i32 : i32, i32
  }
  func.func @transform_3(%arg0: i32) -> (i32, i32) {
    %c0_i32 = arith.constant 0 : i32
    %c0_i32_0 = arith.constant 0 : i32
    return %arg0, %c0_i32 : i32, i32
  }
  func.func @transform_4(%arg0: i32) -> (i32, i32) {
    %c0_i32 = arith.constant 0 : i32
    %c0_i32_0 = arith.constant 0 : i32
    return %arg0, %c0_i32 : i32, i32
  }
  func.func @transform_5(%arg0: i32) -> (i32, i32) {
    %c0_i32 = arith.constant 0 : i32
    %c0_i32_0 = arith.constant 0 : i32
    return %arg0, %c0_i32 : i32, i32
  }
  func.func @transform_6(%arg0: i32) -> (i32, i32) {
    %c0_i32 = arith.constant 0 : i32
    %c0_i32_0 = arith.constant 0 : i32
    return %arg0, %c0_i32 : i32, i32
  }
  func.func @transform_7(%arg0: i32) -> (i32, i32) {
    %c0_i32 = arith.constant 0 : i32
    %c0_i32_0 = arith.constant 0 : i32
    return %arg0, %c0_i32 : i32, i32
  }
  func.func @transform_8(%arg0: i32) -> (i32, i32) {
    %c0_i32 = arith.constant 0 : i32
    %c0_i32_0 = arith.constant 0 : i32
    return %arg0, %c0_i32 : i32, i32
  }
  func.func @transform_9(%arg0: i32) -> (i32, i32) {
    %c0_i32 = arith.constant 0 : i32
    %c0_i32_0 = arith.constant 0 : i32
    %c0_i32_1 = arith.constant 0 : i32
    return %c0_i32, %c0_i32_0 : i32, i32
  }
  func.func @transform_10(%arg0: i32) -> (i32, i32) {
    %c0_i32 = arith.constant 0 : i32
    %c0_i32_0 = arith.constant 0 : i32
    return %c0_i32, %arg0 : i32, i32
  }
}

</mosaic_0001>

<llo_original>
// kernel: tpu_custom_call.1
$region0: #{tpu_custom_call.1}
  #allocation0 [shape = 'u32[]', space=smem, size = 0x4, offset = 0x4, fixed_abs, tag = 'smem constant byte address 0x4 - core index']
  #allocation1 [shape = 'u32[72,128]{1,0:T(1,128)}', space=vmem, size = 0x9000, scoped, tag = 'internal scratch']
  %s0 = inlined_call_operand.vmem [shape: f32[128,32], index: 0, kind: input, shape index: {}]
  %s1 = inlined_call_operand.vmem [shape: f32[128,32], index: 1, kind: input, shape index: {}]
  %s2 = inlined_call_operand.vmem [shape: f32[128,32], index: 2, kind: input, shape index: {}]
  %s3 = inlined_call_operand.vmem [shape: f32[128,32], index: 3, kind: input, shape index: {}]
  %s4 = inlined_call_operand.vmem [shape: f32[128,32], index: 4, kind: input, shape index: {}]
  %s5 = inlined_call_operand.vmem [shape: f32[128,32], index: 5, kind: input, shape index: {}]
  %s6 = inlined_call_operand.vmem [shape: f32[128,32], index: 6, kind: input, shape index: {}]
  %s7 = inlined_call_operand.vmem [shape: f32[128,32], index: 7, kind: input, shape index: {}]
  %s8 = inlined_call_operand.vmem [shape: f32[128,1], index: 8, kind: input, shape index: {}]
  %s9 = inlined_call_operand.vmem [shape: f32[32,32], index: 9, kind: input, shape index: {}]
  %s10 = inlined_call_operand.hbm [shape: f32[8,128], index: 10, kind: output, shape index: {}]
  %s11 = sld [smem:[#allocation0]]
  $region50: #{tpu_custom_call.1} parent=0
    _
  %s13 = ssub.s32 1, %s11
  %s14 = scalar_select 0, %s13, %s11
  $region1: #{tpu_custom_call.1} parent=0
    #allocation2 [shape = 'u8[4096]{0}', space=vmem, size = 0x1000, scoped, tag = 'output window, operand 0, single buffered']
    #allocation3 [shape = 's32[1]{0}', space=sflag, size = 0x4, scoped, tag = 'scoped memory for tpu_custom_call.1']
    %15 = vsyncpa [#allocation3], 0
    // Predicated region
    $region2: #{tpu_custom_call.1} parent=1 // pred_check
      _
    $region3: #{tpu_custom_call.1} parent=1 // pred_check_branch
      %17 = sbr.rel (0) target = $region5
    $region4: #{tpu_custom_call.1} parent=1 // pred_region
      _
    $region5: #{tpu_custom_call.1} parent=1 // pred_fallthru
      _
    // Predicated region
    $region6: #{tpu_custom_call.1} parent=1 // pred_check
      _
    $region7: #{tpu_custom_call.1} parent=1 // pred_check_branch
      %19 = sbr.rel (0) target = $region9
    $region8: #{tpu_custom_call.1} parent=1 // pred_region
      _
    $region9: #{tpu_custom_call.1} parent=1 // pred_fallthru
      _
    // Predicated region
    $region10: #{tpu_custom_call.1} parent=1 // pred_check
      _
    $region11: #{tpu_custom_call.1} parent=1 // pred_check_branch
      %21 = sbr.rel (0) target = $region13
    $region12: #{tpu_custom_call.1} parent=1 // pred_region
      _
    $region13: #{tpu_custom_call.1} parent=1 // pred_fallthru
      _
    // Predicated region
    $region14: #{tpu_custom_call.1} parent=1 // pred_check
      _
    $region15: #{tpu_custom_call.1} parent=1 // pred_check_branch
      %23 = sbr.rel (0) target = $region17
    $region16: #{tpu_custom_call.1} parent=1 // pred_region
      _
    $region17: #{tpu_custom_call.1} parent=1 // pred_fallthru
      _
    // Predicated region
    $region18: #{tpu_custom_call.1} parent=1 // pred_check
      _
    $region19: #{tpu_custom_call.1} parent=1 // pred_check_branch
      %25 = sbr.rel (0) target = $region21
    $region20: #{tpu_custom_call.1} parent=1 // pred_region
      _
    $region21: #{tpu_custom_call.1} parent=1 // pred_fallthru
      _
    // Predicated region
    $region22: #{tpu_custom_call.1} parent=1 // pred_check
      _
    $region23: #{tpu_custom_call.1} parent=1 // pred_check_branch
      %27 = sbr.rel (0) target = $region25
    $region24: #{tpu_custom_call.1} parent=1 // pred_region
      _
    $region25: #{tpu_custom_call.1} parent=1 // pred_fallthru
      _
    // Predicated region
    $region26: #{tpu_custom_call.1} parent=1 // pred_check
      _
    $region27: #{tpu_custom_call.1} parent=1 // pred_check_branch
      %29 = sbr.rel (0) target = $region29
    $region28: #{tpu_custom_call.1} parent=1 // pred_region
      _
    $region29: #{tpu_custom_call.1} parent=1 // pred_fallthru
      _
    // Predicated region
    $region30: #{tpu_custom_call.1} parent=1 // pred_check
      _
    $region31: #{tpu_custom_call.1} parent=1 // pred_check_branch
      %31 = sbr.rel (0) target = $region33
    $region32: #{tpu_custom_call.1} parent=1 // pred_region
      _
    $region33: #{tpu_custom_call.1} parent=1 // pred_fallthru
      _
    // Predicated region
    $region34: #{tpu_custom_call.1} parent=1 // pred_check
      _
    $region35: #{tpu_custom_call.1} parent=1 // pred_check_branch
      %33 = sbr.rel (0) target = $region37
    $region36: #{tpu_custom_call.1} parent=1 // pred_region
      _
    $region37: #{tpu_custom_call.1} parent=1 // pred_fallthru
      _
    // Predicated region
    $region38: #{tpu_custom_call.1} parent=1 // pred_check
      _
    $region39: #{tpu_custom_call.1} parent=1 // pred_check_branch
      %35 = sbr.rel (0) target = $region41
    $region40: #{tpu_custom_call.1} parent=1 // pred_region
      _
    $region41: #{tpu_custom_call.1} parent=1 // pred_fallthru
      _
    %v36 = vld [vmem:[%s0] sm:$0xff]
    %v37 = vld [vmem:[%s0 + $0x8] sm:$0xff]
    %v38 = vld [vmem:[%s0 + $0x10] sm:$0xff]
    %v39 = vld [vmem:[%s0 + $0x18] sm:$0xff]
    %v40 = vld [vmem:[%s0 + $0x20] sm:$0xff]
    %v41 = vld [vmem:[%s0 + $0x28] sm:$0xff]
    %v42 = vld [vmem:[%s0 + $0x30] sm:$0xff]
    %v43 = vld [vmem:[%s0 + $0x38] sm:$0xff]
    %v44 = vld [vmem:[%s0 + $0x40] sm:$0xff]
    %v45 = vld [vmem:[%s0 + $0x48] sm:$0xff]
    %v46 = vld [vmem:[%s0 + $0x50] sm:$0xff]
    %v47 = vld [vmem:[%s0 + $0x58] sm:$0xff]
    %v48 = vld [vmem:[%s0 + $0x60] sm:$0xff]
    %v49 = vld [vmem:[%s0 + $0x68] sm:$0xff]
    %v50 = vld [vmem:[%s0 + $0x70] sm:$0xff]
    %v51 = vld [vmem:[%s0 + $0x78] sm:$0xff]
    %v52 = vmul.f32 %v36, %v36
    %v53 = vmul.f32 %v37, %v37
    %v54 = vmul.f32 %v38, %v38
    %v55 = vmul.f32 %v39, %v39
    %v56 = vmul.f32 %v40, %v40
    %v57 = vmul.f32 %v41, %v41
    %v58 = vmul.f32 %v42, %v42
    %v59 = vmul.f32 %v43, %v43
    %v60 = vmul.f32 %v44, %v44
    %v61 = vmul.f32 %v45, %v45
    %v62 = vmul.f32 %v46, %v46
    %v63 = vmul.f32 %v47, %v47
    %v64 = vmul.f32 %v48, %v48
    %v65 = vmul.f32 %v49, %v49
    %v66 = vmul.f32 %v50, %v50
    %v67 = vmul.f32 %v51, %v51
    %vm68 = vcmask 261120
    %v69 = vsel %vm68, %v52, 0.0
    %70 = vadd.xlane.f32.xlu0 %v69
    %v71 = vpop.xlane.xlu0 %70
    %v72 = vsel %vm68, %v53, 0.0
    %73 = vadd.xlane.f32.xlu0 %v72
    %v74 = vpop.xlane.xlu0 %73
    %v75 = vsel %vm68, %v54, 0.0
    %76 = vadd.xlane.f32.xlu0 %v75
    %v77 = vpop.xlane.xlu0 %76
    %v78 = vsel %vm68, %v55, 0.0
    %79 = vadd.xlane.f32.xlu0 %v78
    %v80 = vpop.xlane.xlu0 %79
    %v81 = vsel %vm68, %v56, 0.0
    %82 = vadd.xlane.f32.xlu0 %v81
    %v83 = vpop.xlane.xlu0 %82
    %v84 = vsel %vm68, %v57, 0.0
    %85 = vadd.xlane.f32.xlu0 %v84
    %v86 = vpop.xlane.xlu0 %85
    %v87 = vsel %vm68, %v58, 0.0
    %88 = vadd.xlane.f32.xlu0 %v87
    %v89 = vpop.xlane.xlu0 %88
    %v90 = vsel %vm68, %v59, 0.0
    %91 = vadd.xlane.f32.xlu0 %v90
    %v92 = vpop.xlane.xlu0 %91
    %v93 = vsel %vm68, %v60, 0.0
    %94 = vadd.xlane.f32.xlu0 %v93
    %v95 = vpop.xlane.xlu0 %94
    %v96 = vsel %vm68, %v61, 0.0
    %97 = vadd.xlane.f32.xlu0 %v96
    %v98 = vpop.xlane.xlu0 %97
    %v99 = vsel %vm68, %v62, 0.0
    %100 = vadd.xlane.f32.xlu0 %v99
    %v101 = vpop.xlane.xlu0 %100
    %v102 = vsel %vm68, %v63, 0.0
    %103 = vadd.xlane.f32.xlu0 %v102
    %v104 = vpop.xlane.xlu0 %103
    %v105 = vsel %vm68, %v64, 0.0
    %106 = vadd.xlane.f32.xlu0 %v105
    %v107 = vpop.xlane.xlu0 %106
    %v108 = vsel %vm68, %v65, 0.0
    %109 = vadd.xlane.f32.xlu0 %v108
    %v110 = vpop.xlane.xlu0 %109
    %v111 = vsel %vm68, %v66, 0.0
    %112 = vadd.xlane.f32.xlu0 %v111
    %v113 = vpop.xlane.xlu0 %112
    %v114 = vsel %vm68, %v67, 0.0
    %115 = vadd.xlane.f32.xlu0 %v114
    %v116 = vpop.xlane.xlu0 %115
    %v117 = vmax.f32 %v71, 1e-24
    %v118 = vmax.f32 %v74, 1e-24
    %v119 = vmax.f32 %v77, 1e-24
    %v120 = vmax.f32 %v80, 1e-24
    %v121 = vmax.f32 %v83, 1e-24
    %v122 = vmax.f32 %v86, 1e-24
    %v123 = vmax.f32 %v89, 1e-24
    %v124 = vmax.f32 %v92, 1e-24
    %v125 = vmax.f32 %v95, 1e-24
    %v126 = vmax.f32 %v98, 1e-24
    %v127 = vmax.f32 %v101, 1e-24
    %v128 = vmax.f32 %v104, 1e-24
    %v129 = vmax.f32 %v107, 1e-24
    %v130 = vmax.f32 %v110, 1e-24
    %v131 = vmax.f32 %v113, 1e-24
    %v132 = vmax.f32 %v116, 1e-24
    %v133 = vrsqrt.pop %v117
    %v134 = vmul.f32 %v133, %v117
    %v135 = vmul.f32 %v134, %v133
    %v136 = vmul.f32 0.5, %v135
    %v137 = vsub.f32 1.5, %v136
    %v138 = vmul.f32 %v133, %v137
    %vm139 = vweird.f32 %v117
    %vm140 = vweird.f32 %v133
    %vm141 = vmor %vm139, %vm140
    %v142 = vsel %vm141, %v133, %v138
    %v143 = vrsqrt.pop %v118
    %v144 = vmul.f32 %v143, %v118
    %v145 = vmul.f32 %v144, %v143
    %v146 = vmul.f32 0.5, %v145
    %v147 = vsub.f32 1.5, %v146
    %v148 = vmul.f32 %v143, %v147
    %vm149 = vweird.f32 %v118
    %vm150 = vweird.f32 %v143
    %vm151 = vmor %vm149, %vm150
    %v152 = vsel %vm151, %v143, %v148
    %v153 = vrsqrt.pop %v119
    %v154 = vmul.f32 %v153, %v119
    %v155 = vmul.f32 %v154, %v153
    %v156 = vmul.f32 0.5, %v155
    %v157 = vsub.f32 1.5, %v156
    %v158 = vmul.f32 %v153, %v157
    %vm159 = vweird.f32 %v119
    %vm160 = vweird.f32 %v153
    %vm161 = vmor %vm159, %vm160
    %v162 = vsel %vm161, %v153, %v158
    %v163 = vrsqrt.pop %v120
    %v164 = vmul.f32 %v163, %v120
    %v165 = vmul.f32 %v164, %v163
    %v166 = vmul.f32 0.5, %v165
    %v167 = vsub.f32 1.5, %v166
    %v168 = vmul.f32 %v163, %v167
    %vm169 = vweird.f32 %v120
    %vm170 = vweird.f32 %v163
    %vm171 = vmor %vm169, %vm170
    %v172 = vsel %vm171, %v163, %v168
    %v173 = vrsqrt.pop %v121
    %v174 = vmul.f32 %v173, %v121
    %v175 = vmul.f32 %v174, %v173
    %v176 = vmul.f32 0.5, %v175
    %v177 = vsub.f32 1.5, %v176
    %v178 = vmul.f32 %v173, %v177
    %vm179 = vweird.f32 %v121
    %vm180 = vweird.f32 %v173
    %vm181 = vmor %vm179, %vm180
    %v182 = vsel %vm181, %v173, %v178
    %v183 = vrsqrt.pop %v122
    %v184 = vmul.f32 %v183, %v122
    %v185 = vmul.f32 %v184, %v183
    %v186 = vmul.f32 0.5, %v185
    %v187 = vsub.f32 1.5, %v186
    %v188 = vmul.f32 %v183, %v187
    %vm189 = vweird.f32 %v122
    %vm190 = vweird.f32 %v183
    %vm191 = vmor %vm189, %vm190
    %v192 = vsel %vm191, %v183, %v188
    %v193 = vrsqrt.pop %v123
    %v194 = vmul.f32 %v193, %v123
    %v195 = vmul.f32 %v194, %v193
    %v196 = vmul.f32 0.5, %v195
    %v197 = vsub.f32 1.5, %v196
    %v198 = vmul.f32 %v193, %v197
    %vm199 = vweird.f32 %v123
    %vm200 = vweird.f32 %v193
    %vm201 = vmor %vm199, %vm200
    %v202 = vsel %vm201, %v193, %v198
    %v203 = vrsqrt.pop %v124
    %v204 = vmul.f32 %v203, %v124
    %v205 = vmul.f32 %v204, %v203
    %v206 = vmul.f32 0.5, %v205
    %v207 = vsub.f32 1.5, %v206
    %v208 = vmul.f32 %v203, %v207
    %vm209 = vweird.f32 %v124
    %vm210 = vweird.f32 %v203
    %vm211 = vmor %vm209, %vm210
    %v212 = vsel %vm211, %v203, %v208
    %v213 = vrsqrt.pop %v125
    %v214 = vmul.f32 %v213, %v125
    %v215 = vmul.f32 %v214, %v213
    %v216 = vmul.f32 0.5, %v215
    %v217 = vsub.f32 1.5, %v216
    %v218 = vmul.f32 %v213, %v217
    %vm219 = vweird.f32 %v125
    %vm220 = vweird.f32 %v213
    %vm221 = vmor %vm219, %vm220
    %v222 = vsel %vm221, %v213, %v218
    %v223 = vrsqrt.pop %v126
    %v224 = vmul.f32 %v223, %v126
    %v225 = vmul.f32 %v224, %v223
    %v226 = vmul.f32 0.5, %v225
    %v227 = vsub.f32 1.5, %v226
    %v228 = vmul.f32 %v223, %v227
    %vm229 = vweird.f32 %v126
    %vm230 = vweird.f32 %v223
    %vm231 = vmor %vm229, %vm230
    %v232 = vsel %vm231, %v223, %v228
    %v233 = vrsqrt.pop %v127
    %v234 = vmul.f32 %v233, %v127
    %v235 = vmul.f32 %v234, %v233
    %v236 = vmul.f32 0.5, %v235
    %v237 = vsub.f32 1.5, %v236
    %v238 = vmul.f32 %v233, %v237
    %vm239 = vweird.f32 %v127
    %vm240 = vweird.f32 %v233
    %vm241 = vmor %vm239, %vm240
    %v242 = vsel %vm241, %v233, %v238
    %v243 = vrsqrt.pop %v128
    %v244 = vmul.f32 %v243, %v128
    %v245 = vmul.f32 %v244, %v243
    %v246 = vmul.f32 0.5, %v245
    %v247 = vsub.f32 1.5, %v246
    %v248 = vmul.f32 %v243, %v247
    %vm249 = vweird.f32 %v128
    %vm250 = vweird.f32 %v243
    %vm251 = vmor %vm249, %vm250
    %v252 = vsel %vm251, %v243, %v248
    %v253 = vrsqrt.pop %v129
    %v254 = vmul.f32 %v253, %v129
    %v255 = vmul.f32 %v254, %v253
    %v256 = vmul.f32 0.5, %v255
    %v257 = vsub.f32 1.5, %v256
    %v258 = vmul.f32 %v253, %v257
    %vm259 = vweird.f32 %v129
    %vm260 = vweird.f32 %v253
    %vm261 = vmor %vm259, %vm260
    %v262 = vsel %vm261, %v253, %v258
    %v263 = vrsqrt.pop %v130
    %v264 = vmul.f32 %v263, %v130
    %v265 = vmul.f32 %v264, %v263
    %v266 = vmul.f32 0.5, %v265
    %v267 = vsub.f32 1.5, %v266
    %v268 = vmul.f32 %v263, %v267
    %vm269 = vweird.f32 %v130
    %vm270 = vweird.f32 %v263
    %vm271 = vmor %vm269, %vm270
    %v272 = vsel %vm271, %v263, %v268
    %v273 = vrsqrt.pop %v131
    %v274 = vmul.f32 %v273, %v131
    %v275 = vmul.f32 %v274, %v273
    %v276 = vmul.f32 0.5, %v275
    %v277 = vsub.f32 1.5, %v276
    %v278 = vmul.f32 %v273, %v277
    %vm279 = vweird.f32 %v131
    %vm280 = vweird.f32 %v273
    %vm281 = vmor %vm279, %vm280
    %v282 = vsel %vm281, %v273, %v278
    %v283 = vrsqrt.pop %v132
    %v284 = vmul.f32 %v283, %v132
    %v285 = vmul.f32 %v284, %v283
    %v286 = vmul.f32 0.5, %v285
    %v287 = vsub.f32 1.5, %v286
    %v288 = vmul.f32 %v283, %v287
    %vm289 = vweird.f32 %v132
    %vm290 = vweird.f32 %v283
    %vm291 = vmor %vm289, %vm290
    %v292 = vsel %vm291, %v283, %v288
    %v293 = vmul.f32 %v36, %v142
    %v294 = vmul.f32 %v37, %v152
    %v295 = vmul.f32 %v38, %v162
    %v296 = vmul.f32 %v39, %v172
    %v297 = vmul.f32 %v40, %v182
    %v298 = vmul.f32 %v41, %v192
    %v299 = vmul.f32 %v42, %v202
    %v300 = vmul.f32 %v43, %v212
    %v301 = vmul.f32 %v44, %v222
    %v302 = vmul.f32 %v45, %v232
    %v303 = vmul.f32 %v46, %v242
    %v304 = vmul.f32 %v47, %v252
    %v305 = vmul.f32 %v48, %v262
    %v306 = vmul.f32 %v49, %v272
    %v307 = vmul.f32 %v50, %v282
    %v308 = vmul.f32 %v51, %v292
    %v309 = vld [vmem:[%s2] sm:$0xff]
    %v310 = vld [vmem:[%s2 + $0x8] sm:$0xff]
    %v311 = vld [vmem:[%s2 + $0x10] sm:$0xff]
    %v312 = vld [vmem:[%s2 + $0x18] sm:$0xff]
    %v313 = vld [vmem:[%s2 + $0x20] sm:$0xff]
    %v314 = vld [vmem:[%s2 + $0x28] sm:$0xff]
    %v315 = vld [vmem:[%s2 + $0x30] sm:$0xff]
    %v316 = vld [vmem:[%s2 + $0x38] sm:$0xff]
    %v317 = vld [vmem:[%s2 + $0x40] sm:$0xff]
    %v318 = vld [vmem:[%s2 + $0x48] sm:$0xff]
    %v319 = vld [vmem:[%s2 + $0x50] sm:$0xff]
    %v320 = vld [vmem:[%s2 + $0x58] sm:$0xff]
    %v321 = vld [vmem:[%s2 + $0x60] sm:$0xff]
    %v322 = vld [vmem:[%s2 + $0x68] sm:$0xff]
    %v323 = vld [vmem:[%s2 + $0x70] sm:$0xff]
    %v324 = vld [vmem:[%s2 + $0x78] sm:$0xff]
    %v325 = vmul.f32 %v309, %v309
    %v326 = vmul.f32 %v310, %v310
    %v327 = vmul.f32 %v311, %v311
    %v328 = vmul.f32 %v312, %v312
    %v329 = vmul.f32 %v313, %v313
    %v330 = vmul.f32 %v314, %v314
    %v331 = vmul.f32 %v315, %v315
    %v332 = vmul.f32 %v316, %v316
    %v333 = vmul.f32 %v317, %v317
    %v334 = vmul.f32 %v318, %v318
    %v335 = vmul.f32 %v319, %v319
    %v336 = vmul.f32 %v320, %v320
    %v337 = vmul.f32 %v321, %v321
    %v338 = vmul.f32 %v322, %v322
    %v339 = vmul.f32 %v323, %v323
    %v340 = vmul.f32 %v324, %v324
    %v341 = vsel %vm68, %v325, 0.0
    %342 = vadd.xlane.f32.xlu0 %v341
    %v343 = vpop.xlane.xlu0 %342
    %v344 = vsel %vm68, %v326, 0.0
    %345 = vadd.xlane.f32.xlu0 %v344
    %v346 = vpop.xlane.xlu0 %345
    %v347 = vsel %vm68, %v327, 0.0
    %348 = vadd.xlane.f32.xlu0 %v347
    %v349 = vpop.xlane.xlu0 %348
    %v350 = vsel %vm68, %v328, 0.0
    %351 = vadd.xlane.f32.xlu0 %v350
    %v352 = vpop.xlane.xlu0 %351
    %v353 = vsel %vm68, %v329, 0.0
    %354 = vadd.xlane.f32.xlu0 %v353
    %v355 = vpop.xlane.xlu0 %354
    %v356 = vsel %vm68, %v330, 0.0
    %357 = vadd.xlane.f32.xlu0 %v356
    %v358 = vpop.xlane.xlu0 %357
    %v359 = vsel %vm68, %v331, 0.0
    %360 = vadd.xlane.f32.xlu0 %v359
    %v361 = vpop.xlane.xlu0 %360
    %v362 = vsel %vm68, %v332, 0.0
    %363 = vadd.xlane.f32.xlu0 %v362
    %v364 = vpop.xlane.xlu0 %363
    %v365 = vsel %vm68, %v333, 0.0
    %366 = vadd.xlane.f32.xlu0 %v365
    %v367 = vpop.xlane.xlu0 %366
    %v368 = vsel %vm68, %v334, 0.0
    %369 = vadd.xlane.f32.xlu0 %v368
    %v370 = vpop.xlane.xlu0 %369
    %v371 = vsel %vm68, %v335, 0.0
    %372 = vadd.xlane.f32.xlu0 %v371
    %v373 = vpop.xlane.xlu0 %372
    %v374 = vsel %vm68, %v336, 0.0
    %375 = vadd.xlane.f32.xlu0 %v374
    %v376 = vpop.xlane.xlu0 %375
    %v377 = vsel %vm68, %v337, 0.0
    %378 = vadd.xlane.f32.xlu0 %v377
    %v379 = vpop.xlane.xlu0 %378
    %v380 = vsel %vm68, %v338, 0.0
    %381 = vadd.xlane.f32.xlu0 %v380
    %v382 = vpop.xlane.xlu0 %381
    %v383 = vsel %vm68, %v339, 0.0
    %384 = vadd.xlane.f32.xlu0 %v383
    %v385 = vpop.xlane.xlu0 %384
    %v386 = vsel %vm68, %v340, 0.0
    %387 = vadd.xlane.f32.xlu0 %v386
    %v388 = vpop.xlane.xlu0 %387
    %v389 = vmax.f32 %v343, 1e-24
    %v390 = vmax.f32 %v346, 1e-24
    %v391 = vmax.f32 %v349, 1e-24
    %v392 = vmax.f32 %v352, 1e-24
    %v393 = vmax.f32 %v355, 1e-24
    %v394 = vmax.f32 %v358, 1e-24
    %v395 = vmax.f32 %v361, 1e-24
    %v396 = vmax.f32 %v364, 1e-24
    %v397 = vmax.f32 %v367, 1e-24
    %v398 = vmax.f32 %v370, 1e-24
    %v399 = vmax.f32 %v373, 1e-24
    %v400 = vmax.f32 %v376, 1e-24
    %v401 = vmax.f32 %v379, 1e-24
    %v402 = vmax.f32 %v382, 1e-24
    %v403 = vmax.f32 %v385, 1e-24
    %v404 = vmax.f32 %v388, 1e-24
    %v405 = vrsqrt.pop %v389
    %v406 = vmul.f32 %v405, %v389
    %v407 = vmul.f32 %v406, %v405
    %v408 = vmul.f32 0.5, %v407
    %v409 = vsub.f32 1.5, %v408
    %v410 = vmul.f32 %v405, %v409
    %vm411 = vweird.f32 %v389
    %vm412 = vweird.f32 %v405
    %vm413 = vmor %vm411, %vm412
    %v414 = vsel %vm413, %v405, %v410
    %v415 = vrsqrt.pop %v390
    %v416 = vmul.f32 %v415, %v390
    %v417 = vmul.f32 %v416, %v415
    %v418 = vmul.f32 0.5, %v417
    %v419 = vsub.f32 1.5, %v418
    %v420 = vmul.f32 %v415, %v419
    %vm421 = vweird.f32 %v390
    %vm422 = vweird.f32 %v415
    %vm423 = vmor %vm421, %vm422
    %v424 = vsel %vm423, %v415, %v420
    %v425 = vrsqrt.pop %v391
    %v426 = vmul.f32 %v425, %v391
    %v427 = vmul.f32 %v426, %v425
    %v428 = vmul.f32 0.5, %v427
    %v429 = vsub.f32 1.5, %v428
    %v430 = vmul.f32 %v425, %v429
    %vm431 = vweird.f32 %v391
    %vm432 = vweird.f32 %v425
    %vm433 = vmor %vm431, %vm432
    %v434 = vsel %vm433, %v425, %v430
    %v435 = vrsqrt.pop %v392
    %v436 = vmul.f32 %v435, %v392
    %v437 = vmul.f32 %v436, %v435
    %v438 = vmul.f32 0.5, %v437
    %v439 = vsub.f32 1.5, %v438
    %v440 = vmul.f32 %v435, %v439
    %vm441 = vweird.f32 %v392
    %vm442 = vweird.f32 %v435
    %vm443 = vmor %vm441, %vm442
    %v444 = vsel %vm443, %v435, %v440
    %v445 = vrsqrt.pop %v393
    %v446 = vmul.f32 %v445, %v393
    %v447 = vmul.f32 %v446, %v445
    %v448 = vmul.f32 0.5, %v447
    %v449 = vsub.f32 1.5, %v448
    %v450 = vmul.f32 %v445, %v449
    %vm451 = vweird.f32 %v393
    %vm452 = vweird.f32 %v445
    %vm453 = vmor %vm451, %vm452
    %v454 = vsel %vm453, %v445, %v450
    %v455 = vrsqrt.pop %v394
    %v456 = vmul.f32 %v455, %v394
    %v457 = vmul.f32 %v456, %v455
    %v458 = vmul.f32 0.5, %v457
    %v459 = vsub.f32 1.5, %v458
    %v460 = vmul.f32 %v455, %v459
    %vm461 = vweird.f32 %v394
    %vm462 = vweird.f32 %v455
    %vm463 = vmor %vm461, %vm462
    %v464 = vsel %vm463, %v455, %v460
    %v465 = vrsqrt.pop %v395
    %v466 = vmul.f32 %v465, %v395
    %v467 = vmul.f32 %v466, %v465
    %v468 = vmul.f32 0.5, %v467
    %v469 = vsub.f32 1.5, %v468
    %v470 = vmul.f32 %v465, %v469
    %vm471 = vweird.f32 %v395
    %vm472 = vweird.f32 %v465
    %vm473 = vmor %vm471, %vm472
    %v474 = vsel %vm473, %v465, %v470
    %v475 = vrsqrt.pop %v396
    %v476 = vmul.f32 %v475, %v396
    %v477 = vmul.f32 %v476, %v475
    %v478 = vmul.f32 0.5, %v477
    %v479 = vsub.f32 1.5, %v478
    %v480 = vmul.f32 %v475, %v479
    %vm481 = vweird.f32 %v396
    %vm482 = vweird.f32 %v475
    %vm483 = vmor %vm481, %vm482
    %v484 = vsel %vm483, %v475, %v480
    %v485 = vrsqrt.pop %v397
    %v486 = vmul.f32 %v485, %v397
    %v487 = vmul.f32 %v486, %v485
    %v488 = vmul.f32 0.5, %v487
    %v489 = vsub.f32 1.5, %v488
    %v490 = vmul.f32 %v485, %v489
    %vm491 = vweird.f32 %v397
    %vm492 = vweird.f32 %v485
    %vm493 = vmor %vm491, %vm492
    %v494 = vsel %vm493, %v485, %v490
    %v495 = vrsqrt.pop %v398
    %v496 = vmul.f32 %v495, %v398
    %v497 = vmul.f32 %v496, %v495
    %v498 = vmul.f32 0.5, %v497
    %v499 = vsub.f32 1.5, %v498
    %v500 = vmul.f32 %v495, %v499
    %vm501 = vweird.f32 %v398
    %vm502 = vweird.f32 %v495
    %vm503 = vmor %vm501, %vm502
    %v504 = vsel %vm503, %v495, %v500
    %v505 = vrsqrt.pop %v399
    %v506 = vmul.f32 %v505, %v399
    %v507 = vmul.f32 %v506, %v505
    %v508 = vmul.f32 0.5, %v507
    %v509 = vsub.f32 1.5, %v508
    %v510 = vmul.f32 %v505, %v509
    %vm511 = vweird.f32 %v399
    %vm512 = vweird.f32 %v505
    %vm513 = vmor %vm511, %vm512
    %v514 = vsel %vm513, %v505, %v510
    %v515 = vrsqrt.pop %v400
    %v516 = vmul.f32 %v515, %v400
    %v517 = vmul.f32 %v516, %v515
    %v518 = vmul.f32 0.5, %v517
    %v519 = vsub.f32 1.5, %v518
    %v520 = vmul.f32 %v515, %v519
    %vm521 = vweird.f32 %v400
    %vm522 = vweird.f32 %v515
    %vm523 = vmor %vm521, %vm522
    %v524 = vsel %vm523, %v515, %v520
    %v525 = vrsqrt.pop %v401
    %v526 = vmul.f32 %v525, %v401
    %v527 = vmul.f32 %v526, %v525
    %v528 = vmul.f32 0.5, %v527
    %v529 = vsub.f32 1.5, %v528
    %v530 = vmul.f32 %v525, %v529
    %vm531 = vweird.f32 %v401
    %vm532 = vweird.f32 %v525
    %vm533 = vmor %vm531, %vm532
    %v534 = vsel %vm533, %v525, %v530
    %v535 = vrsqrt.pop %v402
    %v536 = vmul.f32 %v535, %v402
    %v537 = vmul.f32 %v536, %v535
    %v538 = vmul.f32 0.5, %v537
    %v539 = vsub.f32 1.5, %v538
    %v540 = vmul.f32 %v535, %v539
    %vm541 = vweird.f32 %v402
    %vm542 = vweird.f32 %v535
    %vm543 = vmor %vm541, %vm542
    %v544 = vsel %vm543, %v535, %v540
    %v545 = vrsqrt.pop %v403
    %v546 = vmul.f32 %v545, %v403
    %v547 = vmul.f32 %v546, %v545
    %v548 = vmul.f32 0.5, %v547
    %v549 = vsub.f32 1.5, %v548
    %v550 = vmul.f32 %v545, %v549
    %vm551 = vweird.f32 %v403
    %vm552 = vweird.f32 %v545
    %vm553 = vmor %vm551, %vm552
    %v554 = vsel %vm553, %v545, %v550
    %v555 = vrsqrt.pop %v404
    %v556 = vmul.f32 %v555, %v404
    %v557 = vmul.f32 %v556, %v555
    %v558 = vmul.f32 0.5, %v557
    %v559 = vsub.f32 1.5, %v558
    %v560 = vmul.f32 %v555, %v559
    %vm561 = vweird.f32 %v404
    %vm562 = vweird.f32 %v555
    %vm563 = vmor %vm561, %vm562
    %v564 = vsel %vm563, %v555, %v560
    %v565 = vmul.f32 %v309, %v414
    %v566 = vmul.f32 %v310, %v424
    %v567 = vmul.f32 %v311, %v434
    %v568 = vmul.f32 %v312, %v444
    %v569 = vmul.f32 %v313, %v454
    %v570 = vmul.f32 %v314, %v464
    %v571 = vmul.f32 %v315, %v474
    %v572 = vmul.f32 %v316, %v484
    %v573 = vmul.f32 %v317, %v494
    %v574 = vmul.f32 %v318, %v504
    %v575 = vmul.f32 %v319, %v514
    %v576 = vmul.f32 %v320, %v524
    %v577 = vmul.f32 %v321, %v534
    %v578 = vmul.f32 %v322, %v544
    %v579 = vmul.f32 %v323, %v554
    %v580 = vmul.f32 %v324, %v564
    %v581 = vld [vmem:[%s3] sm:$0xff]
    %v582 = vld [vmem:[%s3 + $0x8] sm:$0xff]
    %v583 = vld [vmem:[%s3 + $0x10] sm:$0xff]
    %v584 = vld [vmem:[%s3 + $0x18] sm:$0xff]
    %v585 = vld [vmem:[%s3 + $0x20] sm:$0xff]
    %v586 = vld [vmem:[%s3 + $0x28] sm:$0xff]
    %v587 = vld [vmem:[%s3 + $0x30] sm:$0xff]
    %v588 = vld [vmem:[%s3 + $0x38] sm:$0xff]
    %v589 = vld [vmem:[%s3 + $0x40] sm:$0xff]
    %v590 = vld [vmem:[%s3 + $0x48] sm:$0xff]
    %v591 = vld [vmem:[%s3 + $0x50] sm:$0xff]
    %v592 = vld [vmem:[%s3 + $0x58] sm:$0xff]
    %v593 = vld [vmem:[%s3 + $0x60] sm:$0xff]
    %v594 = vld [vmem:[%s3 + $0x68] sm:$0xff]
    %v595 = vld [vmem:[%s3 + $0x70] sm:$0xff]
    %v596 = vld [vmem:[%s3 + $0x78] sm:$0xff]
    %v597 = vmul.f32 %v581, %v581
    %v598 = vmul.f32 %v582, %v582
    %v599 = vmul.f32 %v583, %v583
    %v600 = vmul.f32 %v584, %v584
    %v601 = vmul.f32 %v585, %v585
    %v602 = vmul.f32 %v586, %v586
    %v603 = vmul.f32 %v587, %v587
    %v604 = vmul.f32 %v588, %v588
    %v605 = vmul.f32 %v589, %v589
    %v606 = vmul.f32 %v590, %v590
    %v607 = vmul.f32 %v591, %v591
    %v608 = vmul.f32 %v592, %v592
    %v609 = vmul.f32 %v593, %v593
    %v610 = vmul.f32 %v594, %v594
    %v611 = vmul.f32 %v595, %v595
    %v612 = vmul.f32 %v596, %v596
    %v613 = vsel %vm68, %v597, 0.0
    %614 = vadd.xlane.f32.xlu0 %v613
    %v615 = vpop.xlane.xlu0 %614
    %v616 = vsel %vm68, %v598, 0.0
    %617 = vadd.xlane.f32.xlu0 %v616
    %v618 = vpop.xlane.xlu0 %617
    %v619 = vsel %vm68, %v599, 0.0
    %620 = vadd.xlane.f32.xlu0 %v619
    %v621 = vpop.xlane.xlu0 %620
    %v622 = vsel %vm68, %v600, 0.0
    %623 = vadd.xlane.f32.xlu0 %v622
    %v624 = vpop.xlane.xlu0 %623
    %v625 = vsel %vm68, %v601, 0.0
    %626 = vadd.xlane.f32.xlu0 %v625
    %v627 = vpop.xlane.xlu0 %626
    %v628 = vsel %vm68, %v602, 0.0
    %629 = vadd.xlane.f32.xlu0 %v628
    %v630 = vpop.xlane.xlu0 %629
    %v631 = vsel %vm68, %v603, 0.0
    %632 = vadd.xlane.f32.xlu0 %v631
    %v633 = vpop.xlane.xlu0 %632
    %v634 = vsel %vm68, %v604, 0.0
    %635 = vadd.xlane.f32.xlu0 %v634
    %v636 = vpop.xlane.xlu0 %635
    %v637 = vsel %vm68, %v605, 0.0
    %638 = vadd.xlane.f32.xlu0 %v637
    %v639 = vpop.xlane.xlu0 %638
    %v640 = vsel %vm68, %v606, 0.0
    %641 = vadd.xlane.f32.xlu0 %v640
    %v642 = vpop.xlane.xlu0 %641
    %v643 = vsel %vm68, %v607, 0.0
    %644 = vadd.xlane.f32.xlu0 %v643
    %v645 = vpop.xlane.xlu0 %644
    %v646 = vsel %vm68, %v608, 0.0
    %647 = vadd.xlane.f32.xlu0 %v646
    %v648 = vpop.xlane.xlu0 %647
    %v649 = vsel %vm68, %v609, 0.0
    %650 = vadd.xlane.f32.xlu0 %v649
    %v651 = vpop.xlane.xlu0 %650
    %v652 = vsel %vm68, %v610, 0.0
    %653 = vadd.xlane.f32.xlu0 %v652
    %v654 = vpop.xlane.xlu0 %653
    %v655 = vsel %vm68, %v611, 0.0
    %656 = vadd.xlane.f32.xlu0 %v655
    %v657 = vpop.xlane.xlu0 %656
    %v658 = vsel %vm68, %v612, 0.0
    %659 = vadd.xlane.f32.xlu0 %v658
    %v660 = vpop.xlane.xlu0 %659
    %v661 = vmax.f32 %v615, 1e-24
    %v662 = vmax.f32 %v618, 1e-24
    %v663 = vmax.f32 %v621, 1e-24
    %v664 = vmax.f32 %v624, 1e-24
    %v665 = vmax.f32 %v627, 1e-24
    %v666 = vmax.f32 %v630, 1e-24
    %v667 = vmax.f32 %v633, 1e-24
    %v668 = vmax.f32 %v636, 1e-24
    %v669 = vmax.f32 %v639, 1e-24
    %v670 = vmax.f32 %v642, 1e-24
    %v671 = vmax.f32 %v645, 1e-24
    %v672 = vmax.f32 %v648, 1e-24
    %v673 = vmax.f32 %v651, 1e-24
    %v674 = vmax.f32 %v654, 1e-24
    %v675 = vmax.f32 %v657, 1e-24
    %v676 = vmax.f32 %v660, 1e-24
    %v677 = vrsqrt.pop %v661
    %v678 = vmul.f32 %v677, %v661
    %v679 = vmul.f32 %v678, %v677
    %v680 = vmul.f32 0.5, %v679
    %v681 = vsub.f32 1.5, %v680
    %v682 = vmul.f32 %v677, %v681
    %vm683 = vweird.f32 %v661
    %vm684 = vweird.f32 %v677
    %vm685 = vmor %vm683, %vm684
    %v686 = vsel %vm685, %v677, %v682
    %v687 = vrsqrt.pop %v662
    %v688 = vmul.f32 %v687, %v662
    %v689 = vmul.f32 %v688, %v687
    %v690 = vmul.f32 0.5, %v689
    %v691 = vsub.f32 1.5, %v690
    %v692 = vmul.f32 %v687, %v691
    %vm693 = vweird.f32 %v662
    %vm694 = vweird.f32 %v687
    %vm695 = vmor %vm693, %vm694
    %v696 = vsel %vm695, %v687, %v692
    %v697 = vrsqrt.pop %v663
    %v698 = vmul.f32 %v697, %v663
    %v699 = vmul.f32 %v698, %v697
    %v700 = vmul.f32 0.5, %v699
    %v701 = vsub.f32 1.5, %v700
    %v702 = vmul.f32 %v697, %v701
    %vm703 = vweird.f32 %v663
    %vm704 = vweird.f32 %v697
    %vm705 = vmor %vm703, %vm704
    %v706 = vsel %vm705, %v697, %v702
    %v707 = vrsqrt.pop %v664
    %v708 = vmul.f32 %v707, %v664
    %v709 = vmul.f32 %v708, %v707
    %v710 = vmul.f32 0.5, %v709
    %v711 = vsub.f32 1.5, %v710
    %v712 = vmul.f32 %v707, %v711
    %vm713 = vweird.f32 %v664
    %vm714 = vweird.f32 %v707
    %vm715 = vmor %vm713, %vm714
    %v716 = vsel %vm715, %v707, %v712
    %v717 = vrsqrt.pop %v665
    %v718 = vmul.f32 %v717, %v665
    %v719 = vmul.f32 %v718, %v717
    %v720 = vmul.f32 0.5, %v719
    %v721 = vsub.f32 1.5, %v720
    %v722 = vmul.f32 %v717, %v721
    %vm723 = vweird.f32 %v665
    %vm724 = vweird.f32 %v717
    %vm725 = vmor %vm723, %vm724
    %v726 = vsel %vm725, %v717, %v722
    %v727 = vrsqrt.pop %v666
    %v728 = vmul.f32 %v727, %v666
    %v729 = vmul.f32 %v728, %v727
    %v730 = vmul.f32 0.5, %v729
    %v731 = vsub.f32 1.5, %v730
    %v732 = vmul.f32 %v727, %v731
    %vm733 = vweird.f32 %v666
    %vm734 = vweird.f32 %v727
    %vm735 = vmor %vm733, %vm734
    %v736 = vsel %vm735, %v727, %v732
    %v737 = vrsqrt.pop %v667
    %v738 = vmul.f32 %v737, %v667
    %v739 = vmul.f32 %v738, %v737
    %v740 = vmul.f32 0.5, %v739
    %v741 = vsub.f32 1.5, %v740
    %v742 = vmul.f32 %v737, %v741
    %vm743 = vweird.f32 %v667
    %vm744 = vweird.f32 %v737
    %vm745 = vmor %vm743, %vm744
    %v746 = vsel %vm745, %v737, %v742
    %v747 = vrsqrt.pop %v668
    %v748 = vmul.f32 %v747, %v668
    %v749 = vmul.f32 %v748, %v747
    %v750 = vmul.f32 0.5, %v749
    %v751 = vsub.f32 1.5, %v750
    %v752 = vmul.f32 %v747, %v751
    %vm753 = vweird.f32 %v668
    %vm754 = vweird.f32 %v747
    %vm755 = vmor %vm753, %vm754
    %v756 = vsel %vm755, %v747, %v752
    %v757 = vrsqrt.pop %v669
    %v758 = vmul.f32 %v757, %v669
    %v759 = vmul.f32 %v758, %v757
    %v760 = vmul.f32 0.5, %v759
    %v761 = vsub.f32 1.5, %v760
    %v762 = vmul.f32 %v757, %v761
    %vm763 = vweird.f32 %v669
    %vm764 = vweird.f32 %v757
    %vm765 = vmor %vm763, %vm764
    %v766 = vsel %vm765, %v757, %v762
    %v767 = vrsqrt.pop %v670
    %v768 = vmul.f32 %v767, %v670
    %v769 = vmul.f32 %v768, %v767
    %v770 = vmul.f32 0.5, %v769
    %v771 = vsub.f32 1.5, %v770
    %v772 = vmul.f32 %v767, %v771
    %vm773 = vweird.f32 %v670
    %vm774 = vweird.f32 %v767
    %vm775 = vmor %vm773, %vm774
    %v776 = vsel %vm775, %v767, %v772
    %v777 = vrsqrt.pop %v671
    %v778 = vmul.f32 %v777, %v671
    %v779 = vmul.f32 %v778, %v777
    %v780 = vmul.f32 0.5, %v779
    %v781 = vsub.f32 1.5, %v780
    %v782 = vmul.f32 %v777, %v781
    %vm783 = vweird.f32 %v671
    %vm784 = vweird.f32 %v777
    %vm785 = vmor %vm783, %vm784
    %v786 = vsel %vm785, %v777, %v782
    %v787 = vrsqrt.pop %v672
    %v788 = vmul.f32 %v787, %v672
    %v789 = vmul.f32 %v788, %v787
    %v790 = vmul.f32 0.5, %v789
    %v791 = vsub.f32 1.5, %v790
    %v792 = vmul.f32 %v787, %v791
    %vm793 = vweird.f32 %v672
    %vm794 = vweird.f32 %v787
    %vm795 = vmor %vm793, %vm794
    %v796 = vsel %vm795, %v787, %v792
    %v797 = vrsqrt.pop %v673
    %v798 = vmul.f32 %v797, %v673
    %v799 = vmul.f32 %v798, %v797
    %v800 = vmul.f32 0.5, %v799
    %v801 = vsub.f32 1.5, %v800
    %v802 = vmul.f32 %v797, %v801
    %vm803 = vweird.f32 %v673
    %vm804 = vweird.f32 %v797
    %vm805 = vmor %vm803, %vm804
    %v806 = vsel %vm805, %v797, %v802
    %v807 = vrsqrt.pop %v674
    %v808 = vmul.f32 %v807, %v674
    %v809 = vmul.f32 %v808, %v807
    %v810 = vmul.f32 0.5, %v809
    %v811 = vsub.f32 1.5, %v810
    %v812 = vmul.f32 %v807, %v811
    %vm813 = vweird.f32 %v674
    %vm814 = vweird.f32 %v807
    %vm815 = vmor %vm813, %vm814
    %v816 = vsel %vm815, %v807, %v812
    %v817 = vrsqrt.pop %v675
    %v818 = vmul.f32 %v817, %v675
    %v819 = vmul.f32 %v818, %v817
    %v820 = vmul.f32 0.5, %v819
    %v821 = vsub.f32 1.5, %v820
    %v822 = vmul.f32 %v817, %v821
    %vm823 = vweird.f32 %v675
    %vm824 = vweird.f32 %v817
    %vm825 = vmor %vm823, %vm824
    %v826 = vsel %vm825, %v817, %v822
    %v827 = vrsqrt.pop %v676
    %v828 = vmul.f32 %v827, %v676
    %v829 = vmul.f32 %v828, %v827
    %v830 = vmul.f32 0.5, %v829
    %v831 = vsub.f32 1.5, %v830
    %v832 = vmul.f32 %v827, %v831
    %vm833 = vweird.f32 %v676
    %vm834 = vweird.f32 %v827
    %vm835 = vmor %vm833, %vm834
    %v836 = vsel %vm835, %v827, %v832
    %v837 = vmul.f32 %v581, %v686
    %v838 = vmul.f32 %v582, %v696
    %v839 = vmul.f32 %v583, %v706
    %v840 = vmul.f32 %v584, %v716
    %v841 = vmul.f32 %v585, %v726
    %v842 = vmul.f32 %v586, %v736
    %v843 = vmul.f32 %v587, %v746
    %v844 = vmul.f32 %v588, %v756
    %v845 = vmul.f32 %v589, %v766
    %v846 = vmul.f32 %v590, %v776
    %v847 = vmul.f32 %v591, %v786
    %v848 = vmul.f32 %v592, %v796
    %v849 = vmul.f32 %v593, %v806
    %v850 = vmul.f32 %v594, %v816
    %v851 = vmul.f32 %v595, %v826
    %v852 = vmul.f32 %v596, %v836
    %v853 = vld [vmem:[%s5] sm:$0xff]
    %v854 = vld [vmem:[%s5 + $0x8] sm:$0xff]
    %v855 = vld [vmem:[%s5 + $0x10] sm:$0xff]
    %v856 = vld [vmem:[%s5 + $0x18] sm:$0xff]
    %v857 = vld [vmem:[%s5 + $0x20] sm:$0xff]
    %v858 = vld [vmem:[%s5 + $0x28] sm:$0xff]
    %v859 = vld [vmem:[%s5 + $0x30] sm:$0xff]
    %v860 = vld [vmem:[%s5 + $0x38] sm:$0xff]
    %v861 = vld [vmem:[%s5 + $0x40] sm:$0xff]
    %v862 = vld [vmem:[%s5 + $0x48] sm:$0xff]
    %v863 = vld [vmem:[%s5 + $0x50] sm:$0xff]
    %v864 = vld [vmem:[%s5 + $0x58] sm:$0xff]
    %v865 = vld [vmem:[%s5 + $0x60] sm:$0xff]
    %v866 = vld [vmem:[%s5 + $0x68] sm:$0xff]
    %v867 = vld [vmem:[%s5 + $0x70] sm:$0xff]
    %v868 = vld [vmem:[%s5 + $0x78] sm:$0xff]
    %v869 = vmul.f32 %v853, %v853
    %v870 = vmul.f32 %v854, %v854
    %v871 = vmul.f32 %v855, %v855
    %v872 = vmul.f32 %v856, %v856
    %v873 = vmul.f32 %v857, %v857
    %v874 = vmul.f32 %v858, %v858
    %v875 = vmul.f32 %v859, %v859
    %v876 = vmul.f32 %v860, %v860
    %v877 = vmul.f32 %v861, %v861
    %v878 = vmul.f32 %v862, %v862
    %v879 = vmul.f32 %v863, %v863
    %v880 = vmul.f32 %v864, %v864
    %v881 = vmul.f32 %v865, %v865
    %v882 = vmul.f32 %v866, %v866
    %v883 = vmul.f32 %v867, %v867
    %v884 = vmul.f32 %v868, %v868
    %v885 = vsel %vm68, %v869, 0.0
    %886 = vadd.xlane.f32.xlu0 %v885
    %v887 = vpop.xlane.xlu0 %886
    %v888 = vsel %vm68, %v870, 0.0
    %889 = vadd.xlane.f32.xlu0 %v888
    %v890 = vpop.xlane.xlu0 %889
    %v891 = vsel %vm68, %v871, 0.0
    %892 = vadd.xlane.f32.xlu0 %v891
    %v893 = vpop.xlane.xlu0 %892
    %v894 = vsel %vm68, %v872, 0.0
    %895 = vadd.xlane.f32.xlu0 %v894
    %v896 = vpop.xlane.xlu0 %895
    %v897 = vsel %vm68, %v873, 0.0
    %898 = vadd.xlane.f32.xlu0 %v897
    %v899 = vpop.xlane.xlu0 %898
    %v900 = vsel %vm68, %v874, 0.0
    %901 = vadd.xlane.f32.xlu0 %v900
    %v902 = vpop.xlane.xlu0 %901
    %v903 = vsel %vm68, %v875, 0.0
    %904 = vadd.xlane.f32.xlu0 %v903
    %v905 = vpop.xlane.xlu0 %904
    %v906 = vsel %vm68, %v876, 0.0
    %907 = vadd.xlane.f32.xlu0 %v906
    %v908 = vpop.xlane.xlu0 %907
    %v909 = vsel %vm68, %v877, 0.0
    %910 = vadd.xlane.f32.xlu0 %v909
    %v911 = vpop.xlane.xlu0 %910
    %v912 = vsel %vm68, %v878, 0.0
    %913 = vadd.xlane.f32.xlu0 %v912
    %v914 = vpop.xlane.xlu0 %913
    %v915 = vsel %vm68, %v879, 0.0
    %916 = vadd.xlane.f32.xlu0 %v915
    %v917 = vpop.xlane.xlu0 %916
    %v918 = vsel %vm68, %v880, 0.0
    %919 = vadd.xlane.f32.xlu0 %v918
    %v920 = vpop.xlane.xlu0 %919
    %v921 = vsel %vm68, %v881, 0.0
    %922 = vadd.xlane.f32.xlu0 %v921
    %v923 = vpop.xlane.xlu0 %922
    %v924 = vsel %vm68, %v882, 0.0
    %925 = vadd.xlane.f32.xlu0 %v924
    %v926 = vpop.xlane.xlu0 %925
    %v927 = vsel %vm68, %v883, 0.0
    %928 = vadd.xlane.f32.xlu0 %v927
    %v929 = vpop.xlane.xlu0 %928
    %v930 = vsel %vm68, %v884, 0.0
    %931 = vadd.xlane.f32.xlu0 %v930
    %v932 = vpop.xlane.xlu0 %931
    %v933 = vmax.f32 %v887, 1e-24
    %v934 = vmax.f32 %v890, 1e-24
    %v935 = vmax.f32 %v893, 1e-24
    %v936 = vmax.f32 %v896, 1e-24
    %v937 = vmax.f32 %v899, 1e-24
    %v938 = vmax.f32 %v902, 1e-24
    %v939 = vmax.f32 %v905, 1e-24
    %v940 = vmax.f32 %v908, 1e-24
    %v941 = vmax.f32 %v911, 1e-24
    %v942 = vmax.f32 %v914, 1e-24
    %v943 = vmax.f32 %v917, 1e-24
    %v944 = vmax.f32 %v920, 1e-24
    %v945 = vmax.f32 %v923, 1e-24
    %v946 = vmax.f32 %v926, 1e-24
    %v947 = vmax.f32 %v929, 1e-24
    %v948 = vmax.f32 %v932, 1e-24
    %v949 = vrsqrt.pop %v933
    %v950 = vmul.f32 %v949, %v933
    %v951 = vmul.f32 %v950, %v949
    %v952 = vmul.f32 0.5, %v951
    %v953 = vsub.f32 1.5, %v952
    %v954 = vmul.f32 %v949, %v953
    %vm955 = vweird.f32 %v933
    %vm956 = vweird.f32 %v949
    %vm957 = vmor %vm955, %vm956
    %v958 = vsel %vm957, %v949, %v954
    %v959 = vrsqrt.pop %v934
    %v960 = vmul.f32 %v959, %v934
    %v961 = vmul.f32 %v960, %v959
    %v962 = vmul.f32 0.5, %v961
    %v963 = vsub.f32 1.5, %v962
    %v964 = vmul.f32 %v959, %v963
    %vm965 = vweird.f32 %v934
    %vm966 = vweird.f32 %v959
    %vm967 = vmor %vm965, %vm966
    %v968 = vsel %vm967, %v959, %v964
    %v969 = vrsqrt.pop %v935
    %v970 = vmul.f32 %v969, %v935
    %v971 = vmul.f32 %v970, %v969
    %v972 = vmul.f32 0.5, %v971
    %v973 = vsub.f32 1.5, %v972
    %v974 = vmul.f32 %v969, %v973
    %vm975 = vweird.f32 %v935
    %vm976 = vweird.f32 %v969
    %vm977 = vmor %vm975, %vm976
    %v978 = vsel %vm977, %v969, %v974
    %v979 = vrsqrt.pop %v936
    %v980 = vmul.f32 %v979, %v936
    %v981 = vmul.f32 %v980, %v979
    %v982 = vmul.f32 0.5, %v981
    %v983 = vsub.f32 1.5, %v982
    %v984 = vmul.f32 %v979, %v983
    %vm985 = vweird.f32 %v936
    %vm986 = vweird.f32 %v979
    %vm987 = vmor %vm985, %vm986
    %v988 = vsel %vm987, %v979, %v984
    %v989 = vrsqrt.pop %v937
    %v990 = vmul.f32 %v989, %v937
    %v991 = vmul.f32 %v990, %v989
    %v992 = vmul.f32 0.5, %v991
    %v993 = vsub.f32 1.5, %v992
    %v994 = vmul.f32 %v989, %v993
    %vm995 = vweird.f32 %v937
    %vm996 = vweird.f32 %v989
    %vm997 = vmor %vm995, %vm996
    %v998 = vsel %vm997, %v989, %v994
    %v999 = vrsqrt.pop %v938
    %v1000 = vmul.f32 %v999, %v938
    %v1001 = vmul.f32 %v1000, %v999
    %v1002 = vmul.f32 0.5, %v1001
    %v1003 = vsub.f32 1.5, %v1002
    %v1004 = vmul.f32 %v999, %v1003
    %vm1005 = vweird.f32 %v938
    %vm1006 = vweird.f32 %v999
    %vm1007 = vmor %vm1005, %vm1006
    %v1008 = vsel %vm1007, %v999, %v1004
    %v1009 = vrsqrt.pop %v939
    %v1010 = vmul.f32 %v1009, %v939
    %v1011 = vmul.f32 %v1010, %v1009
    %v1012 = vmul.f32 0.5, %v1011
    %v1013 = vsub.f32 1.5, %v1012
    %v1014 = vmul.f32 %v1009, %v1013
    %vm1015 = vweird.f32 %v939
    %vm1016 = vweird.f32 %v1009
    %vm1017 = vmor %vm1015, %vm1016
    %v1018 = vsel %vm1017, %v1009, %v1014
    %v1019 = vrsqrt.pop %v940
    %v1020 = vmul.f32 %v1019, %v940
    %v1021 = vmul.f32 %v1020, %v1019
    %v1022 = vmul.f32 0.5, %v1021
    %v1023 = vsub.f32 1.5, %v1022
    %v1024 = vmul.f32 %v1019, %v1023
    %vm1025 = vweird.f32 %v940
    %vm1026 = vweird.f32 %v1019
    %vm1027 = vmor %vm1025, %vm1026
    %v1028 = vsel %vm1027, %v1019, %v1024
    %v1029 = vrsqrt.pop %v941
    %v1030 = vmul.f32 %v1029, %v941
    %v1031 = vmul.f32 %v1030, %v1029
    %v1032 = vmul.f32 0.5, %v1031
    %v1033 = vsub.f32 1.5, %v1032
    %v1034 = vmul.f32 %v1029, %v1033
    %vm1035 = vweird.f32 %v941
    %vm1036 = vweird.f32 %v1029
    %vm1037 = vmor %vm1035, %vm1036
    %v1038 = vsel %vm1037, %v1029, %v1034
    %v1039 = vrsqrt.pop %v942
    %v1040 = vmul.f32 %v1039, %v942
    %v1041 = vmul.f32 %v1040, %v1039
    %v1042 = vmul.f32 0.5, %v1041
    %v1043 = vsub.f32 1.5, %v1042
    %v1044 = vmul.f32 %v1039, %v1043
    %vm1045 = vweird.f32 %v942
    %vm1046 = vweird.f32 %v1039
    %vm1047 = vmor %vm1045, %vm1046
    %v1048 = vsel %vm1047, %v1039, %v1044
    %v1049 = vrsqrt.pop %v943
    %v1050 = vmul.f32 %v1049, %v943
    %v1051 = vmul.f32 %v1050, %v1049
    %v1052 = vmul.f32 0.5, %v1051
    %v1053 = vsub.f32 1.5, %v1052
    %v1054 = vmul.f32 %v1049, %v1053
    %vm1055 = vweird.f32 %v943
    %vm1056 = vweird.f32 %v1049
    %vm1057 = vmor %vm1055, %vm1056
    %v1058 = vsel %vm1057, %v1049, %v1054
    %v1059 = vrsqrt.pop %v944
    %v1060 = vmul.f32 %v1059, %v944
    %v1061 = vmul.f32 %v1060, %v1059
    %v1062 = vmul.f32 0.5, %v1061
    %v1063 = vsub.f32 1.5, %v1062
    %v1064 = vmul.f32 %v1059, %v1063
    %vm1065 = vweird.f32 %v944
    %vm1066 = vweird.f32 %v1059
    %vm1067 = vmor %vm1065, %vm1066
    %v1068 = vsel %vm1067, %v1059, %v1064
    %v1069 = vrsqrt.pop %v945
    %v1070 = vmul.f32 %v1069, %v945
    %v1071 = vmul.f32 %v1070, %v1069
    %v1072 = vmul.f32 0.5, %v1071
    %v1073 = vsub.f32 1.5, %v1072
    %v1074 = vmul.f32 %v1069, %v1073
    %vm1075 = vweird.f32 %v945
    %vm1076 = vweird.f32 %v1069
    %vm1077 = vmor %vm1075, %vm1076
    %v1078 = vsel %vm1077, %v1069, %v1074
    %v1079 = vrsqrt.pop %v946
    %v1080 = vmul.f32 %v1079, %v946
    %v1081 = vmul.f32 %v1080, %v1079
    %v1082 = vmul.f32 0.5, %v1081
    %v1083 = vsub.f32 1.5, %v1082
    %v1084 = vmul.f32 %v1079, %v1083
    %vm1085 = vweird.f32 %v946
    %vm1086 = vweird.f32 %v1079
    %vm1087 = vmor %vm1085, %vm1086
    %v1088 = vsel %vm1087, %v1079, %v1084
    %v1089 = vrsqrt.pop %v947
    %v1090 = vmul.f32 %v1089, %v947
    %v1091 = vmul.f32 %v1090, %v1089
    %v1092 = vmul.f32 0.5, %v1091
    %v1093 = vsub.f32 1.5, %v1092
    %v1094 = vmul.f32 %v1089, %v1093
    %vm1095 = vweird.f32 %v947
    %vm1096 = vweird.f32 %v1089
    %vm1097 = vmor %vm1095, %vm1096
    %v1098 = vsel %vm1097, %v1089, %v1094
    %v1099 = vrsqrt.pop %v948
    %v1100 = vmul.f32 %v1099, %v948
    %v1101 = vmul.f32 %v1100, %v1099
    %v1102 = vmul.f32 0.5, %v1101
    %v1103 = vsub.f32 1.5, %v1102
    %v1104 = vmul.f32 %v1099, %v1103
    %vm1105 = vweird.f32 %v948
    %vm1106 = vweird.f32 %v1099
    %vm1107 = vmor %vm1105, %vm1106
    %v1108 = vsel %vm1107, %v1099, %v1104
    %v1109 = vmul.f32 %v853, %v958
    %v1110 = vmul.f32 %v854, %v968
    %v1111 = vmul.f32 %v855, %v978
    %v1112 = vmul.f32 %v856, %v988
    %v1113 = vmul.f32 %v857, %v998
    %v1114 = vmul.f32 %v858, %v1008
    %v1115 = vmul.f32 %v859, %v1018
    %v1116 = vmul.f32 %v860, %v1028
    %v1117 = vmul.f32 %v861, %v1038
    %v1118 = vmul.f32 %v862, %v1048
    %v1119 = vmul.f32 %v863, %v1058
    %v1120 = vmul.f32 %v864, %v1068
    %v1121 = vmul.f32 %v865, %v1078
    %v1122 = vmul.f32 %v866, %v1088
    %v1123 = vmul.f32 %v867, %v1098
    %v1124 = vmul.f32 %v868, %v1108
    %v1125 = vld [vmem:[%s1] sm:$0xff]
    %v1126 = vld [vmem:[%s1 + $0x8] sm:$0xff]
    %v1127 = vld [vmem:[%s1 + $0x10] sm:$0xff]
    %v1128 = vld [vmem:[%s1 + $0x18] sm:$0xff]
    %v1129 = vld [vmem:[%s1 + $0x20] sm:$0xff]
    %v1130 = vld [vmem:[%s1 + $0x28] sm:$0xff]
    %v1131 = vld [vmem:[%s1 + $0x30] sm:$0xff]
    %v1132 = vld [vmem:[%s1 + $0x38] sm:$0xff]
    %v1133 = vld [vmem:[%s1 + $0x40] sm:$0xff]
    %v1134 = vld [vmem:[%s1 + $0x48] sm:$0xff]
    %v1135 = vld [vmem:[%s1 + $0x50] sm:$0xff]
    %v1136 = vld [vmem:[%s1 + $0x58] sm:$0xff]
    %v1137 = vld [vmem:[%s1 + $0x60] sm:$0xff]
    %v1138 = vld [vmem:[%s1 + $0x68] sm:$0xff]
    %v1139 = vld [vmem:[%s1 + $0x70] sm:$0xff]
    %v1140 = vld [vmem:[%s1 + $0x78] sm:$0xff]
    %v1141 = vadd.f32 %v293, %v1125
    %v1142 = vadd.f32 %v294, %v1126
    %v1143 = vadd.f32 %v295, %v1127
    %v1144 = vadd.f32 %v296, %v1128
    %v1145 = vadd.f32 %v297, %v1129
    %v1146 = vadd.f32 %v298, %v1130
    %v1147 = vadd.f32 %v299, %v1131
    %v1148 = vadd.f32 %v300, %v1132
    %v1149 = vadd.f32 %v301, %v1133
    %v1150 = vadd.f32 %v302, %v1134
    %v1151 = vadd.f32 %v303, %v1135
    %v1152 = vadd.f32 %v304, %v1136
    %v1153 = vadd.f32 %v305, %v1137
    %v1154 = vadd.f32 %v306, %v1138
    %v1155 = vadd.f32 %v307, %v1139
    %v1156 = vadd.f32 %v308, %v1140
    %v1157 = vsub.f32 %v1141, %v565
    %v1158 = vsub.f32 %v1142, %v566
    %v1159 = vsub.f32 %v1143, %v567
    %v1160 = vsub.f32 %v1144, %v568
    %v1161 = vsub.f32 %v1145, %v569
    %v1162 = vsub.f32 %v1146, %v570
    %v1163 = vsub.f32 %v1147, %v571
    %v1164 = vsub.f32 %v1148, %v572
    %v1165 = vsub.f32 %v1149, %v573
    %v1166 = vsub.f32 %v1150, %v574
    %v1167 = vsub.f32 %v1151, %v575
    %v1168 = vsub.f32 %v1152, %v576
    %v1169 = vsub.f32 %v1153, %v577
    %v1170 = vsub.f32 %v1154, %v578
    %v1171 = vsub.f32 %v1155, %v579
    %v1172 = vsub.f32 %v1156, %v580
    %v1173 = vmul.f32 %v1157, %v1157
    %v1174 = vmul.f32 %v1158, %v1158
    %v1175 = vmul.f32 %v1159, %v1159
    %v1176 = vmul.f32 %v1160, %v1160
    %v1177 = vmul.f32 %v1161, %v1161
    %v1178 = vmul.f32 %v1162, %v1162
    %v1179 = vmul.f32 %v1163, %v1163
    %v1180 = vmul.f32 %v1164, %v1164
    %v1181 = vmul.f32 %v1165, %v1165
    %v1182 = vmul.f32 %v1166, %v1166
    %v1183 = vmul.f32 %v1167, %v1167
    %v1184 = vmul.f32 %v1168, %v1168
    %v1185 = vmul.f32 %v1169, %v1169
    %v1186 = vmul.f32 %v1170, %v1170
    %v1187 = vmul.f32 %v1171, %v1171
    %v1188 = vmul.f32 %v1172, %v1172
    %v1189 = vsel %vm68, %v1173, 0.0
    %1190 = vadd.xlane.f32.xlu0 %v1189
    %v1191 = vpop.xlane.xlu0 %1190
    %v1192 = vsel %vm68, %v1174, 0.0
    %1193 = vadd.xlane.f32.xlu0 %v1192
    %v1194 = vpop.xlane.xlu0 %1193
    %v1195 = vsel %vm68, %v1175, 0.0
    %1196 = vadd.xlane.f32.xlu0 %v1195
    %v1197 = vpop.xlane.xlu0 %1196
    %v1198 = vsel %vm68, %v1176, 0.0
    %1199 = vadd.xlane.f32.xlu0 %v1198
    %v1200 = vpop.xlane.xlu0 %1199
    %v1201 = vsel %vm68, %v1177, 0.0
    %1202 = vadd.xlane.f32.xlu0 %v1201
    %v1203 = vpop.xlane.xlu0 %1202
    %v1204 = vsel %vm68, %v1178, 0.0
    %1205 = vadd.xlane.f32.xlu0 %v1204
    %v1206 = vpop.xlane.xlu0 %1205
    %v1207 = vsel %vm68, %v1179, 0.0
    %1208 = vadd.xlane.f32.xlu0 %v1207
    %v1209 = vpop.xlane.xlu0 %1208
    %v1210 = vsel %vm68, %v1180, 0.0
    %1211 = vadd.xlane.f32.xlu0 %v1210
    %v1212 = vpop.xlane.xlu0 %1211
    %v1213 = vsel %vm68, %v1181, 0.0
    %1214 = vadd.xlane.f32.xlu0 %v1213
    %v1215 = vpop.xlane.xlu0 %1214
    %v1216 = vsel %vm68, %v1182, 0.0
    %1217 = vadd.xlane.f32.xlu0 %v1216
    %v1218 = vpop.xlane.xlu0 %1217
    %v1219 = vsel %vm68, %v1183, 0.0
    %1220 = vadd.xlane.f32.xlu0 %v1219
    %v1221 = vpop.xlane.xlu0 %1220
    %v1222 = vsel %vm68, %v1184, 0.0
    %1223 = vadd.xlane.f32.xlu0 %v1222
    %v1224 = vpop.xlane.xlu0 %1223
    %v1225 = vsel %vm68, %v1185, 0.0
    %1226 = vadd.xlane.f32.xlu0 %v1225
    %v1227 = vpop.xlane.xlu0 %1226
    %v1228 = vsel %vm68, %v1186, 0.0
    %1229 = vadd.xlane.f32.xlu0 %v1228
    %v1230 = vpop.xlane.xlu0 %1229
    %v1231 = vsel %vm68, %v1187, 0.0
    %1232 = vadd.xlane.f32.xlu0 %v1231
    %v1233 = vpop.xlane.xlu0 %1232
    %v1234 = vsel %vm68, %v1188, 0.0
    %1235 = vadd.xlane.f32.xlu0 %v1234
    %v1236 = vpop.xlane.xlu0 %1235
    %v1237 = vrsqrt.pop %v1191
    %v1238 = vmul.f32 %v1237, %v1191
    %v1239 = vmul.f32 %v1238, %v1237
    %v1240 = vmul.f32 0.5, %v1239
    %v1241 = vsub.f32 1.5, %v1240
    %v1242 = vmul.f32 %v1237, %v1241
    %v1243 = vmul.f32 %v1191, %v1242
    %vm1244 = vcmp.eq.f32.partialorder %v1191, inf
    %v1245 = vsel %vm1244, %v1191, %v1243
    %vm1246 = vcmp.eq.f32.partialorder %v1191, 0.0
    %v1247 = vand.u32 %v1191, 2147483648
    %v1248 = vsel %vm1246, %v1247, %v1245
    %v1249 = vrsqrt.pop %v1194
    %v1250 = vmul.f32 %v1249, %v1194
    %v1251 = vmul.f32 %v1250, %v1249
    %v1252 = vmul.f32 0.5, %v1251
    %v1253 = vsub.f32 1.5, %v1252
    %v1254 = vmul.f32 %v1249, %v1253
    %v1255 = vmul.f32 %v1194, %v1254
    %vm1256 = vcmp.eq.f32.partialorder %v1194, inf
    %v1257 = vsel %vm1256, %v1194, %v1255
    %vm1258 = vcmp.eq.f32.partialorder %v1194, 0.0
    %v1259 = vand.u32 %v1194, 2147483648
    %v1260 = vsel %vm1258, %v1259, %v1257
    %v1261 = vrsqrt.pop %v1197
    %v1262 = vmul.f32 %v1261, %v1197
    %v1263 = vmul.f32 %v1262, %v1261
    %v1264 = vmul.f32 0.5, %v1263
    %v1265 = vsub.f32 1.5, %v1264
    %v1266 = vmul.f32 %v1261, %v1265
    %v1267 = vmul.f32 %v1197, %v1266
    %vm1268 = vcmp.eq.f32.partialorder %v1197, inf
    %v1269 = vsel %vm1268, %v1197, %v1267
    %vm1270 = vcmp.eq.f32.partialorder %v1197, 0.0
    %v1271 = vand.u32 %v1197, 2147483648
    %v1272 = vsel %vm1270, %v1271, %v1269
    %v1273 = vrsqrt.pop %v1200
    %v1274 = vmul.f32 %v1273, %v1200
    %v1275 = vmul.f32 %v1274, %v1273
    %v1276 = vmul.f32 0.5, %v1275
    %v1277 = vsub.f32 1.5, %v1276
    %v1278 = vmul.f32 %v1273, %v1277
    %v1279 = vmul.f32 %v1200, %v1278
    %vm1280 = vcmp.eq.f32.partialorder %v1200, inf
    %v1281 = vsel %vm1280, %v1200, %v1279
    %vm1282 = vcmp.eq.f32.partialorder %v1200, 0.0
    %v1283 = vand.u32 %v1200, 2147483648
    %v1284 = vsel %vm1282, %v1283, %v1281
    %v1285 = vrsqrt.pop %v1203
    %v1286 = vmul.f32 %v1285, %v1203
    %v1287 = vmul.f32 %v1286, %v1285
    %v1288 = vmul.f32 0.5, %v1287
    %v1289 = vsub.f32 1.5, %v1288
    %v1290 = vmul.f32 %v1285, %v1289
    %v1291 = vmul.f32 %v1203, %v1290
    %vm1292 = vcmp.eq.f32.partialorder %v1203, inf
    %v1293 = vsel %vm1292, %v1203, %v1291
    %vm1294 = vcmp.eq.f32.partialorder %v1203, 0.0
    %v1295 = vand.u32 %v1203, 2147483648
    %v1296 = vsel %vm1294, %v1295, %v1293
    %v1297 = vrsqrt.pop %v1206
    %v1298 = vmul.f32 %v1297, %v1206
    %v1299 = vmul.f32 %v1298, %v1297
    %v1300 = vmul.f32 0.5, %v1299
    %v1301 = vsub.f32 1.5, %v1300
    %v1302 = vmul.f32 %v1297, %v1301
    %v1303 = vmul.f32 %v1206, %v1302
    %vm1304 = vcmp.eq.f32.partialorder %v1206, inf
    %v1305 = vsel %vm1304, %v1206, %v1303
    %vm1306 = vcmp.eq.f32.partialorder %v1206, 0.0
    %v1307 = vand.u32 %v1206, 2147483648
    %v1308 = vsel %vm1306, %v1307, %v1305
    %v1309 = vrsqrt.pop %v1209
    %v1310 = vmul.f32 %v1309, %v1209
    %v1311 = vmul.f32 %v1310, %v1309
    %v1312 = vmul.f32 0.5, %v1311
    %v1313 = vsub.f32 1.5, %v1312
    %v1314 = vmul.f32 %v1309, %v1313
    %v1315 = vmul.f32 %v1209, %v1314
    %vm1316 = vcmp.eq.f32.partialorder %v1209, inf
    %v1317 = vsel %vm1316, %v1209, %v1315
    %vm1318 = vcmp.eq.f32.partialorder %v1209, 0.0
    %v1319 = vand.u32 %v1209, 2147483648
    %v1320 = vsel %vm1318, %v1319, %v1317
    %v1321 = vrsqrt.pop %v1212
    %v1322 = vmul.f32 %v1321, %v1212
    %v1323 = vmul.f32 %v1322, %v1321
    %v1324 = vmul.f32 0.5, %v1323
    %v1325 = vsub.f32 1.5, %v1324
    %v1326 = vmul.f32 %v1321, %v1325
    %v1327 = vmul.f32 %v1212, %v1326
    %vm1328 = vcmp.eq.f32.partialorder %v1212, inf
    %v1329 = vsel %vm1328, %v1212, %v1327
    %vm1330 = vcmp.eq.f32.partialorder %v1212, 0.0
    %v1331 = vand.u32 %v1212, 2147483648
    %v1332 = vsel %vm1330, %v1331, %v1329
    %v1333 = vrsqrt.pop %v1215
    %v1334 = vmul.f32 %v1333, %v1215
    %v1335 = vmul.f32 %v1334, %v1333
    %v1336 = vmul.f32 0.5, %v1335
    %v1337 = vsub.f32 1.5, %v1336
    %v1338 = vmul.f32 %v1333, %v1337
    %v1339 = vmul.f32 %v1215, %v1338
    %vm1340 = vcmp.eq.f32.partialorder %v1215, inf
    %v1341 = vsel %vm1340, %v1215, %v1339
    %vm1342 = vcmp.eq.f32.partialorder %v1215, 0.0
    %v1343 = vand.u32 %v1215, 2147483648
    %v1344 = vsel %vm1342, %v1343, %v1341
    %v1345 = vrsqrt.pop %v1218
    %v1346 = vmul.f32 %v1345, %v1218
    %v1347 = vmul.f32 %v1346, %v1345
    %v1348 = vmul.f32 0.5, %v1347
    %v1349 = vsub.f32 1.5, %v1348
    %v1350 = vmul.f32 %v1345, %v1349
    %v1351 = vmul.f32 %v1218, %v1350
    %vm1352 = vcmp.eq.f32.partialorder %v1218, inf
    %v1353 = vsel %vm1352, %v1218, %v1351
    %vm1354 = vcmp.eq.f32.partialorder %v1218, 0.0
    %v1355 = vand.u32 %v1218, 2147483648
    %v1356 = vsel %vm1354, %v1355, %v1353
    %v1357 = vrsqrt.pop %v1221
    %v1358 = vmul.f32 %v1357, %v1221
    %v1359 = vmul.f32 %v1358, %v1357
    %v1360 = vmul.f32 0.5, %v1359
    %v1361 = vsub.f32 1.5, %v1360
    %v1362 = vmul.f32 %v1357, %v1361
    %v1363 = vmul.f32 %v1221, %v1362
    %vm1364 = vcmp.eq.f32.partialorder %v1221, inf
    %v1365 = vsel %vm1364, %v1221, %v1363
    %vm1366 = vcmp.eq.f32.partialorder %v1221, 0.0
    %v1367 = vand.u32 %v1221, 2147483648
    %v1368 = vsel %vm1366, %v1367, %v1365
    %v1369 = vrsqrt.pop %v1224
    %v1370 = vmul.f32 %v1369, %v1224
    %v1371 = vmul.f32 %v1370, %v1369
    %v1372 = vmul.f32 0.5, %v1371
    %v1373 = vsub.f32 1.5, %v1372
    %v1374 = vmul.f32 %v1369, %v1373
    %v1375 = vmul.f32 %v1224, %v1374
    %vm1376 = vcmp.eq.f32.partialorder %v1224, inf
    %v1377 = vsel %vm1376, %v1224, %v1375
    %vm1378 = vcmp.eq.f32.partialorder %v1224, 0.0
    %v1379 = vand.u32 %v1224, 2147483648
    %v1380 = vsel %vm1378, %v1379, %v1377
    %v1381 = vrsqrt.pop %v1227
    %v1382 = vmul.f32 %v1381, %v1227
    %v1383 = vmul.f32 %v1382, %v1381
    %v1384 = vmul.f32 0.5, %v1383
    %v1385 = vsub.f32 1.5, %v1384
    %v1386 = vmul.f32 %v1381, %v1385
    %v1387 = vmul.f32 %v1227, %v1386
    %vm1388 = vcmp.eq.f32.partialorder %v1227, inf
    %v1389 = vsel %vm1388, %v1227, %v1387
    %vm1390 = vcmp.eq.f32.partialorder %v1227, 0.0
    %v1391 = vand.u32 %v1227, 2147483648
    %v1392 = vsel %vm1390, %v1391, %v1389
    %v1393 = vrsqrt.pop %v1230
    %v1394 = vmul.f32 %v1393, %v1230
    %v1395 = vmul.f32 %v1394, %v1393
    %v1396 = vmul.f32 0.5, %v1395
    %v1397 = vsub.f32 1.5, %v1396
    %v1398 = vmul.f32 %v1393, %v1397
    %v1399 = vmul.f32 %v1230, %v1398
    %vm1400 = vcmp.eq.f32.partialorder %v1230, inf
    %v1401 = vsel %vm1400, %v1230, %v1399
    %vm1402 = vcmp.eq.f32.partialorder %v1230, 0.0
    %v1403 = vand.u32 %v1230, 2147483648
    %v1404 = vsel %vm1402, %v1403, %v1401
    %v1405 = vrsqrt.pop %v1233
    %v1406 = vmul.f32 %v1405, %v1233
    %v1407 = vmul.f32 %v1406, %v1405
    %v1408 = vmul.f32 0.5, %v1407
    %v1409 = vsub.f32 1.5, %v1408
    %v1410 = vmul.f32 %v1405, %v1409
    %v1411 = vmul.f32 %v1233, %v1410
    %vm1412 = vcmp.eq.f32.partialorder %v1233, inf
    %v1413 = vsel %vm1412, %v1233, %v1411
    %vm1414 = vcmp.eq.f32.partialorder %v1233, 0.0
    %v1415 = vand.u32 %v1233, 2147483648
    %v1416 = vsel %vm1414, %v1415, %v1413
    %v1417 = vrsqrt.pop %v1236
    %v1418 = vmul.f32 %v1417, %v1236
    %v1419 = vmul.f32 %v1418, %v1417
    %v1420 = vmul.f32 0.5, %v1419
    %v1421 = vsub.f32 1.5, %v1420
    %v1422 = vmul.f32 %v1417, %v1421
    %v1423 = vmul.f32 %v1236, %v1422
    %vm1424 = vcmp.eq.f32.partialorder %v1236, inf
    %v1425 = vsel %vm1424, %v1236, %v1423
    %vm1426 = vcmp.eq.f32.partialorder %v1236, 0.0
    %v1427 = vand.u32 %v1236, 2147483648
    %v1428 = vsel %vm1426, %v1427, %v1425
    %v1429 = vld [vmem:[%s4] sm:$0xff]
    %v1430 = vld [vmem:[%s4 + $0x8] sm:$0xff]
    %v1431 = vld [vmem:[%s4 + $0x10] sm:$0xff]
    %v1432 = vld [vmem:[%s4 + $0x18] sm:$0xff]
    %v1433 = vld [vmem:[%s4 + $0x20] sm:$0xff]
    %v1434 = vld [vmem:[%s4 + $0x28] sm:$0xff]
    %v1435 = vld [vmem:[%s4 + $0x30] sm:$0xff]
    %v1436 = vld [vmem:[%s4 + $0x38] sm:$0xff]
    %v1437 = vld [vmem:[%s4 + $0x40] sm:$0xff]
    %v1438 = vld [vmem:[%s4 + $0x48] sm:$0xff]
    %v1439 = vld [vmem:[%s4 + $0x50] sm:$0xff]
    %v1440 = vld [vmem:[%s4 + $0x58] sm:$0xff]
    %v1441 = vld [vmem:[%s4 + $0x60] sm:$0xff]
    %v1442 = vld [vmem:[%s4 + $0x68] sm:$0xff]
    %v1443 = vld [vmem:[%s4 + $0x70] sm:$0xff]
    %v1444 = vld [vmem:[%s4 + $0x78] sm:$0xff]
    %v1445 = vadd.f32 %v837, %v1429
    %v1446 = vadd.f32 %v838, %v1430
    %v1447 = vadd.f32 %v839, %v1431
    %v1448 = vadd.f32 %v840, %v1432
    %v1449 = vadd.f32 %v841, %v1433
    %v1450 = vadd.f32 %v842, %v1434
    %v1451 = vadd.f32 %v843, %v1435
    %v1452 = vadd.f32 %v844, %v1436
    %v1453 = vadd.f32 %v845, %v1437
    %v1454 = vadd.f32 %v846, %v1438
    %v1455 = vadd.f32 %v847, %v1439
    %v1456 = vadd.f32 %v848, %v1440
    %v1457 = vadd.f32 %v849, %v1441
    %v1458 = vadd.f32 %v850, %v1442
    %v1459 = vadd.f32 %v851, %v1443
    %v1460 = vadd.f32 %v852, %v1444
    %v1461 = vsub.f32 %v1445, %v1109
    %v1462 = vsub.f32 %v1446, %v1110
    %v1463 = vsub.f32 %v1447, %v1111
    %v1464 = vsub.f32 %v1448, %v1112
    %v1465 = vsub.f32 %v1449, %v1113
    %v1466 = vsub.f32 %v1450, %v1114
    %v1467 = vsub.f32 %v1451, %v1115
    %v1468 = vsub.f32 %v1452, %v1116
    %v1469 = vsub.f32 %v1453, %v1117
    %v1470 = vsub.f32 %v1454, %v1118
    %v1471 = vsub.f32 %v1455, %v1119
    %v1472 = vsub.f32 %v1456, %v1120
    %v1473 = vsub.f32 %v1457, %v1121
    %v1474 = vsub.f32 %v1458, %v1122
    %v1475 = vsub.f32 %v1459, %v1123
    %v1476 = vsub.f32 %v1460, %v1124
    %v1477 = vmul.f32 %v1461, %v1461
    %v1478 = vmul.f32 %v1462, %v1462
    %v1479 = vmul.f32 %v1463, %v1463
    %v1480 = vmul.f32 %v1464, %v1464
    %v1481 = vmul.f32 %v1465, %v1465
    %v1482 = vmul.f32 %v1466, %v1466
    %v1483 = vmul.f32 %v1467, %v1467
    %v1484 = vmul.f32 %v1468, %v1468
    %v1485 = vmul.f32 %v1469, %v1469
    %v1486 = vmul.f32 %v1470, %v1470
    %v1487 = vmul.f32 %v1471, %v1471
    %v1488 = vmul.f32 %v1472, %v1472
    %v1489 = vmul.f32 %v1473, %v1473
    %v1490 = vmul.f32 %v1474, %v1474
    %v1491 = vmul.f32 %v1475, %v1475
    %v1492 = vmul.f32 %v1476, %v1476
    %v1493 = vsel %vm68, %v1477, 0.0
    %1494 = vadd.xlane.f32.xlu0 %v1493
    %v1495 = vpop.xlane.xlu0 %1494
    %v1496 = vsel %vm68, %v1478, 0.0
    %1497 = vadd.xlane.f32.xlu0 %v1496
    %v1498 = vpop.xlane.xlu0 %1497
    %v1499 = vsel %vm68, %v1479, 0.0
    %1500 = vadd.xlane.f32.xlu0 %v1499
    %v1501 = vpop.xlane.xlu0 %1500
    %v1502 = vsel %vm68, %v1480, 0.0
    %1503 = vadd.xlane.f32.xlu0 %v1502
    %v1504 = vpop.xlane.xlu0 %1503
    %v1505 = vsel %vm68, %v1481, 0.0
    %1506 = vadd.xlane.f32.xlu0 %v1505
    %v1507 = vpop.xlane.xlu0 %1506
    %v1508 = vsel %vm68, %v1482, 0.0
    %1509 = vadd.xlane.f32.xlu0 %v1508
    %v1510 = vpop.xlane.xlu0 %1509
    %v1511 = vsel %vm68, %v1483, 0.0
    %1512 = vadd.xlane.f32.xlu0 %v1511
    %v1513 = vpop.xlane.xlu0 %1512
    %v1514 = vsel %vm68, %v1484, 0.0
    %1515 = vadd.xlane.f32.xlu0 %v1514
    %v1516 = vpop.xlane.xlu0 %1515
    %v1517 = vsel %vm68, %v1485, 0.0
    %1518 = vadd.xlane.f32.xlu0 %v1517
    %v1519 = vpop.xlane.xlu0 %1518
    %v1520 = vsel %vm68, %v1486, 0.0
    %1521 = vadd.xlane.f32.xlu0 %v1520
    %v1522 = vpop.xlane.xlu0 %1521
    %v1523 = vsel %vm68, %v1487, 0.0
    %1524 = vadd.xlane.f32.xlu0 %v1523
    %v1525 = vpop.xlane.xlu0 %1524
    %v1526 = vsel %vm68, %v1488, 0.0
    %1527 = vadd.xlane.f32.xlu0 %v1526
    %v1528 = vpop.xlane.xlu0 %1527
    %v1529 = vsel %vm68, %v1489, 0.0
    %1530 = vadd.xlane.f32.xlu0 %v1529
    %v1531 = vpop.xlane.xlu0 %1530
    %v1532 = vsel %vm68, %v1490, 0.0
    %1533 = vadd.xlane.f32.xlu0 %v1532
    %v1534 = vpop.xlane.xlu0 %1533
    %v1535 = vsel %vm68, %v1491, 0.0
    %1536 = vadd.xlane.f32.xlu0 %v1535
    %v1537 = vpop.xlane.xlu0 %1536
    %v1538 = vsel %vm68, %v1492, 0.0
    %1539 = vadd.xlane.f32.xlu0 %v1538
    %v1540 = vpop.xlane.xlu0 %1539
    %v1541 = vrsqrt.pop %v1495
    %v1542 = vmul.f32 %v1541, %v1495
    %v1543 = vmul.f32 %v1542, %v1541
    %v1544 = vmul.f32 0.5, %v1543
    %v1545 = vsub.f32 1.5, %v1544
    %v1546 = vmul.f32 %v1541, %v1545
    %v1547 = vmul.f32 %v1495, %v1546
    %vm1548 = vcmp.eq.f32.partialorder %v1495, inf
    %v1549 = vsel %vm1548, %v1495, %v1547
    %vm1550 = vcmp.eq.f32.partialorder %v1495, 0.0
    %v1551 = vand.u32 %v1495, 2147483648
    %v1552 = vsel %vm1550, %v1551, %v1549
    %v1553 = vrsqrt.pop %v1498
    %v1554 = vmul.f32 %v1553, %v1498
    %v1555 = vmul.f32 %v1554, %v1553
    %v1556 = vmul.f32 0.5, %v1555
    %v1557 = vsub.f32 1.5, %v1556
    %v1558 = vmul.f32 %v1553, %v1557
    %v1559 = vmul.f32 %v1498, %v1558
    %vm1560 = vcmp.eq.f32.partialorder %v1498, inf
    %v1561 = vsel %vm1560, %v1498, %v1559
    %vm1562 = vcmp.eq.f32.partialorder %v1498, 0.0
    %v1563 = vand.u32 %v1498, 2147483648
    %v1564 = vsel %vm1562, %v1563, %v1561
    %v1565 = vrsqrt.pop %v1501
    %v1566 = vmul.f32 %v1565, %v1501
    %v1567 = vmul.f32 %v1566, %v1565
    %v1568 = vmul.f32 0.5, %v1567
    %v1569 = vsub.f32 1.5, %v1568
    %v1570 = vmul.f32 %v1565, %v1569
    %v1571 = vmul.f32 %v1501, %v1570
    %vm1572 = vcmp.eq.f32.partialorder %v1501, inf
    %v1573 = vsel %vm1572, %v1501, %v1571
    %vm1574 = vcmp.eq.f32.partialorder %v1501, 0.0
    %v1575 = vand.u32 %v1501, 2147483648
    %v1576 = vsel %vm1574, %v1575, %v1573
    %v1577 = vrsqrt.pop %v1504
    %v1578 = vmul.f32 %v1577, %v1504
    %v1579 = vmul.f32 %v1578, %v1577
    %v1580 = vmul.f32 0.5, %v1579
    %v1581 = vsub.f32 1.5, %v1580
    %v1582 = vmul.f32 %v1577, %v1581
    %v1583 = vmul.f32 %v1504, %v1582
    %vm1584 = vcmp.eq.f32.partialorder %v1504, inf
    %v1585 = vsel %vm1584, %v1504, %v1583
    %vm1586 = vcmp.eq.f32.partialorder %v1504, 0.0
    %v1587 = vand.u32 %v1504, 2147483648
    %v1588 = vsel %vm1586, %v1587, %v1585
    %v1589 = vrsqrt.pop %v1507
    %v1590 = vmul.f32 %v1589, %v1507
    %v1591 = vmul.f32 %v1590, %v1589
    %v1592 = vmul.f32 0.5, %v1591
    %v1593 = vsub.f32 1.5, %v1592
    %v1594 = vmul.f32 %v1589, %v1593
    %v1595 = vmul.f32 %v1507, %v1594
    %vm1596 = vcmp.eq.f32.partialorder %v1507, inf
    %v1597 = vsel %vm1596, %v1507, %v1595
    %vm1598 = vcmp.eq.f32.partialorder %v1507, 0.0
    %v1599 = vand.u32 %v1507, 2147483648
    %v1600 = vsel %vm1598, %v1599, %v1597
    %v1601 = vrsqrt.pop %v1510
    %v1602 = vmul.f32 %v1601, %v1510
    %v1603 = vmul.f32 %v1602, %v1601
    %v1604 = vmul.f32 0.5, %v1603
    %v1605 = vsub.f32 1.5, %v1604
    %v1606 = vmul.f32 %v1601, %v1605
    %v1607 = vmul.f32 %v1510, %v1606
    %vm1608 = vcmp.eq.f32.partialorder %v1510, inf
    %v1609 = vsel %vm1608, %v1510, %v1607
    %vm1610 = vcmp.eq.f32.partialorder %v1510, 0.0
    %v1611 = vand.u32 %v1510, 2147483648
    %v1612 = vsel %vm1610, %v1611, %v1609
    %v1613 = vrsqrt.pop %v1513
    %v1614 = vmul.f32 %v1613, %v1513
    %v1615 = vmul.f32 %v1614, %v1613
    %v1616 = vmul.f32 0.5, %v1615
    %v1617 = vsub.f32 1.5, %v1616
    %v1618 = vmul.f32 %v1613, %v1617
    %v1619 = vmul.f32 %v1513, %v1618
    %vm1620 = vcmp.eq.f32.partialorder %v1513, inf
    %v1621 = vsel %vm1620, %v1513, %v1619
    %vm1622 = vcmp.eq.f32.partialorder %v1513, 0.0
    %v1623 = vand.u32 %v1513, 2147483648
    %v1624 = vsel %vm1622, %v1623, %v1621
    %v1625 = vrsqrt.pop %v1516
    %v1626 = vmul.f32 %v1625, %v1516
    %v1627 = vmul.f32 %v1626, %v1625
    %v1628 = vmul.f32 0.5, %v1627
    %v1629 = vsub.f32 1.5, %v1628
    %v1630 = vmul.f32 %v1625, %v1629
    %v1631 = vmul.f32 %v1516, %v1630
    %vm1632 = vcmp.eq.f32.partialorder %v1516, inf
    %v1633 = vsel %vm1632, %v1516, %v1631
    %vm1634 = vcmp.eq.f32.partialorder %v1516, 0.0
    %v1635 = vand.u32 %v1516, 2147483648
    %v1636 = vsel %vm1634, %v1635, %v1633
    %v1637 = vrsqrt.pop %v1519
    %v1638 = vmul.f32 %v1637, %v1519
    %v1639 = vmul.f32 %v1638, %v1637
    %v1640 = vmul.f32 0.5, %v1639
    %v1641 = vsub.f32 1.5, %v1640
    %v1642 = vmul.f32 %v1637, %v1641
    %v1643 = vmul.f32 %v1519, %v1642
    %vm1644 = vcmp.eq.f32.partialorder %v1519, inf
    %v1645 = vsel %vm1644, %v1519, %v1643
    %vm1646 = vcmp.eq.f32.partialorder %v1519, 0.0
    %v1647 = vand.u32 %v1519, 2147483648
    %v1648 = vsel %vm1646, %v1647, %v1645
    %v1649 = vrsqrt.pop %v1522
    %v1650 = vmul.f32 %v1649, %v1522
    %v1651 = vmul.f32 %v1650, %v1649
    %v1652 = vmul.f32 0.5, %v1651
    %v1653 = vsub.f32 1.5, %v1652
    %v1654 = vmul.f32 %v1649, %v1653
    %v1655 = vmul.f32 %v1522, %v1654
    %vm1656 = vcmp.eq.f32.partialorder %v1522, inf
    %v1657 = vsel %vm1656, %v1522, %v1655
    %vm1658 = vcmp.eq.f32.partialorder %v1522, 0.0
    %v1659 = vand.u32 %v1522, 2147483648
    %v1660 = vsel %vm1658, %v1659, %v1657
    %v1661 = vrsqrt.pop %v1525
    %v1662 = vmul.f32 %v1661, %v1525
    %v1663 = vmul.f32 %v1662, %v1661
    %v1664 = vmul.f32 0.5, %v1663
    %v1665 = vsub.f32 1.5, %v1664
    %v1666 = vmul.f32 %v1661, %v1665
    %v1667 = vmul.f32 %v1525, %v1666
    %vm1668 = vcmp.eq.f32.partialorder %v1525, inf
    %v1669 = vsel %vm1668, %v1525, %v1667
    %vm1670 = vcmp.eq.f32.partialorder %v1525, 0.0
    %v1671 = vand.u32 %v1525, 2147483648
    %v1672 = vsel %vm1670, %v1671, %v1669
    %v1673 = vrsqrt.pop %v1528
    %v1674 = vmul.f32 %v1673, %v1528
    %v1675 = vmul.f32 %v1674, %v1673
    %v1676 = vmul.f32 0.5, %v1675
    %v1677 = vsub.f32 1.5, %v1676
    %v1678 = vmul.f32 %v1673, %v1677
    %v1679 = vmul.f32 %v1528, %v1678
    %vm1680 = vcmp.eq.f32.partialorder %v1528, inf
    %v1681 = vsel %vm1680, %v1528, %v1679
    %vm1682 = vcmp.eq.f32.partialorder %v1528, 0.0
    %v1683 = vand.u32 %v1528, 2147483648
    %v1684 = vsel %vm1682, %v1683, %v1681
    %v1685 = vrsqrt.pop %v1531
    %v1686 = vmul.f32 %v1685, %v1531
    %v1687 = vmul.f32 %v1686, %v1685
    %v1688 = vmul.f32 0.5, %v1687
    %v1689 = vsub.f32 1.5, %v1688
    %v1690 = vmul.f32 %v1685, %v1689
    %v1691 = vmul.f32 %v1531, %v1690
    %vm1692 = vcmp.eq.f32.partialorder %v1531, inf
    %v1693 = vsel %vm1692, %v1531, %v1691
    %vm1694 = vcmp.eq.f32.partialorder %v1531, 0.0
    %v1695 = vand.u32 %v1531, 2147483648
    %v1696 = vsel %vm1694, %v1695, %v1693
    %v1697 = vrsqrt.pop %v1534
    %v1698 = vmul.f32 %v1697, %v1534
    %v1699 = vmul.f32 %v1698, %v1697
    %v1700 = vmul.f32 0.5, %v1699
    %v1701 = vsub.f32 1.5, %v1700
    %v1702 = vmul.f32 %v1697, %v1701
    %v1703 = vmul.f32 %v1534, %v1702
    %vm1704 = vcmp.eq.f32.partialorder %v1534, inf
    %v1705 = vsel %vm1704, %v1534, %v1703
    %vm1706 = vcmp.eq.f32.partialorder %v1534, 0.0
    %v1707 = vand.u32 %v1534, 2147483648
    %v1708 = vsel %vm1706, %v1707, %v1705
    %v1709 = vrsqrt.pop %v1537
    %v1710 = vmul.f32 %v1709, %v1537
    %v1711 = vmul.f32 %v1710, %v1709
    %v1712 = vmul.f32 0.5, %v1711
    %v1713 = vsub.f32 1.5, %v1712
    %v1714 = vmul.f32 %v1709, %v1713
    %v1715 = vmul.f32 %v1537, %v1714
    %vm1716 = vcmp.eq.f32.partialorder %v1537, inf
    %v1717 = vsel %vm1716, %v1537, %v1715
    %vm1718 = vcmp.eq.f32.partialorder %v1537, 0.0
    %v1719 = vand.u32 %v1537, 2147483648
    %v1720 = vsel %vm1718, %v1719, %v1717
    %v1721 = vrsqrt.pop %v1540
    %v1722 = vmul.f32 %v1721, %v1540
    %v1723 = vmul.f32 %v1722, %v1721
    %v1724 = vmul.f32 0.5, %v1723
    %v1725 = vsub.f32 1.5, %v1724
    %v1726 = vmul.f32 %v1721, %v1725
    %v1727 = vmul.f32 %v1540, %v1726
    %vm1728 = vcmp.eq.f32.partialorder %v1540, inf
    %v1729 = vsel %vm1728, %v1540, %v1727
    %vm1730 = vcmp.eq.f32.partialorder %v1540, 0.0
    %v1731 = vand.u32 %v1540, 2147483648
    %v1732 = vsel %vm1730, %v1731, %v1729
    %v1733 = vld [vmem:[%s6] sm:$0xff]
    %v1734 = vld [vmem:[%s6 + $0x8] sm:$0xff]
    %v1735 = vld [vmem:[%s6 + $0x10] sm:$0xff]
    %v1736 = vld [vmem:[%s6 + $0x18] sm:$0xff]
    %v1737 = vld [vmem:[%s6 + $0x20] sm:$0xff]
    %v1738 = vld [vmem:[%s6 + $0x28] sm:$0xff]
    %v1739 = vld [vmem:[%s6 + $0x30] sm:$0xff]
    %v1740 = vld [vmem:[%s6 + $0x38] sm:$0xff]
    %v1741 = vld [vmem:[%s6 + $0x40] sm:$0xff]
    %v1742 = vld [vmem:[%s6 + $0x48] sm:$0xff]
    %v1743 = vld [vmem:[%s6 + $0x50] sm:$0xff]
    %v1744 = vld [vmem:[%s6 + $0x58] sm:$0xff]
    %v1745 = vld [vmem:[%s6 + $0x60] sm:$0xff]
    %v1746 = vld [vmem:[%s6 + $0x68] sm:$0xff]
    %v1747 = vld [vmem:[%s6 + $0x70] sm:$0xff]
    %v1748 = vld [vmem:[%s6 + $0x78] sm:$0xff]
    %v1749 = vmul.f32 %v1733, %v1733
    %v1750 = vmul.f32 %v1734, %v1734
    %v1751 = vmul.f32 %v1735, %v1735
    %v1752 = vmul.f32 %v1736, %v1736
    %v1753 = vmul.f32 %v1737, %v1737
    %v1754 = vmul.f32 %v1738, %v1738
    %v1755 = vmul.f32 %v1739, %v1739
    %v1756 = vmul.f32 %v1740, %v1740
    %v1757 = vmul.f32 %v1741, %v1741
    %v1758 = vmul.f32 %v1742, %v1742
    %v1759 = vmul.f32 %v1743, %v1743
    %v1760 = vmul.f32 %v1744, %v1744
    %v1761 = vmul.f32 %v1745, %v1745
    %v1762 = vmul.f32 %v1746, %v1746
    %v1763 = vmul.f32 %v1747, %v1747
    %v1764 = vmul.f32 %v1748, %v1748
    %v1765 = vsel %vm68, %v1749, 0.0
    %1766 = vadd.xlane.f32.xlu0 %v1765
    %v1767 = vpop.xlane.xlu0 %1766
    %v1768 = vsel %vm68, %v1750, 0.0
    %1769 = vadd.xlane.f32.xlu0 %v1768
    %v1770 = vpop.xlane.xlu0 %1769
    %v1771 = vsel %vm68, %v1751, 0.0
    %1772 = vadd.xlane.f32.xlu0 %v1771
    %v1773 = vpop.xlane.xlu0 %1772
    %v1774 = vsel %vm68, %v1752, 0.0
    %1775 = vadd.xlane.f32.xlu0 %v1774
    %v1776 = vpop.xlane.xlu0 %1775
    %v1777 = vsel %vm68, %v1753, 0.0
    %1778 = vadd.xlane.f32.xlu0 %v1777
    %v1779 = vpop.xlane.xlu0 %1778
    %v1780 = vsel %vm68, %v1754, 0.0
    %1781 = vadd.xlane.f32.xlu0 %v1780
    %v1782 = vpop.xlane.xlu0 %1781
    %v1783 = vsel %vm68, %v1755, 0.0
    %1784 = vadd.xlane.f32.xlu0 %v1783
    %v1785 = vpop.xlane.xlu0 %1784
    %v1786 = vsel %vm68, %v1756, 0.0
    %1787 = vadd.xlane.f32.xlu0 %v1786
    %v1788 = vpop.xlane.xlu0 %1787
    %v1789 = vsel %vm68, %v1757, 0.0
    %1790 = vadd.xlane.f32.xlu0 %v1789
    %v1791 = vpop.xlane.xlu0 %1790
    %v1792 = vsel %vm68, %v1758, 0.0
    %1793 = vadd.xlane.f32.xlu0 %v1792
    %v1794 = vpop.xlane.xlu0 %1793
    %v1795 = vsel %vm68, %v1759, 0.0
    %1796 = vadd.xlane.f32.xlu0 %v1795
    %v1797 = vpop.xlane.xlu0 %1796
    %v1798 = vsel %vm68, %v1760, 0.0
    %1799 = vadd.xlane.f32.xlu0 %v1798
    %v1800 = vpop.xlane.xlu0 %1799
    %v1801 = vsel %vm68, %v1761, 0.0
    %1802 = vadd.xlane.f32.xlu0 %v1801
    %v1803 = vpop.xlane.xlu0 %1802
    %v1804 = vsel %vm68, %v1762, 0.0
    %1805 = vadd.xlane.f32.xlu0 %v1804
    %v1806 = vpop.xlane.xlu0 %1805
    %v1807 = vsel %vm68, %v1763, 0.0
    %1808 = vadd.xlane.f32.xlu0 %v1807
    %v1809 = vpop.xlane.xlu0 %1808
    %v1810 = vsel %vm68, %v1764, 0.0
    %1811 = vadd.xlane.f32.xlu0 %v1810
    %v1812 = vpop.xlane.xlu0 %1811
    %v1813 = vmax.f32 %v1767, 1e-24
    %v1814 = vmax.f32 %v1770, 1e-24
    %v1815 = vmax.f32 %v1773, 1e-24
    %v1816 = vmax.f32 %v1776, 1e-24
    %v1817 = vmax.f32 %v1779, 1e-24
    %v1818 = vmax.f32 %v1782, 1e-24
    %v1819 = vmax.f32 %v1785, 1e-24
    %v1820 = vmax.f32 %v1788, 1e-24
    %v1821 = vmax.f32 %v1791, 1e-24
    %v1822 = vmax.f32 %v1794, 1e-24
    %v1823 = vmax.f32 %v1797, 1e-24
    %v1824 = vmax.f32 %v1800, 1e-24
    %v1825 = vmax.f32 %v1803, 1e-24
    %v1826 = vmax.f32 %v1806, 1e-24
    %v1827 = vmax.f32 %v1809, 1e-24
    %v1828 = vmax.f32 %v1812, 1e-24
    %v1829 = vrsqrt.pop %v1813
    %v1830 = vmul.f32 %v1829, %v1813
    %v1831 = vmul.f32 %v1830, %v1829
    %v1832 = vmul.f32 0.5, %v1831
    %v1833 = vsub.f32 1.5, %v1832
    %v1834 = vmul.f32 %v1829, %v1833
    %vm1835 = vweird.f32 %v1813
    %vm1836 = vweird.f32 %v1829
    %vm1837 = vmor %vm1835, %vm1836
    %v1838 = vsel %vm1837, %v1829, %v1834
    %v1839 = vrsqrt.pop %v1814
    %v1840 = vmul.f32 %v1839, %v1814
    %v1841 = vmul.f32 %v1840, %v1839
    %v1842 = vmul.f32 0.5, %v1841
    %v1843 = vsub.f32 1.5, %v1842
    %v1844 = vmul.f32 %v1839, %v1843
    %vm1845 = vweird.f32 %v1814
    %vm1846 = vweird.f32 %v1839
    %vm1847 = vmor %vm1845, %vm1846
    %v1848 = vsel %vm1847, %v1839, %v1844
    %v1849 = vrsqrt.pop %v1815
    %v1850 = vmul.f32 %v1849, %v1815
    %v1851 = vmul.f32 %v1850, %v1849
    %v1852 = vmul.f32 0.5, %v1851
    %v1853 = vsub.f32 1.5, %v1852
    %v1854 = vmul.f32 %v1849, %v1853
    %vm1855 = vweird.f32 %v1815
    %vm1856 = vweird.f32 %v1849
    %vm1857 = vmor %vm1855, %vm1856
    %v1858 = vsel %vm1857, %v1849, %v1854
    %v1859 = vrsqrt.pop %v1816
    %v1860 = vmul.f32 %v1859, %v1816
    %v1861 = vmul.f32 %v1860, %v1859
    %v1862 = vmul.f32 0.5, %v1861
    %v1863 = vsub.f32 1.5, %v1862
    %v1864 = vmul.f32 %v1859, %v1863
    %vm1865 = vweird.f32 %v1816
    %vm1866 = vweird.f32 %v1859
    %vm1867 = vmor %vm1865, %vm1866
    %v1868 = vsel %vm1867, %v1859, %v1864
    %v1869 = vrsqrt.pop %v1817
    %v1870 = vmul.f32 %v1869, %v1817
    %v1871 = vmul.f32 %v1870, %v1869
    %v1872 = vmul.f32 0.5, %v1871
    %v1873 = vsub.f32 1.5, %v1872
    %v1874 = vmul.f32 %v1869, %v1873
    %vm1875 = vweird.f32 %v1817
    %vm1876 = vweird.f32 %v1869
    %vm1877 = vmor %vm1875, %vm1876
    %v1878 = vsel %vm1877, %v1869, %v1874
    %v1879 = vrsqrt.pop %v1818
    %v1880 = vmul.f32 %v1879, %v1818
    %v1881 = vmul.f32 %v1880, %v1879
    %v1882 = vmul.f32 0.5, %v1881
    %v1883 = vsub.f32 1.5, %v1882
    %v1884 = vmul.f32 %v1879, %v1883
    %vm1885 = vweird.f32 %v1818
    %vm1886 = vweird.f32 %v1879
    %vm1887 = vmor %vm1885, %vm1886
    %v1888 = vsel %vm1887, %v1879, %v1884
    %v1889 = vrsqrt.pop %v1819
    %v1890 = vmul.f32 %v1889, %v1819
    %v1891 = vmul.f32 %v1890, %v1889
    %v1892 = vmul.f32 0.5, %v1891
    %v1893 = vsub.f32 1.5, %v1892
    %v1894 = vmul.f32 %v1889, %v1893
    %vm1895 = vweird.f32 %v1819
    %vm1896 = vweird.f32 %v1889
    %vm1897 = vmor %vm1895, %vm1896
    %v1898 = vsel %vm1897, %v1889, %v1894
    %v1899 = vrsqrt.pop %v1820
    %v1900 = vmul.f32 %v1899, %v1820
    %v1901 = vmul.f32 %v1900, %v1899
    %v1902 = vmul.f32 0.5, %v1901
    %v1903 = vsub.f32 1.5, %v1902
    %v1904 = vmul.f32 %v1899, %v1903
    %vm1905 = vweird.f32 %v1820
    %vm1906 = vweird.f32 %v1899
    %vm1907 = vmor %vm1905, %vm1906
    %v1908 = vsel %vm1907, %v1899, %v1904
    %v1909 = vrsqrt.pop %v1821
    %v1910 = vmul.f32 %v1909, %v1821
    %v1911 = vmul.f32 %v1910, %v1909
    %v1912 = vmul.f32 0.5, %v1911
    %v1913 = vsub.f32 1.5, %v1912
    %v1914 = vmul.f32 %v1909, %v1913
    %vm1915 = vweird.f32 %v1821
    %vm1916 = vweird.f32 %v1909
    %vm1917 = vmor %vm1915, %vm1916
    %v1918 = vsel %vm1917, %v1909, %v1914
    %v1919 = vrsqrt.pop %v1822
    %v1920 = vmul.f32 %v1919, %v1822
    %v1921 = vmul.f32 %v1920, %v1919
    %v1922 = vmul.f32 0.5, %v1921
    %v1923 = vsub.f32 1.5, %v1922
    %v1924 = vmul.f32 %v1919, %v1923
    %vm1925 = vweird.f32 %v1822
    %vm1926 = vweird.f32 %v1919
    %vm1927 = vmor %vm1925, %vm1926
    %v1928 = vsel %vm1927, %v1919, %v1924
    %v1929 = vrsqrt.pop %v1823
    %v1930 = vmul.f32 %v1929, %v1823
    %v1931 = vmul.f32 %v1930, %v1929
    %v1932 = vmul.f32 0.5, %v1931
    %v1933 = vsub.f32 1.5, %v1932
    %v1934 = vmul.f32 %v1929, %v1933
    %vm1935 = vweird.f32 %v1823
    %vm1936 = vweird.f32 %v1929
    %vm1937 = vmor %vm1935, %vm1936
    %v1938 = vsel %vm1937, %v1929, %v1934
    %v1939 = vrsqrt.pop %v1824
    %v1940 = vmul.f32 %v1939, %v1824
    %v1941 = vmul.f32 %v1940, %v1939
    %v1942 = vmul.f32 0.5, %v1941
    %v1943 = vsub.f32 1.5, %v1942
    %v1944 = vmul.f32 %v1939, %v1943
    %vm1945 = vweird.f32 %v1824
    %vm1946 = vweird.f32 %v1939
    %vm1947 = vmor %vm1945, %vm1946
    %v1948 = vsel %vm1947, %v1939, %v1944
    %v1949 = vrsqrt.pop %v1825
    %v1950 = vmul.f32 %v1949, %v1825
    %v1951 = vmul.f32 %v1950, %v1949
    %v1952 = vmul.f32 0.5, %v1951
    %v1953 = vsub.f32 1.5, %v1952
    %v1954 = vmul.f32 %v1949, %v1953
    %vm1955 = vweird.f32 %v1825
    %vm1956 = vweird.f32 %v1949
    %vm1957 = vmor %vm1955, %vm1956
    %v1958 = vsel %vm1957, %v1949, %v1954
    %v1959 = vrsqrt.pop %v1826
    %v1960 = vmul.f32 %v1959, %v1826
    %v1961 = vmul.f32 %v1960, %v1959
    %v1962 = vmul.f32 0.5, %v1961
    %v1963 = vsub.f32 1.5, %v1962
    %v1964 = vmul.f32 %v1959, %v1963
    %vm1965 = vweird.f32 %v1826
    %vm1966 = vweird.f32 %v1959
    %vm1967 = vmor %vm1965, %vm1966
    %v1968 = vsel %vm1967, %v1959, %v1964
    %v1969 = vrsqrt.pop %v1827
    %v1970 = vmul.f32 %v1969, %v1827
    %v1971 = vmul.f32 %v1970, %v1969
    %v1972 = vmul.f32 0.5, %v1971
    %v1973 = vsub.f32 1.5, %v1972
    %v1974 = vmul.f32 %v1969, %v1973
    %vm1975 = vweird.f32 %v1827
    %vm1976 = vweird.f32 %v1969
    %vm1977 = vmor %vm1975, %vm1976
    %v1978 = vsel %vm1977, %v1969, %v1974
    %v1979 = vrsqrt.pop %v1828
    %v1980 = vmul.f32 %v1979, %v1828
    %v1981 = vmul.f32 %v1980, %v1979
    %v1982 = vmul.f32 0.5, %v1981
    %v1983 = vsub.f32 1.5, %v1982
    %v1984 = vmul.f32 %v1979, %v1983
    %vm1985 = vweird.f32 %v1828
    %vm1986 = vweird.f32 %v1979
    %vm1987 = vmor %vm1985, %vm1986
    %v1988 = vsel %vm1987, %v1979, %v1984
    %v1989 = vmul.f32 %v1733, %v1838
    %v1990 = vmul.f32 %v1734, %v1848
    %v1991 = vmul.f32 %v1735, %v1858
    %v1992 = vmul.f32 %v1736, %v1868
    %v1993 = vmul.f32 %v1737, %v1878
    %v1994 = vmul.f32 %v1738, %v1888
    %v1995 = vmul.f32 %v1739, %v1898
    %v1996 = vmul.f32 %v1740, %v1908
    %v1997 = vmul.f32 %v1741, %v1918
    %v1998 = vmul.f32 %v1742, %v1928
    %v1999 = vmul.f32 %v1743, %v1938
    %v2000 = vmul.f32 %v1744, %v1948
    %v2001 = vmul.f32 %v1745, %v1958
    %v2002 = vmul.f32 %v1746, %v1968
    %v2003 = vmul.f32 %v1747, %v1978
    %v2004 = vmul.f32 %v1748, %v1988
    %v2005 = vld [vmem:[%s7] sm:$0xff]
    %v2006 = vld [vmem:[%s7 + $0x8] sm:$0xff]
    %v2007 = vld [vmem:[%s7 + $0x10] sm:$0xff]
    %v2008 = vld [vmem:[%s7 + $0x18] sm:$0xff]
    %v2009 = vld [vmem:[%s7 + $0x20] sm:$0xff]
    %v2010 = vld [vmem:[%s7 + $0x28] sm:$0xff]
    %v2011 = vld [vmem:[%s7 + $0x30] sm:$0xff]
    %v2012 = vld [vmem:[%s7 + $0x38] sm:$0xff]
    %v2013 = vld [vmem:[%s7 + $0x40] sm:$0xff]
    %v2014 = vld [vmem:[%s7 + $0x48] sm:$0xff]
    %v2015 = vld [vmem:[%s7 + $0x50] sm:$0xff]
    %v2016 = vld [vmem:[%s7 + $0x58] sm:$0xff]
    %v2017 = vld [vmem:[%s7 + $0x60] sm:$0xff]
    %v2018 = vld [vmem:[%s7 + $0x68] sm:$0xff]
    %v2019 = vld [vmem:[%s7 + $0x70] sm:$0xff]
    %v2020 = vld [vmem:[%s7 + $0x78] sm:$0xff]
    %v2021 = vmul.f32 %v2005, %v2005
    %v2022 = vmul.f32 %v2006, %v2006
    %v2023 = vmul.f32 %v2007, %v2007
    %v2024 = vmul.f32 %v2008, %v2008
    %v2025 = vmul.f32 %v2009, %v2009
    %v2026 = vmul.f32 %v2010, %v2010
    %v2027 = vmul.f32 %v2011, %v2011
    %v2028 = vmul.f32 %v2012, %v2012
    %v2029 = vmul.f32 %v2013, %v2013
    %v2030 = vmul.f32 %v2014, %v2014
    %v2031 = vmul.f32 %v2015, %v2015
    %v2032 = vmul.f32 %v2016, %v2016
    %v2033 = vmul.f32 %v2017, %v2017
    %v2034 = vmul.f32 %v2018, %v2018
    %v2035 = vmul.f32 %v2019, %v2019
    %v2036 = vmul.f32 %v2020, %v2020
    %v2037 = vsel %vm68, %v2021, 0.0
    %2038 = vadd.xlane.f32.xlu0 %v2037
    %v2039 = vpop.xlane.xlu0 %2038
    %v2040 = vsel %vm68, %v2022, 0.0
    %2041 = vadd.xlane.f32.xlu0 %v2040
    %v2042 = vpop.xlane.xlu0 %2041
    %v2043 = vsel %vm68, %v2023, 0.0
    %2044 = vadd.xlane.f32.xlu0 %v2043
    %v2045 = vpop.xlane.xlu0 %2044
    %v2046 = vsel %vm68, %v2024, 0.0
    %2047 = vadd.xlane.f32.xlu0 %v2046
    %v2048 = vpop.xlane.xlu0 %2047
    %v2049 = vsel %vm68, %v2025, 0.0
    %2050 = vadd.xlane.f32.xlu0 %v2049
    %v2051 = vpop.xlane.xlu0 %2050
    %v2052 = vsel %vm68, %v2026, 0.0
    %2053 = vadd.xlane.f32.xlu0 %v2052
    %v2054 = vpop.xlane.xlu0 %2053
    %v2055 = vsel %vm68, %v2027, 0.0
    %2056 = vadd.xlane.f32.xlu0 %v2055
    %v2057 = vpop.xlane.xlu0 %2056
    %v2058 = vsel %vm68, %v2028, 0.0
    %2059 = vadd.xlane.f32.xlu0 %v2058
    %v2060 = vpop.xlane.xlu0 %2059
    %v2061 = vsel %vm68, %v2029, 0.0
    %2062 = vadd.xlane.f32.xlu0 %v2061
    %v2063 = vpop.xlane.xlu0 %2062
    %v2064 = vsel %vm68, %v2030, 0.0
    %2065 = vadd.xlane.f32.xlu0 %v2064
    %v2066 = vpop.xlane.xlu0 %2065
    %v2067 = vsel %vm68, %v2031, 0.0
    %2068 = vadd.xlane.f32.xlu0 %v2067
    %v2069 = vpop.xlane.xlu0 %2068
    %v2070 = vsel %vm68, %v2032, 0.0
    %2071 = vadd.xlane.f32.xlu0 %v2070
    %v2072 = vpop.xlane.xlu0 %2071
    %v2073 = vsel %vm68, %v2033, 0.0
    %2074 = vadd.xlane.f32.xlu0 %v2073
    %v2075 = vpop.xlane.xlu0 %2074
    %v2076 = vsel %vm68, %v2034, 0.0
    %2077 = vadd.xlane.f32.xlu0 %v2076
    %v2078 = vpop.xlane.xlu0 %2077
    %v2079 = vsel %vm68, %v2035, 0.0
    %2080 = vadd.xlane.f32.xlu0 %v2079
    %v2081 = vpop.xlane.xlu0 %2080
    %v2082 = vsel %vm68, %v2036, 0.0
    %2083 = vadd.xlane.f32.xlu0 %v2082
    %v2084 = vpop.xlane.xlu0 %2083
    %v2085 = vmax.f32 %v2039, 1e-24
    %v2086 = vmax.f32 %v2042, 1e-24
    %v2087 = vmax.f32 %v2045, 1e-24
    %v2088 = vmax.f32 %v2048, 1e-24
    %v2089 = vmax.f32 %v2051, 1e-24
    %v2090 = vmax.f32 %v2054, 1e-24
    %v2091 = vmax.f32 %v2057, 1e-24
    %v2092 = vmax.f32 %v2060, 1e-24
    %v2093 = vmax.f32 %v2063, 1e-24
    %v2094 = vmax.f32 %v2066, 1e-24
    %v2095 = vmax.f32 %v2069, 1e-24
    %v2096 = vmax.f32 %v2072, 1e-24
    %v2097 = vmax.f32 %v2075, 1e-24
    %v2098 = vmax.f32 %v2078, 1e-24
    %v2099 = vmax.f32 %v2081, 1e-24
    %v2100 = vmax.f32 %v2084, 1e-24
    %v2101 = vrsqrt.pop %v2085
    %v2102 = vmul.f32 %v2101, %v2085
    %v2103 = vmul.f32 %v2102, %v2101
    %v2104 = vmul.f32 0.5, %v2103
    %v2105 = vsub.f32 1.5, %v2104
    %v2106 = vmul.f32 %v2101, %v2105
    %vm2107 = vweird.f32 %v2085
    %vm2108 = vweird.f32 %v2101
    %vm2109 = vmor %vm2107, %vm2108
    %v2110 = vsel %vm2109, %v2101, %v2106
    %v2111 = vrsqrt.pop %v2086
    %v2112 = vmul.f32 %v2111, %v2086
    %v2113 = vmul.f32 %v2112, %v2111
    %v2114 = vmul.f32 0.5, %v2113
    %v2115 = vsub.f32 1.5, %v2114
    %v2116 = vmul.f32 %v2111, %v2115
    %vm2117 = vweird.f32 %v2086
    %vm2118 = vweird.f32 %v2111
    %vm2119 = vmor %vm2117, %vm2118
    %v2120 = vsel %vm2119, %v2111, %v2116
    %v2121 = vrsqrt.pop %v2087
    %v2122 = vmul.f32 %v2121, %v2087
    %v2123 = vmul.f32 %v2122, %v2121
    %v2124 = vmul.f32 0.5, %v2123
    %v2125 = vsub.f32 1.5, %v2124
    %v2126 = vmul.f32 %v2121, %v2125
    %vm2127 = vweird.f32 %v2087
    %vm2128 = vweird.f32 %v2121
    %vm2129 = vmor %vm2127, %vm2128
    %v2130 = vsel %vm2129, %v2121, %v2126
    %v2131 = vrsqrt.pop %v2088
    %v2132 = vmul.f32 %v2131, %v2088
    %v2133 = vmul.f32 %v2132, %v2131
    %v2134 = vmul.f32 0.5, %v2133
    %v2135 = vsub.f32 1.5, %v2134
    %v2136 = vmul.f32 %v2131, %v2135
    %vm2137 = vweird.f32 %v2088
    %vm2138 = vweird.f32 %v2131
    %vm2139 = vmor %vm2137, %vm2138
    %v2140 = vsel %vm2139, %v2131, %v2136
    %v2141 = vrsqrt.pop %v2089
    %v2142 = vmul.f32 %v2141, %v2089
    %v2143 = vmul.f32 %v2142, %v2141
    %v2144 = vmul.f32 0.5, %v2143
    %v2145 = vsub.f32 1.5, %v2144
    %v2146 = vmul.f32 %v2141, %v2145
    %vm2147 = vweird.f32 %v2089
    %vm2148 = vweird.f32 %v2141
    %vm2149 = vmor %vm2147, %vm2148
    %v2150 = vsel %vm2149, %v2141, %v2146
    %v2151 = vrsqrt.pop %v2090
    %v2152 = vmul.f32 %v2151, %v2090
    %v2153 = vmul.f32 %v2152, %v2151
    %v2154 = vmul.f32 0.5, %v2153
    %v2155 = vsub.f32 1.5, %v2154
    %v2156 = vmul.f32 %v2151, %v2155
    %vm2157 = vweird.f32 %v2090
    %vm2158 = vweird.f32 %v2151
    %vm2159 = vmor %vm2157, %vm2158
    %v2160 = vsel %vm2159, %v2151, %v2156
    %v2161 = vrsqrt.pop %v2091
    %v2162 = vmul.f32 %v2161, %v2091
    %v2163 = vmul.f32 %v2162, %v2161
    %v2164 = vmul.f32 0.5, %v2163
    %v2165 = vsub.f32 1.5, %v2164
    %v2166 = vmul.f32 %v2161, %v2165
    %vm2167 = vweird.f32 %v2091
    %vm2168 = vweird.f32 %v2161
    %vm2169 = vmor %vm2167, %vm2168
    %v2170 = vsel %vm2169, %v2161, %v2166
    %v2171 = vrsqrt.pop %v2092
    %v2172 = vmul.f32 %v2171, %v2092
    %v2173 = vmul.f32 %v2172, %v2171
    %v2174 = vmul.f32 0.5, %v2173
    %v2175 = vsub.f32 1.5, %v2174
    %v2176 = vmul.f32 %v2171, %v2175
    %vm2177 = vweird.f32 %v2092
    %vm2178 = vweird.f32 %v2171
    %vm2179 = vmor %vm2177, %vm2178
    %v2180 = vsel %vm2179, %v2171, %v2176
    %v2181 = vrsqrt.pop %v2093
    %v2182 = vmul.f32 %v2181, %v2093
    %v2183 = vmul.f32 %v2182, %v2181
    %v2184 = vmul.f32 0.5, %v2183
    %v2185 = vsub.f32 1.5, %v2184
    %v2186 = vmul.f32 %v2181, %v2185
    %vm2187 = vweird.f32 %v2093
    %vm2188 = vweird.f32 %v2181
    %vm2189 = vmor %vm2187, %vm2188
    %v2190 = vsel %vm2189, %v2181, %v2186
    %v2191 = vrsqrt.pop %v2094
    %v2192 = vmul.f32 %v2191, %v2094
    %v2193 = vmul.f32 %v2192, %v2191
    %v2194 = vmul.f32 0.5, %v2193
    %v2195 = vsub.f32 1.5, %v2194
    %v2196 = vmul.f32 %v2191, %v2195
    %vm2197 = vweird.f32 %v2094
    %vm2198 = vweird.f32 %v2191
    %vm2199 = vmor %vm2197, %vm2198
    %v2200 = vsel %vm2199, %v2191, %v2196
    %v2201 = vrsqrt.pop %v2095
    %v2202 = vmul.f32 %v2201, %v2095
    %v2203 = vmul.f32 %v2202, %v2201
    %v2204 = vmul.f32 0.5, %v2203
    %v2205 = vsub.f32 1.5, %v2204
    %v2206 = vmul.f32 %v2201, %v2205
    %vm2207 = vweird.f32 %v2095
    %vm2208 = vweird.f32 %v2201
    %vm2209 = vmor %vm2207, %vm2208
    %v2210 = vsel %vm2209, %v2201, %v2206
    %v2211 = vrsqrt.pop %v2096
    %v2212 = vmul.f32 %v2211, %v2096
    %v2213 = vmul.f32 %v2212, %v2211
    %v2214 = vmul.f32 0.5, %v2213
    %v2215 = vsub.f32 1.5, %v2214
    %v2216 = vmul.f32 %v2211, %v2215
    %vm2217 = vweird.f32 %v2096
    %vm2218 = vweird.f32 %v2211
    %vm2219 = vmor %vm2217, %vm2218
    %v2220 = vsel %vm2219, %v2211, %v2216
    %v2221 = vrsqrt.pop %v2097
    %v2222 = vmul.f32 %v2221, %v2097
    %v2223 = vmul.f32 %v2222, %v2221
    %v2224 = vmul.f32 0.5, %v2223
    %v2225 = vsub.f32 1.5, %v2224
    %v2226 = vmul.f32 %v2221, %v2225
    %vm2227 = vweird.f32 %v2097
    %vm2228 = vweird.f32 %v2221
    %vm2229 = vmor %vm2227, %vm2228
    %v2230 = vsel %vm2229, %v2221, %v2226
    %v2231 = vrsqrt.pop %v2098
    %v2232 = vmul.f32 %v2231, %v2098
    %v2233 = vmul.f32 %v2232, %v2231
    %v2234 = vmul.f32 0.5, %v2233
    %v2235 = vsub.f32 1.5, %v2234
    %v2236 = vmul.f32 %v2231, %v2235
    %vm2237 = vweird.f32 %v2098
    %vm2238 = vweird.f32 %v2231
    %vm2239 = vmor %vm2237, %vm2238
    %v2240 = vsel %vm2239, %v2231, %v2236
    %v2241 = vrsqrt.pop %v2099
    %v2242 = vmul.f32 %v2241, %v2099
    %v2243 = vmul.f32 %v2242, %v2241
    %v2244 = vmul.f32 0.5, %v2243
    %v2245 = vsub.f32 1.5, %v2244
    %v2246 = vmul.f32 %v2241, %v2245
    %vm2247 = vweird.f32 %v2099
    %vm2248 = vweird.f32 %v2241
    %vm2249 = vmor %vm2247, %vm2248
    %v2250 = vsel %vm2249, %v2241, %v2246
    %v2251 = vrsqrt.pop %v2100
    %v2252 = vmul.f32 %v2251, %v2100
    %v2253 = vmul.f32 %v2252, %v2251
    %v2254 = vmul.f32 0.5, %v2253
    %v2255 = vsub.f32 1.5, %v2254
    %v2256 = vmul.f32 %v2251, %v2255
    %vm2257 = vweird.f32 %v2100
    %vm2258 = vweird.f32 %v2251
    %vm2259 = vmor %vm2257, %vm2258
    %v2260 = vsel %vm2259, %v2251, %v2256
    %v2261 = vmul.f32 %v2005, %v2110
    %v2262 = vmul.f32 %v2006, %v2120
    %v2263 = vmul.f32 %v2007, %v2130
    %v2264 = vmul.f32 %v2008, %v2140
    %v2265 = vmul.f32 %v2009, %v2150
    %v2266 = vmul.f32 %v2010, %v2160
    %v2267 = vmul.f32 %v2011, %v2170
    %v2268 = vmul.f32 %v2012, %v2180
    %v2269 = vmul.f32 %v2013, %v2190
    %v2270 = vmul.f32 %v2014, %v2200
    %v2271 = vmul.f32 %v2015, %v2210
    %v2272 = vmul.f32 %v2016, %v2220
    %v2273 = vmul.f32 %v2017, %v2230
    %v2274 = vmul.f32 %v2018, %v2240
    %v2275 = vmul.f32 %v2019, %v2250
    %v2276 = vmul.f32 %v2020, %v2260
    %v2277 = vld [vmem:[%s8] sm:$0xff]
    %v2278 = vld [vmem:[%s8 + $0x8] sm:$0xff]
    %v2279 = vld [vmem:[%s8 + $0x10] sm:$0xff]
    %v2280 = vld [vmem:[%s8 + $0x18] sm:$0xff]
    %v2281 = vld [vmem:[%s8 + $0x20] sm:$0xff]
    %v2282 = vld [vmem:[%s8 + $0x28] sm:$0xff]
    %v2283 = vld [vmem:[%s8 + $0x30] sm:$0xff]
    %v2284 = vld [vmem:[%s8 + $0x38] sm:$0xff]
    %v2285 = vld [vmem:[%s8 + $0x40] sm:$0xff]
    %v2286 = vld [vmem:[%s8 + $0x48] sm:$0xff]
    %v2287 = vld [vmem:[%s8 + $0x50] sm:$0xff]
    %v2288 = vld [vmem:[%s8 + $0x58] sm:$0xff]
    %v2289 = vld [vmem:[%s8 + $0x60] sm:$0xff]
    %v2290 = vld [vmem:[%s8 + $0x68] sm:$0xff]
    %v2291 = vld [vmem:[%s8 + $0x70] sm:$0xff]
    %v2292 = vld [vmem:[%s8 + $0x78] sm:$0xff]
    %v2293 = vld [vmem:[%s9] sm:$0xff]
    %v2294 = vld [vmem:[%s9 + $0x8] sm:$0xff]
    %v2295 = vld [vmem:[%s9 + $0x10] sm:$0xff]
    %v2296 = vld [vmem:[%s9 + $0x18] sm:$0xff]
    %vm2297 = vcmp.eq.f32.partialorder %v2277, 0.0
    %vm2298 = vcmp.eq.f32.partialorder %v2278, 0.0
    %vm2299 = vcmp.eq.f32.partialorder %v2279, 0.0
    %vm2300 = vcmp.eq.f32.partialorder %v2280, 0.0
    %vm2301 = vcmp.eq.f32.partialorder %v2281, 0.0
    %vm2302 = vcmp.eq.f32.partialorder %v2282, 0.0
    %vm2303 = vcmp.eq.f32.partialorder %v2283, 0.0
    %vm2304 = vcmp.eq.f32.partialorder %v2284, 0.0
    %vm2305 = vcmp.eq.f32.partialorder %v2285, 0.0
    %vm2306 = vcmp.eq.f32.partialorder %v2286, 0.0
    %vm2307 = vcmp.eq.f32.partialorder %v2287, 0.0
    %vm2308 = vcmp.eq.f32.partialorder %v2288, 0.0
    %vm2309 = vcmp.eq.f32.partialorder %v2289, 0.0
    %vm2310 = vcmp.eq.f32.partialorder %v2290, 0.0
    %vm2311 = vcmp.eq.f32.partialorder %v2291, 0.0
    %vm2312 = vcmp.eq.f32.partialorder %v2292, 0.0
    %v2313 = vsel %vm2297, 1, 0
    %v2314 = vsel %vm2298, 1, 0
    %v2315 = vsel %vm2299, 1, 0
    %v2316 = vsel %vm2300, 1, 0
    %v2317 = vsel %vm2301, 1, 0
    %v2318 = vsel %vm2302, 1, 0
    %v2319 = vsel %vm2303, 1, 0
    %v2320 = vsel %vm2304, 1, 0
    %v2321 = vsel %vm2305, 1, 0
    %v2322 = vsel %vm2306, 1, 0
    %v2323 = vsel %vm2307, 1, 0
    %v2324 = vsel %vm2308, 1, 0
    %v2325 = vsel %vm2309, 1, 0
    %v2326 = vsel %vm2310, 1, 0
    %v2327 = vsel %vm2311, 1, 0
    %v2328 = vsel %vm2312, 1, 0
    %2329 = vset.pattern.permute.xlu0 0
    %2330 = vperm.xlu0 %2329, %v2313
    %v2331 = vpop.permute.xlu0 %2330
    %2332 = vset.pattern.permute.xlu0 0
    %2333 = vperm.xlu0 %2332, %v2314
    %v2334 = vpop.permute.xlu0 %2333
    %2335 = vset.pattern.permute.xlu0 0
    %2336 = vperm.xlu0 %2335, %v2315
    %v2337 = vpop.permute.xlu0 %2336
    %2338 = vset.pattern.permute.xlu0 0
    %2339 = vperm.xlu0 %2338, %v2316
    %v2340 = vpop.permute.xlu0 %2339
    %2341 = vset.pattern.permute.xlu0 0
    %2342 = vperm.xlu0 %2341, %v2317
    %v2343 = vpop.permute.xlu0 %2342
    %2344 = vset.pattern.permute.xlu0 0
    %2345 = vperm.xlu0 %2344, %v2318
    %v2346 = vpop.permute.xlu0 %2345
    %2347 = vset.pattern.permute.xlu0 0
    %2348 = vperm.xlu0 %2347, %v2319
    %v2349 = vpop.permute.xlu0 %2348
    %2350 = vset.pattern.permute.xlu0 0
    %2351 = vperm.xlu0 %2350, %v2320
    %v2352 = vpop.permute.xlu0 %2351
    %2353 = vset.pattern.permute.xlu0 0
    %2354 = vperm.xlu0 %2353, %v2321
    %v2355 = vpop.permute.xlu0 %2354
    %2356 = vset.pattern.permute.xlu0 0
    %2357 = vperm.xlu0 %2356, %v2322
    %v2358 = vpop.permute.xlu0 %2357
    %2359 = vset.pattern.permute.xlu0 0
    %2360 = vperm.xlu0 %2359, %v2323
    %v2361 = vpop.permute.xlu0 %2360
    %2362 = vset.pattern.permute.xlu0 0
    %2363 = vperm.xlu0 %2362, %v2324
    %v2364 = vpop.permute.xlu0 %2363
    %2365 = vset.pattern.permute.xlu0 0
    %2366 = vperm.xlu0 %2365, %v2325
    %v2367 = vpop.permute.xlu0 %2366
    %2368 = vset.pattern.permute.xlu0 0
    %2369 = vperm.xlu0 %2368, %v2326
    %v2370 = vpop.permute.xlu0 %2369
    %2371 = vset.pattern.permute.xlu0 0
    %2372 = vperm.xlu0 %2371, %v2327
    %v2373 = vpop.permute.xlu0 %2372
    %2374 = vset.pattern.permute.xlu0 0
    %2375 = vperm.xlu0 %2374, %v2328
    %v2376 = vpop.permute.xlu0 %2375
    %vm2377 = vcmp.eq.s32.totalorder %v2331, 1
    %vm2378 = vcmp.eq.s32.totalorder %v2334, 1
    %vm2379 = vcmp.eq.s32.totalorder %v2337, 1
    %vm2380 = vcmp.eq.s32.totalorder %v2340, 1
    %vm2381 = vcmp.eq.s32.totalorder %v2343, 1
    %vm2382 = vcmp.eq.s32.totalorder %v2346, 1
    %vm2383 = vcmp.eq.s32.totalorder %v2349, 1
    %vm2384 = vcmp.eq.s32.totalorder %v2352, 1
    %vm2385 = vcmp.eq.s32.totalorder %v2355, 1
    %vm2386 = vcmp.eq.s32.totalorder %v2358, 1
    %vm2387 = vcmp.eq.s32.totalorder %v2361, 1
    %vm2388 = vcmp.eq.s32.totalorder %v2364, 1
    %vm2389 = vcmp.eq.s32.totalorder %v2367, 1
    %vm2390 = vcmp.eq.s32.totalorder %v2370, 1
    %vm2391 = vcmp.eq.s32.totalorder %v2373, 1
    %vm2392 = vcmp.eq.s32.totalorder %v2376, 1
    %v2393 = vsel %vm2377, %v1989, 0.0
    %v2394 = vsel %vm2378, %v1990, 0.0
    %v2395 = vsel %vm2379, %v1991, 0.0
    %v2396 = vsel %vm2380, %v1992, 0.0
    %v2397 = vsel %vm2381, %v1993, 0.0
    %v2398 = vsel %vm2382, %v1994, 0.0
    %v2399 = vsel %vm2383, %v1995, 0.0
    %v2400 = vsel %vm2384, %v1996, 0.0
    %v2401 = vsel %vm2385, %v1997, 0.0
    %v2402 = vsel %vm2386, %v1998, 0.0
    %v2403 = vsel %vm2387, %v1999, 0.0
    %v2404 = vsel %vm2388, %v2000, 0.0
    %v2405 = vsel %vm2389, %v2001, 0.0
    %v2406 = vsel %vm2390, %v2002, 0.0
    %v2407 = vsel %vm2391, %v2003, 0.0
    %v2408 = vsel %vm2392, %v2004, 0.0
    %v2409 = vsel %vm2377, %v2261, 0.0
    %v2410 = vsel %vm2378, %v2262, 0.0
    %v2411 = vsel %vm2379, %v2263, 0.0
    %v2412 = vsel %vm2380, %v2264, 0.0
    %v2413 = vsel %vm2381, %v2265, 0.0
    %v2414 = vsel %vm2382, %v2266, 0.0
    %v2415 = vsel %vm2383, %v2267, 0.0
    %v2416 = vsel %vm2384, %v2268, 0.0
    %v2417 = vsel %vm2385, %v2269, 0.0
    %v2418 = vsel %vm2386, %v2270, 0.0
    %v2419 = vsel %vm2387, %v2271, 0.0
    %v2420 = vsel %vm2388, %v2272, 0.0
    %v2421 = vsel %vm2389, %v2273, 0.0
    %v2422 = vsel %vm2390, %v2274, 0.0
    %v2423 = vsel %vm2391, %v2275, 0.0
    %v2424 = vsel %vm2392, %v2276, 0.0
    %vm2425 = vcmp.eq.f32.partialorder %v2277, 1.0
    %vm2426 = vcmp.eq.f32.partialorder %v2278, 1.0
    %vm2427 = vcmp.eq.f32.partialorder %v2279, 1.0
    %vm2428 = vcmp.eq.f32.partialorder %v2280, 1.0
    %vm2429 = vcmp.eq.f32.partialorder %v2281, 1.0
    %vm2430 = vcmp.eq.f32.partialorder %v2282, 1.0
    %vm2431 = vcmp.eq.f32.partialorder %v2283, 1.0
    %vm2432 = vcmp.eq.f32.partialorder %v2284, 1.0
    %vm2433 = vcmp.eq.f32.partialorder %v2285, 1.0
    %vm2434 = vcmp.eq.f32.partialorder %v2286, 1.0
    %vm2435 = vcmp.eq.f32.partialorder %v2287, 1.0
    %vm2436 = vcmp.eq.f32.partialorder %v2288, 1.0
    %vm2437 = vcmp.eq.f32.partialorder %v2289, 1.0
    %vm2438 = vcmp.eq.f32.partialorder %v2290, 1.0
    %vm2439 = vcmp.eq.f32.partialorder %v2291, 1.0
    %vm2440 = vcmp.eq.f32.partialorder %v2292, 1.0
    %v2441 = vsel %vm2425, 1, 0
    %v2442 = vsel %vm2426, 1, 0
    %v2443 = vsel %vm2427, 1, 0
    %v2444 = vsel %vm2428, 1, 0
    %v2445 = vsel %vm2429, 1, 0
    %v2446 = vsel %vm2430, 1, 0
    %v2447 = vsel %vm2431, 1, 0
    %v2448 = vsel %vm2432, 1, 0
    %v2449 = vsel %vm2433, 1, 0
    %v2450 = vsel %vm2434, 1, 0
    %v2451 = vsel %vm2435, 1, 0
    %v2452 = vsel %vm2436, 1, 0
    %v2453 = vsel %vm2437, 1, 0
    %v2454 = vsel %vm2438, 1, 0
    %v2455 = vsel %vm2439, 1, 0
    %v2456 = vsel %vm2440, 1, 0
    %2457 = vset.pattern.permute.xlu0 0
    %2458 = vperm.xlu0 %2457, %v2441
    %v2459 = vpop.permute.xlu0 %2458
    %2460 = vset.pattern.permute.xlu0 0
    %2461 = vperm.xlu0 %2460, %v2442
    %v2462 = vpop.permute.xlu0 %2461
    %2463 = vset.pattern.permute.xlu0 0
    %2464 = vperm.xlu0 %2463, %v2443
    %v2465 = vpop.permute.xlu0 %2464
    %2466 = vset.pattern.permute.xlu0 0
    %2467 = vperm.xlu0 %2466, %v2444
    %v2468 = vpop.permute.xlu0 %2467
    %2469 = vset.pattern.permute.xlu0 0
    %2470 = vperm.xlu0 %2469, %v2445
    %v2471 = vpop.permute.xlu0 %2470
    %2472 = vset.pattern.permute.xlu0 0
    %2473 = vperm.xlu0 %2472, %v2446
    %v2474 = vpop.permute.xlu0 %2473
    %2475 = vset.pattern.permute.xlu0 0
    %2476 = vperm.xlu0 %2475, %v2447
    %v2477 = vpop.permute.xlu0 %2476
    %2478 = vset.pattern.permute.xlu0 0
    %2479 = vperm.xlu0 %2478, %v2448
    %v2480 = vpop.permute.xlu0 %2479
    %2481 = vset.pattern.permute.xlu0 0
    %2482 = vperm.xlu0 %2481, %v2449
    %v2483 = vpop.permute.xlu0 %2482
    %2484 = vset.pattern.permute.xlu0 0
    %2485 = vperm.xlu0 %2484, %v2450
    %v2486 = vpop.permute.xlu0 %2485
    %2487 = vset.pattern.permute.xlu0 0
    %2488 = vperm.xlu0 %2487, %v2451
    %v2489 = vpop.permute.xlu0 %2488
    %2490 = vset.pattern.permute.xlu0 0
    %2491 = vperm.xlu0 %2490, %v2452
    %v2492 = vpop.permute.xlu0 %2491
    %2493 = vset.pattern.permute.xlu0 0
    %2494 = vperm.xlu0 %2493, %v2453
    %v2495 = vpop.permute.xlu0 %2494
    %2496 = vset.pattern.permute.xlu0 0
    %2497 = vperm.xlu0 %2496, %v2454
    %v2498 = vpop.permute.xlu0 %2497
    %2499 = vset.pattern.permute.xlu0 0
    %2500 = vperm.xlu0 %2499, %v2455
    %v2501 = vpop.permute.xlu0 %2500
    %2502 = vset.pattern.permute.xlu0 0
    %2503 = vperm.xlu0 %2502, %v2456
    %v2504 = vpop.permute.xlu0 %2503
    %vm2505 = vcmp.eq.s32.totalorder %v2459, 1
    %vm2506 = vcmp.eq.s32.totalorder %v2462, 1
    %vm2507 = vcmp.eq.s32.totalorder %v2465, 1
    %vm2508 = vcmp.eq.s32.totalorder %v2468, 1
    %vm2509 = vcmp.eq.s32.totalorder %v2471, 1
    %vm2510 = vcmp.eq.s32.totalorder %v2474, 1
    %vm2511 = vcmp.eq.s32.totalorder %v2477, 1
    %vm2512 = vcmp.eq.s32.totalorder %v2480, 1
    %vm2513 = vcmp.eq.s32.totalorder %v2483, 1
    %vm2514 = vcmp.eq.s32.totalorder %v2486, 1
    %vm2515 = vcmp.eq.s32.totalorder %v2489, 1
    %vm2516 = vcmp.eq.s32.totalorder %v2492, 1
    %vm2517 = vcmp.eq.s32.totalorder %v2495, 1
    %vm2518 = vcmp.eq.s32.totalorder %v2498, 1
    %vm2519 = vcmp.eq.s32.totalorder %v2501, 1
    %vm2520 = vcmp.eq.s32.totalorder %v2504, 1
    %v2521 = vsel %vm2505, %v1989, 0.0
    %v2522 = vsel %vm2506, %v1990, 0.0
    %v2523 = vsel %vm2507, %v1991, 0.0
    %v2524 = vsel %vm2508, %v1992, 0.0
    %v2525 = vsel %vm2509, %v1993, 0.0
    %v2526 = vsel %vm2510, %v1994, 0.0
    %v2527 = vsel %vm2511, %v1995, 0.0
    %v2528 = vsel %vm2512, %v1996, 0.0
    %v2529 = vsel %vm2513, %v1997, 0.0
    %v2530 = vsel %vm2514, %v1998, 0.0
    %v2531 = vsel %vm2515, %v1999, 0.0
    %v2532 = vsel %vm2516, %v2000, 0.0
    %v2533 = vsel %vm2517, %v2001, 0.0
    %v2534 = vsel %vm2518, %v2002, 0.0
    %v2535 = vsel %vm2519, %v2003, 0.0
    %v2536 = vsel %vm2520, %v2004, 0.0
    %v2537 = vsel %vm2505, %v2261, 0.0
    %v2538 = vsel %vm2506, %v2262, 0.0
    %v2539 = vsel %vm2507, %v2263, 0.0
    %v2540 = vsel %vm2508, %v2264, 0.0
    %v2541 = vsel %vm2509, %v2265, 0.0
    %v2542 = vsel %vm2510, %v2266, 0.0
    %v2543 = vsel %vm2511, %v2267, 0.0
    %v2544 = vsel %vm2512, %v2268, 0.0
    %v2545 = vsel %vm2513, %v2269, 0.0
    %v2546 = vsel %vm2514, %v2270, 0.0
    %v2547 = vsel %vm2515, %v2271, 0.0
    %v2548 = vsel %vm2516, %v2272, 0.0
    %v2549 = vsel %vm2517, %v2273, 0.0
    %v2550 = vsel %vm2518, %v2274, 0.0
    %v2551 = vsel %vm2519, %v2275, 0.0
    %v2552 = vsel %vm2520, %v2276, 0.0
    %v2554 = vsel %vm68, %v2521, 0
    %v2557 = vsel %vm68, %v2522, 0
    %v2560 = vsel %vm68, %v2523, 0
    %v2563 = vsel %vm68, %v2524, 0
    %v2566 = vsel %vm68, %v2525, 0
    %v2569 = vsel %vm68, %v2526, 0
    %v2572 = vsel %vm68, %v2527, 0
    %v2575 = vsel %vm68, %v2528, 0
    %v2578 = vsel %vm68, %v2529, 0
    %v2581 = vsel %vm68, %v2530, 0
    %v2584 = vsel %vm68, %v2531, 0
    %v2587 = vsel %vm68, %v2532, 0
    %v2590 = vsel %vm68, %v2533, 0
    %v2593 = vsel %vm68, %v2534, 0
    %v2596 = vsel %vm68, %v2535, 0
    %v2599 = vsel %vm68, %v2536, 0
    %v2602 = vsel %vm68, %v2537, 0
    %v2605 = vsel %vm68, %v2538, 0
    %v2608 = vsel %vm68, %v2539, 0
    %v2611 = vsel %vm68, %v2540, 0
    %v2614 = vsel %vm68, %v2541, 0
    %v2617 = vsel %vm68, %v2542, 0
    %v2620 = vsel %vm68, %v2543, 0
    %v2623 = vsel %vm68, %v2544, 0
    %v2626 = vsel %vm68, %v2545, 0
    %v2629 = vsel %vm68, %v2546, 0
    %v2632 = vsel %vm68, %v2547, 0
    %v2635 = vsel %vm68, %v2548, 0
    %v2638 = vsel %vm68, %v2549, 0
    %v2641 = vsel %vm68, %v2550, 0
    %v2644 = vsel %vm68, %v2551, 0
    %v2647 = vsel %vm68, %v2552, 0
    %2649 = vmatpush.msra.mxu0 0.0
    %2650 = vmatpush.msra.mxu0 0.0
    %2651 = vmatpush.msra.mxu0 0.0
    %2652 = vmatpush.msra.mxu0 0.0
    %2653 = vmatpush.msra.mxu0 0.0
    %2654 = vmatpush.msra.mxu0 0.0
    %2655 = vmatpush.msra.mxu0 0.0
    %2656 = vmatpush.msra.mxu0 0.0
    %2657 = vmatpush.msra.mxu0 0.0
    %2658 = vmatpush.msra.mxu0 0.0
    %2659 = vmatpush.msra.mxu0 0.0
    %2660 = vmatpush.msra.mxu0 0.0
    %2661 = vmatpush.msra.mxu0 %v2296
    %2662 = vmatpush.msra.mxu0 %v2295
    %2663 = vmatpush.msra.mxu0 %v2294
    %2664 = vmatpush.msra.mxu0 %v2293
    %2665 = vmatmul.f32.gmra.mxu0 %v2554
    %v2666 = vpop.f32.mrf.mxu0
    %v2667 = vadd.f32 0.0, %v2666
    %2668 = vmatmul.f32.gmra.mxu0 %v2557
    %v2669 = vpop.f32.mrf.mxu0
    %v2670 = vadd.f32 0.0, %v2669
    %2671 = vmatmul.f32.gmra.mxu0 %v2560
    %v2672 = vpop.f32.mrf.mxu0
    %v2673 = vadd.f32 0.0, %v2672
    %2674 = vmatmul.f32.gmra.mxu0 %v2563
    %v2675 = vpop.f32.mrf.mxu0
    %v2676 = vadd.f32 0.0, %v2675
    %2677 = vmatmul.f32.gmra.mxu0 %v2566
    %v2678 = vpop.f32.mrf.mxu0
    %v2679 = vadd.f32 0.0, %v2678
    %2680 = vmatmul.f32.gmra.mxu0 %v2569
    %v2681 = vpop.f32.mrf.mxu0
    %v2682 = vadd.f32 0.0, %v2681
    %2683 = vmatmul.f32.gmra.mxu0 %v2572
    %v2684 = vpop.f32.mrf.mxu0
    %v2685 = vadd.f32 0.0, %v2684
    %2686 = vmatmul.f32.gmra.mxu0 %v2575
    %v2687 = vpop.f32.mrf.mxu0
    %v2688 = vadd.f32 0.0, %v2687
    %2689 = vmatmul.f32.gmra.mxu0 %v2578
    %v2690 = vpop.f32.mrf.mxu0
    %v2691 = vadd.f32 0.0, %v2690
    %2692 = vmatmul.f32.gmra.mxu0 %v2581
    %v2693 = vpop.f32.mrf.mxu0
    %v2694 = vadd.f32 0.0, %v2693
    %2695 = vmatmul.f32.gmra.mxu0 %v2584
    %v2696 = vpop.f32.mrf.mxu0
    %v2697 = vadd.f32 0.0, %v2696
    %2698 = vmatmul.f32.gmra.mxu0 %v2587
    %v2699 = vpop.f32.mrf.mxu0
    %v2700 = vadd.f32 0.0, %v2699
    %2701 = vmatmul.f32.gmra.mxu0 %v2590
    %v2702 = vpop.f32.mrf.mxu0
    %v2703 = vadd.f32 0.0, %v2702
    %2704 = vmatmul.f32.gmra.mxu0 %v2593
    %v2705 = vpop.f32.mrf.mxu0
    %v2706 = vadd.f32 0.0, %v2705
    %2707 = vmatmul.f32.gmra.mxu0 %v2596
    %v2708 = vpop.f32.mrf.mxu0
    %v2709 = vadd.f32 0.0, %v2708
    %2710 = vmatmul.f32.gmra.mxu0 %v2599
    %v2711 = vpop.f32.mrf.mxu0
    %v2712 = vadd.f32 0.0, %v2711
    %2713 = vmatmul.f32.gmra.mxu0 %v2602
    %v2714 = vpop.f32.mrf.mxu0
    %v2715 = vadd.f32 0.0, %v2714
    %2716 = vmatmul.f32.gmra.mxu0 %v2605
    %v2717 = vpop.f32.mrf.mxu0
    %v2718 = vadd.f32 0.0, %v2717
    %2719 = vmatmul.f32.gmra.mxu0 %v2608
    %v2720 = vpop.f32.mrf.mxu0
    %v2721 = vadd.f32 0.0, %v2720
    %2722 = vmatmul.f32.gmra.mxu0 %v2611
    %v2723 = vpop.f32.mrf.mxu0
    %v2724 = vadd.f32 0.0, %v2723
    %2725 = vmatmul.f32.gmra.mxu0 %v2614
    %v2726 = vpop.f32.mrf.mxu0
    %v2727 = vadd.f32 0.0, %v2726
    %2728 = vmatmul.f32.gmra.mxu0 %v2617
    %v2729 = vpop.f32.mrf.mxu0
    %v2730 = vadd.f32 0.0, %v2729
    %2731 = vmatmul.f32.gmra.mxu0 %v2620
    %v2732 = vpop.f32.mrf.mxu0
    %v2733 = vadd.f32 0.0, %v2732
    %2734 = vmatmul.f32.gmra.mxu0 %v2623
    %v2735 = vpop.f32.mrf.mxu0
    %v2736 = vadd.f32 0.0, %v2735
    %2737 = vmatmul.f32.gmra.mxu0 %v2626
    %v2738 = vpop.f32.mrf.mxu0
    %v2739 = vadd.f32 0.0, %v2738
    %2740 = vmatmul.f32.gmra.mxu0 %v2629
    %v2741 = vpop.f32.mrf.mxu0
    %v2742 = vadd.f32 0.0, %v2741
    %2743 = vmatmul.f32.gmra.mxu0 %v2632
    %v2744 = vpop.f32.mrf.mxu0
    %v2745 = vadd.f32 0.0, %v2744
    %2746 = vmatmul.f32.gmra.mxu0 %v2635
    %v2747 = vpop.f32.mrf.mxu0
    %v2748 = vadd.f32 0.0, %v2747
    %2749 = vmatmul.f32.gmra.mxu0 %v2638
    %v2750 = vpop.f32.mrf.mxu0
    %v2751 = vadd.f32 0.0, %v2750
    %2752 = vmatmul.f32.gmra.mxu0 %v2641
    %v2753 = vpop.f32.mrf.mxu0
    %v2754 = vadd.f32 0.0, %v2753
    %2755 = vmatmul.f32.gmra.mxu0 %v2644
    %v2756 = vpop.f32.mrf.mxu0
    %v2757 = vadd.f32 0.0, %v2756
    %2758 = vmatmul.f32.gmra.mxu0 %v2647
    %v2759 = vpop.f32.mrf.mxu0
    %v2760 = vadd.f32 0.0, %v2759
    %2761 = vdwg.mxu0
    %v2763 = vsel %vm68, %v2393, 0
    %v2766 = vsel %vm68, %v2394, 0
    %v2769 = vsel %vm68, %v2395, 0
    %v2772 = vsel %vm68, %v2396, 0
    %v2775 = vsel %vm68, %v2397, 0
    %v2778 = vsel %vm68, %v2398, 0
    %v2781 = vsel %vm68, %v2399, 0
    %v2784 = vsel %vm68, %v2400, 0
    %v2787 = vsel %vm68, %v2401, 0
    %v2790 = vsel %vm68, %v2402, 0
    %v2793 = vsel %vm68, %v2403, 0
    %v2796 = vsel %vm68, %v2404, 0
    %v2799 = vsel %vm68, %v2405, 0
    %v2802 = vsel %vm68, %v2406, 0
    %v2805 = vsel %vm68, %v2407, 0
    %v2808 = vsel %vm68, %v2408, 0
    %v2811 = vsel %vm68, %v2409, 0
    %v2814 = vsel %vm68, %v2410, 0
    %v2817 = vsel %vm68, %v2411, 0
    %v2820 = vsel %vm68, %v2412, 0
    %v2823 = vsel %vm68, %v2413, 0
    %v2826 = vsel %vm68, %v2414, 0
    %v2829 = vsel %vm68, %v2415, 0
    %v2832 = vsel %vm68, %v2416, 0
    %v2835 = vsel %vm68, %v2417, 0
    %v2838 = vsel %vm68, %v2418, 0
    %v2841 = vsel %vm68, %v2419, 0
    %v2844 = vsel %vm68, %v2420, 0
    %v2847 = vsel %vm68, %v2421, 0
    %v2850 = vsel %vm68, %v2422, 0
    %v2853 = vsel %vm68, %v2423, 0
    %v2856 = vsel %vm68, %v2424, 0
    %2858 = vmatpush.msra.mxu0 0.0
    %2859 = vmatpush.msra.mxu0 0.0
    %2860 = vmatpush.msra.mxu0 0.0
    %2861 = vmatpush.msra.mxu0 0.0
    %2862 = vmatpush.msra.mxu0 0.0
    %2863 = vmatpush.msra.mxu0 0.0
    %2864 = vmatpush.msra.mxu0 0.0
    %2865 = vmatpush.msra.mxu0 0.0
    %2866 = vmatpush.msra.mxu0 0.0
    %2867 = vmatpush.msra.mxu0 0.0
    %2868 = vmatpush.msra.mxu0 0.0
    %2869 = vmatpush.msra.mxu0 0.0
    %2870 = vmatpush.msra.mxu0 1.0
    %2871 = vmatpush.msra.mxu0 1.0
    %2872 = vmatpush.msra.mxu0 1.0
    %2873 = vmatpush.msra.mxu0 1.0
    %2874 = vmatmul.f32.gmra.mxu0 %v2763
    %v2875 = vpop.f32.mrf.mxu0
    %v2876 = vadd.f32 %v2667, %v2875
    %2877 = vmatmul.f32.gmra.mxu0 %v2766
    %v2878 = vpop.f32.mrf.mxu0
    %v2879 = vadd.f32 %v2670, %v2878
    %2880 = vmatmul.f32.gmra.mxu0 %v2769
    %v2881 = vpop.f32.mrf.mxu0
    %v2882 = vadd.f32 %v2673, %v2881
    %2883 = vmatmul.f32.gmra.mxu0 %v2772
    %v2884 = vpop.f32.mrf.mxu0
    %v2885 = vadd.f32 %v2676, %v2884
    %2886 = vmatmul.f32.gmra.mxu0 %v2775
    %v2887 = vpop.f32.mrf.mxu0
    %v2888 = vadd.f32 %v2679, %v2887
    %2889 = vmatmul.f32.gmra.mxu0 %v2778
    %v2890 = vpop.f32.mrf.mxu0
    %v2891 = vadd.f32 %v2682, %v2890
    %2892 = vmatmul.f32.gmra.mxu0 %v2781
    %v2893 = vpop.f32.mrf.mxu0
    %v2894 = vadd.f32 %v2685, %v2893
    %2895 = vmatmul.f32.gmra.mxu0 %v2784
    %v2896 = vpop.f32.mrf.mxu0
    %v2897 = vadd.f32 %v2688, %v2896
    %2898 = vmatmul.f32.gmra.mxu0 %v2787
    %v2899 = vpop.f32.mrf.mxu0
    %v2900 = vadd.f32 %v2691, %v2899
    %2901 = vmatmul.f32.gmra.mxu0 %v2790
    %v2902 = vpop.f32.mrf.mxu0
    %v2903 = vadd.f32 %v2694, %v2902
    %2904 = vmatmul.f32.gmra.mxu0 %v2793
    %v2905 = vpop.f32.mrf.mxu0
    %v2906 = vadd.f32 %v2697, %v2905
    %2907 = vmatmul.f32.gmra.mxu0 %v2796
    %v2908 = vpop.f32.mrf.mxu0
    %v2909 = vadd.f32 %v2700, %v2908
    %2910 = vmatmul.f32.gmra.mxu0 %v2799
    %v2911 = vpop.f32.mrf.mxu0
    %v2912 = vadd.f32 %v2703, %v2911
    %2913 = vmatmul.f32.gmra.mxu0 %v2802
    %v2914 = vpop.f32.mrf.mxu0
    %v2915 = vadd.f32 %v2706, %v2914
    %2916 = vmatmul.f32.gmra.mxu0 %v2805
    %v2917 = vpop.f32.mrf.mxu0
    %v2918 = vadd.f32 %v2709, %v2917
    %2919 = vmatmul.f32.gmra.mxu0 %v2808
    %v2920 = vpop.f32.mrf.mxu0
    %v2921 = vadd.f32 %v2712, %v2920
    %2922 = vmatmul.f32.gmra.mxu0 %v2811
    %v2923 = vpop.f32.mrf.mxu0
    %v2924 = vadd.f32 %v2715, %v2923
    %2925 = vmatmul.f32.gmra.mxu0 %v2814
    %v2926 = vpop.f32.mrf.mxu0
    %v2927 = vadd.f32 %v2718, %v2926
    %2928 = vmatmul.f32.gmra.mxu0 %v2817
    %v2929 = vpop.f32.mrf.mxu0
    %v2930 = vadd.f32 %v2721, %v2929
    %2931 = vmatmul.f32.gmra.mxu0 %v2820
    %v2932 = vpop.f32.mrf.mxu0
    %v2933 = vadd.f32 %v2724, %v2932
    %2934 = vmatmul.f32.gmra.mxu0 %v2823
    %v2935 = vpop.f32.mrf.mxu0
    %v2936 = vadd.f32 %v2727, %v2935
    %2937 = vmatmul.f32.gmra.mxu0 %v2826
    %v2938 = vpop.f32.mrf.mxu0
    %v2939 = vadd.f32 %v2730, %v2938
    %2940 = vmatmul.f32.gmra.mxu0 %v2829
    %v2941 = vpop.f32.mrf.mxu0
    %v2942 = vadd.f32 %v2733, %v2941
    %2943 = vmatmul.f32.gmra.mxu0 %v2832
    %v2944 = vpop.f32.mrf.mxu0
    %v2945 = vadd.f32 %v2736, %v2944
    %2946 = vmatmul.f32.gmra.mxu0 %v2835
    %v2947 = vpop.f32.mrf.mxu0
    %v2948 = vadd.f32 %v2739, %v2947
    %2949 = vmatmul.f32.gmra.mxu0 %v2838
    %v2950 = vpop.f32.mrf.mxu0
    %v2951 = vadd.f32 %v2742, %v2950
    %2952 = vmatmul.f32.gmra.mxu0 %v2841
    %v2953 = vpop.f32.mrf.mxu0
    %v2954 = vadd.f32 %v2745, %v2953
    %2955 = vmatmul.f32.gmra.mxu0 %v2844
    %v2956 = vpop.f32.mrf.mxu0
    %v2957 = vadd.f32 %v2748, %v2956
    %2958 = vmatmul.f32.gmra.mxu0 %v2847
    %v2959 = vpop.f32.mrf.mxu0
    %v2960 = vadd.f32 %v2751, %v2959
    %2961 = vmatmul.f32.gmra.mxu0 %v2850
    %v2962 = vpop.f32.mrf.mxu0
    %v2963 = vadd.f32 %v2754, %v2962
    %2964 = vmatmul.f32.gmra.mxu0 %v2853
    %v2965 = vpop.f32.mrf.mxu0
    %v2966 = vadd.f32 %v2757, %v2965
    %2967 = vmatmul.f32.gmra.mxu0 %v2856
    %v2968 = vpop.f32.mrf.mxu0
    %v2969 = vadd.f32 %v2760, %v2968
    %2970 = vdwg.mxu0
    %v2971 = vmul.f32 %v2293, %v2293
    %v2972 = vmul.f32 %v2294, %v2294
    %v2973 = vmul.f32 %v2295, %v2295
    %v2974 = vmul.f32 %v2296, %v2296
    %vm2975 = vcmp.eq.f32.partialorder %v2277, 2.0
    %vm2976 = vcmp.eq.f32.partialorder %v2278, 2.0
    %vm2977 = vcmp.eq.f32.partialorder %v2279, 2.0
    %vm2978 = vcmp.eq.f32.partialorder %v2280, 2.0
    %vm2979 = vcmp.eq.f32.partialorder %v2281, 2.0
    %vm2980 = vcmp.eq.f32.partialorder %v2282, 2.0
    %vm2981 = vcmp.eq.f32.partialorder %v2283, 2.0
    %vm2982 = vcmp.eq.f32.partialorder %v2284, 2.0
    %vm2983 = vcmp.eq.f32.partialorder %v2285, 2.0
    %vm2984 = vcmp.eq.f32.partialorder %v2286, 2.0
    %vm2985 = vcmp.eq.f32.partialorder %v2287, 2.0
    %vm2986 = vcmp.eq.f32.partialorder %v2288, 2.0
    %vm2987 = vcmp.eq.f32.partialorder %v2289, 2.0
    %vm2988 = vcmp.eq.f32.partialorder %v2290, 2.0
    %vm2989 = vcmp.eq.f32.partialorder %v2291, 2.0
    %vm2990 = vcmp.eq.f32.partialorder %v2292, 2.0
    %v2991 = vsel %vm2975, 1, 0
    %v2992 = vsel %vm2976, 1, 0
    %v2993 = vsel %vm2977, 1, 0
    %v2994 = vsel %vm2978, 1, 0
    %v2995 = vsel %vm2979, 1, 0
    %v2996 = vsel %vm2980, 1, 0
    %v2997 = vsel %vm2981, 1, 0
    %v2998 = vsel %vm2982, 1, 0
    %v2999 = vsel %vm2983, 1, 0
    %v3000 = vsel %vm2984, 1, 0
    %v3001 = vsel %vm2985, 1, 0
    %v3002 = vsel %vm2986, 1, 0
    %v3003 = vsel %vm2987, 1, 0
    %v3004 = vsel %vm2988, 1, 0
    %v3005 = vsel %vm2989, 1, 0
    %v3006 = vsel %vm2990, 1, 0
    %3007 = vset.pattern.permute.xlu0 0
    %3008 = vperm.xlu0 %3007, %v2991
    %v3009 = vpop.permute.xlu0 %3008
    %3010 = vset.pattern.permute.xlu0 0
    %3011 = vperm.xlu0 %3010, %v2992
    %v3012 = vpop.permute.xlu0 %3011
    %3013 = vset.pattern.permute.xlu0 0
    %3014 = vperm.xlu0 %3013, %v2993
    %v3015 = vpop.permute.xlu0 %3014
    %3016 = vset.pattern.permute.xlu0 0
    %3017 = vperm.xlu0 %3016, %v2994
    %v3018 = vpop.permute.xlu0 %3017
    %3019 = vset.pattern.permute.xlu0 0
    %3020 = vperm.xlu0 %3019, %v2995
    %v3021 = vpop.permute.xlu0 %3020
    %3022 = vset.pattern.permute.xlu0 0
    %3023 = vperm.xlu0 %3022, %v2996
    %v3024 = vpop.permute.xlu0 %3023
    %3025 = vset.pattern.permute.xlu0 0
    %3026 = vperm.xlu0 %3025, %v2997
    %v3027 = vpop.permute.xlu0 %3026
    %3028 = vset.pattern.permute.xlu0 0
    %3029 = vperm.xlu0 %3028, %v2998
    %v3030 = vpop.permute.xlu0 %3029
    %3031 = vset.pattern.permute.xlu0 0
    %3032 = vperm.xlu0 %3031, %v2999
    %v3033 = vpop.permute.xlu0 %3032
    %3034 = vset.pattern.permute.xlu0 0
    %3035 = vperm.xlu0 %3034, %v3000
    %v3036 = vpop.permute.xlu0 %3035
    %3037 = vset.pattern.permute.xlu0 0
    %3038 = vperm.xlu0 %3037, %v3001
    %v3039 = vpop.permute.xlu0 %3038
    %3040 = vset.pattern.permute.xlu0 0
    %3041 = vperm.xlu0 %3040, %v3002
    %v3042 = vpop.permute.xlu0 %3041
    %3043 = vset.pattern.permute.xlu0 0
    %3044 = vperm.xlu0 %3043, %v3003
    %v3045 = vpop.permute.xlu0 %3044
    %3046 = vset.pattern.permute.xlu0 0
    %3047 = vperm.xlu0 %3046, %v3004
    %v3048 = vpop.permute.xlu0 %3047
    %3049 = vset.pattern.permute.xlu0 0
    %3050 = vperm.xlu0 %3049, %v3005
    %v3051 = vpop.permute.xlu0 %3050
    %3052 = vset.pattern.permute.xlu0 0
    %3053 = vperm.xlu0 %3052, %v3006
    %v3054 = vpop.permute.xlu0 %3053
    %vm3055 = vcmp.eq.s32.totalorder %v3009, 1
    %vm3056 = vcmp.eq.s32.totalorder %v3012, 1
    %vm3057 = vcmp.eq.s32.totalorder %v3015, 1
    %vm3058 = vcmp.eq.s32.totalorder %v3018, 1
    %vm3059 = vcmp.eq.s32.totalorder %v3021, 1
    %vm3060 = vcmp.eq.s32.totalorder %v3024, 1
    %vm3061 = vcmp.eq.s32.totalorder %v3027, 1
    %vm3062 = vcmp.eq.s32.totalorder %v3030, 1
    %vm3063 = vcmp.eq.s32.totalorder %v3033, 1
    %vm3064 = vcmp.eq.s32.totalorder %v3036, 1
    %vm3065 = vcmp.eq.s32.totalorder %v3039, 1
    %vm3066 = vcmp.eq.s32.totalorder %v3042, 1
    %vm3067 = vcmp.eq.s32.totalorder %v3045, 1
    %vm3068 = vcmp.eq.s32.totalorder %v3048, 1
    %vm3069 = vcmp.eq.s32.totalorder %v3051, 1
    %vm3070 = vcmp.eq.s32.totalorder %v3054, 1
    %v3071 = vsel %vm3055, %v1989, 0.0
    %v3072 = vsel %vm3056, %v1990, 0.0
    %v3073 = vsel %vm3057, %v1991, 0.0
    %v3074 = vsel %vm3058, %v1992, 0.0
    %v3075 = vsel %vm3059, %v1993, 0.0
    %v3076 = vsel %vm3060, %v1994, 0.0
    %v3077 = vsel %vm3061, %v1995, 0.0
    %v3078 = vsel %vm3062, %v1996, 0.0
    %v3079 = vsel %vm3063, %v1997, 0.0
    %v3080 = vsel %vm3064, %v1998, 0.0
    %v3081 = vsel %vm3065, %v1999, 0.0
    %v3082 = vsel %vm3066, %v2000, 0.0
    %v3083 = vsel %vm3067, %v2001, 0.0
    %v3084 = vsel %vm3068, %v2002, 0.0
    %v3085 = vsel %vm3069, %v2003, 0.0
    %v3086 = vsel %vm3070, %v2004, 0.0
    %v3087 = vsel %vm3055, %v2261, 0.0
    %v3088 = vsel %vm3056, %v2262, 0.0
    %v3089 = vsel %vm3057, %v2263, 0.0
    %v3090 = vsel %vm3058, %v2264, 0.0
    %v3091 = vsel %vm3059, %v2265, 0.0
    %v3092 = vsel %vm3060, %v2266, 0.0
    %v3093 = vsel %vm3061, %v2267, 0.0
    %v3094 = vsel %vm3062, %v2268, 0.0
    %v3095 = vsel %vm3063, %v2269, 0.0
    %v3096 = vsel %vm3064, %v2270, 0.0
    %v3097 = vsel %vm3065, %v2271, 0.0
    %v3098 = vsel %vm3066, %v2272, 0.0
    %v3099 = vsel %vm3067, %v2273, 0.0
    %v3100 = vsel %vm3068, %v2274, 0.0
    %v3101 = vsel %vm3069, %v2275, 0.0
    %v3102 = vsel %vm3070, %v2276, 0.0
    %v3104 = vsel %vm68, %v3071, 0
    %v3107 = vsel %vm68, %v3072, 0
    %v3110 = vsel %vm68, %v3073, 0
    %v3113 = vsel %vm68, %v3074, 0
    %v3116 = vsel %vm68, %v3075, 0
    %v3119 = vsel %vm68, %v3076, 0
    %v3122 = vsel %vm68, %v3077, 0
    %v3125 = vsel %vm68, %v3078, 0
    %v3128 = vsel %vm68, %v3079, 0
    %v3131 = vsel %vm68, %v3080, 0
    %v3134 = vsel %vm68, %v3081, 0
    %v3137 = vsel %vm68, %v3082, 0
    %v3140 = vsel %vm68, %v3083, 0
    %v3143 = vsel %vm68, %v3084, 0
    %v3146 = vsel %vm68, %v3085, 0
    %v3149 = vsel %vm68, %v3086, 0
    %v3152 = vsel %vm68, %v3087, 0
    %v3155 = vsel %vm68, %v3088, 0
    %v3158 = vsel %vm68, %v3089, 0
    %v3161 = vsel %vm68, %v3090, 0
    %v3164 = vsel %vm68, %v3091, 0
    %v3167 = vsel %vm68, %v3092, 0
    %v3170 = vsel %vm68, %v3093, 0
    %v3173 = vsel %vm68, %v3094, 0
    %v3176 = vsel %vm68, %v3095, 0
    %v3179 = vsel %vm68, %v3096, 0
    %v3182 = vsel %vm68, %v3097, 0
    %v3185 = vsel %vm68, %v3098, 0
    %v3188 = vsel %vm68, %v3099, 0
    %v3191 = vsel %vm68, %v3100, 0
    %v3194 = vsel %vm68, %v3101, 0
    %v3197 = vsel %vm68, %v3102, 0
    %3199 = vmatpush.msra.mxu0 0.0
    %3200 = vmatpush.msra.mxu0 0.0
    %3201 = vmatpush.msra.mxu0 0.0
    %3202 = vmatpush.msra.mxu0 0.0
    %3203 = vmatpush.msra.mxu0 0.0
    %3204 = vmatpush.msra.mxu0 0.0
    %3205 = vmatpush.msra.mxu0 0.0
    %3206 = vmatpush.msra.mxu0 0.0
    %3207 = vmatpush.msra.mxu0 0.0
    %3208 = vmatpush.msra.mxu0 0.0
    %3209 = vmatpush.msra.mxu0 0.0
    %3210 = vmatpush.msra.mxu0 0.0
    %3211 = vmatpush.msra.mxu0 %v2974
    %3212 = vmatpush.msra.mxu0 %v2973
    %3213 = vmatpush.msra.mxu0 %v2972
    %3214 = vmatpush.msra.mxu0 %v2971
    %3215 = vmatmul.f32.gmra.mxu0 %v3104
    %v3216 = vpop.f32.mrf.mxu0
    %v3217 = vadd.f32 0.0, %v3216
    %3218 = vmatmul.f32.gmra.mxu0 %v3107
    %v3219 = vpop.f32.mrf.mxu0
    %v3220 = vadd.f32 0.0, %v3219
    %3221 = vmatmul.f32.gmra.mxu0 %v3110
    %v3222 = vpop.f32.mrf.mxu0
    %v3223 = vadd.f32 0.0, %v3222
    %3224 = vmatmul.f32.gmra.mxu0 %v3113
    %v3225 = vpop.f32.mrf.mxu0
    %v3226 = vadd.f32 0.0, %v3225
    %3227 = vmatmul.f32.gmra.mxu0 %v3116
    %v3228 = vpop.f32.mrf.mxu0
    %v3229 = vadd.f32 0.0, %v3228
    %3230 = vmatmul.f32.gmra.mxu0 %v3119
    %v3231 = vpop.f32.mrf.mxu0
    %v3232 = vadd.f32 0.0, %v3231
    %3233 = vmatmul.f32.gmra.mxu0 %v3122
    %v3234 = vpop.f32.mrf.mxu0
    %v3235 = vadd.f32 0.0, %v3234
    %3236 = vmatmul.f32.gmra.mxu0 %v3125
    %v3237 = vpop.f32.mrf.mxu0
    %v3238 = vadd.f32 0.0, %v3237
    %3239 = vmatmul.f32.gmra.mxu0 %v3128
    %v3240 = vpop.f32.mrf.mxu0
    %v3241 = vadd.f32 0.0, %v3240
    %3242 = vmatmul.f32.gmra.mxu0 %v3131
    %v3243 = vpop.f32.mrf.mxu0
    %v3244 = vadd.f32 0.0, %v3243
    %3245 = vmatmul.f32.gmra.mxu0 %v3134
    %v3246 = vpop.f32.mrf.mxu0
    %v3247 = vadd.f32 0.0, %v3246
    %3248 = vmatmul.f32.gmra.mxu0 %v3137
    %v3249 = vpop.f32.mrf.mxu0
    %v3250 = vadd.f32 0.0, %v3249
    %3251 = vmatmul.f32.gmra.mxu0 %v3140
    %v3252 = vpop.f32.mrf.mxu0
    %v3253 = vadd.f32 0.0, %v3252
    %3254 = vmatmul.f32.gmra.mxu0 %v3143
    %v3255 = vpop.f32.mrf.mxu0
    %v3256 = vadd.f32 0.0, %v3255
    %3257 = vmatmul.f32.gmra.mxu0 %v3146
    %v3258 = vpop.f32.mrf.mxu0
    %v3259 = vadd.f32 0.0, %v3258
    %3260 = vmatmul.f32.gmra.mxu0 %v3149
    %v3261 = vpop.f32.mrf.mxu0
    %v3262 = vadd.f32 0.0, %v3261
    %3263 = vmatmul.f32.gmra.mxu0 %v3152
    %v3264 = vpop.f32.mrf.mxu0
    %v3265 = vadd.f32 0.0, %v3264
    %3266 = vmatmul.f32.gmra.mxu0 %v3155
    %v3267 = vpop.f32.mrf.mxu0
    %v3268 = vadd.f32 0.0, %v3267
    %3269 = vmatmul.f32.gmra.mxu0 %v3158
    %v3270 = vpop.f32.mrf.mxu0
    %v3271 = vadd.f32 0.0, %v3270
    %3272 = vmatmul.f32.gmra.mxu0 %v3161
    %v3273 = vpop.f32.mrf.mxu0
    %v3274 = vadd.f32 0.0, %v3273
    %3275 = vmatmul.f32.gmra.mxu0 %v3164
    %v3276 = vpop.f32.mrf.mxu0
    %v3277 = vadd.f32 0.0, %v3276
    %3278 = vmatmul.f32.gmra.mxu0 %v3167
    %v3279 = vpop.f32.mrf.mxu0
    %v3280 = vadd.f32 0.0, %v3279
    %3281 = vmatmul.f32.gmra.mxu0 %v3170
    %v3282 = vpop.f32.mrf.mxu0
    %v3283 = vadd.f32 0.0, %v3282
    %3284 = vmatmul.f32.gmra.mxu0 %v3173
    %v3285 = vpop.f32.mrf.mxu0
    %v3286 = vadd.f32 0.0, %v3285
    %3287 = vmatmul.f32.gmra.mxu0 %v3176
    %v3288 = vpop.f32.mrf.mxu0
    %v3289 = vadd.f32 0.0, %v3288
    %3290 = vmatmul.f32.gmra.mxu0 %v3179
    %v3291 = vpop.f32.mrf.mxu0
    %v3292 = vadd.f32 0.0, %v3291
    %3293 = vmatmul.f32.gmra.mxu0 %v3182
    %v3294 = vpop.f32.mrf.mxu0
    %v3295 = vadd.f32 0.0, %v3294
    %3296 = vmatmul.f32.gmra.mxu0 %v3185
    %v3297 = vpop.f32.mrf.mxu0
    %v3298 = vadd.f32 0.0, %v3297
    %3299 = vmatmul.f32.gmra.mxu0 %v3188
    %v3300 = vpop.f32.mrf.mxu0
    %v3301 = vadd.f32 0.0, %v3300
    %3302 = vmatmul.f32.gmra.mxu0 %v3191
    %v3303 = vpop.f32.mrf.mxu0
    %v3304 = vadd.f32 0.0, %v3303
    %3305 = vmatmul.f32.gmra.mxu0 %v3194
    %v3306 = vpop.f32.mrf.mxu0
    %v3307 = vadd.f32 0.0, %v3306
    %3308 = vmatmul.f32.gmra.mxu0 %v3197
    %v3309 = vpop.f32.mrf.mxu0
    %v3310 = vadd.f32 0.0, %v3309
    %3311 = vdwg.mxu0
    %v3312 = vadd.f32 %v2876, %v3217
    %v3313 = vadd.f32 %v2879, %v3220
    %v3314 = vadd.f32 %v2882, %v3223
    %v3315 = vadd.f32 %v2885, %v3226
    %v3316 = vadd.f32 %v2888, %v3229
    %v3317 = vadd.f32 %v2891, %v3232
    %v3318 = vadd.f32 %v2894, %v3235
    %v3319 = vadd.f32 %v2897, %v3238
    %v3320 = vadd.f32 %v2900, %v3241
    %v3321 = vadd.f32 %v2903, %v3244
    %v3322 = vadd.f32 %v2906, %v3247
    %v3323 = vadd.f32 %v2909, %v3250
    %v3324 = vadd.f32 %v2912, %v3253
    %v3325 = vadd.f32 %v2915, %v3256
    %v3326 = vadd.f32 %v2918, %v3259
    %v3327 = vadd.f32 %v2921, %v3262
    %v3328 = vadd.f32 %v2924, %v3265
    %v3329 = vadd.f32 %v2927, %v3268
    %v3330 = vadd.f32 %v2930, %v3271
    %v3331 = vadd.f32 %v2933, %v3274
    %v3332 = vadd.f32 %v2936, %v3277
    %v3333 = vadd.f32 %v2939, %v3280
    %v3334 = vadd.f32 %v2942, %v3283
    %v3335 = vadd.f32 %v2945, %v3286
    %v3336 = vadd.f32 %v2948, %v3289
    %v3337 = vadd.f32 %v2951, %v3292
    %v3338 = vadd.f32 %v2954, %v3295
    %v3339 = vadd.f32 %v2957, %v3298
    %v3340 = vadd.f32 %v2960, %v3301
    %v3341 = vadd.f32 %v2963, %v3304
    %v3342 = vadd.f32 %v2966, %v3307
    %v3343 = vadd.f32 %v2969, %v3310
    %v3344 = vmul.f32 %v2971, %v2293
    %v3345 = vmul.f32 %v2972, %v2294
    %v3346 = vmul.f32 %v2973, %v2295
    %v3347 = vmul.f32 %v2974, %v2296
    %vm3348 = vcmp.eq.f32.partialorder %v2277, 3.0
    %vm3349 = vcmp.eq.f32.partialorder %v2278, 3.0
    %vm3350 = vcmp.eq.f32.partialorder %v2279, 3.0
    %vm3351 = vcmp.eq.f32.partialorder %v2280, 3.0
    %vm3352 = vcmp.eq.f32.partialorder %v2281, 3.0
    %vm3353 = vcmp.eq.f32.partialorder %v2282, 3.0
    %vm3354 = vcmp.eq.f32.partialorder %v2283, 3.0
    %vm3355 = vcmp.eq.f32.partialorder %v2284, 3.0
    %vm3356 = vcmp.eq.f32.partialorder %v2285, 3.0
    %vm3357 = vcmp.eq.f32.partialorder %v2286, 3.0
    %vm3358 = vcmp.eq.f32.partialorder %v2287, 3.0
    %vm3359 = vcmp.eq.f32.partialorder %v2288, 3.0
    %vm3360 = vcmp.eq.f32.partialorder %v2289, 3.0
    %vm3361 = vcmp.eq.f32.partialorder %v2290, 3.0
    %vm3362 = vcmp.eq.f32.partialorder %v2291, 3.0
    %vm3363 = vcmp.eq.f32.partialorder %v2292, 3.0
    %v3364 = vsel %vm3348, 1, 0
    %v3365 = vsel %vm3349, 1, 0
    %v3366 = vsel %vm3350, 1, 0
    %v3367 = vsel %vm3351, 1, 0
    %v3368 = vsel %vm3352, 1, 0
    %v3369 = vsel %vm3353, 1, 0
    %v3370 = vsel %vm3354, 1, 0
    %v3371 = vsel %vm3355, 1, 0
    %v3372 = vsel %vm3356, 1, 0
    %v3373 = vsel %vm3357, 1, 0
    %v3374 = vsel %vm3358, 1, 0
    %v3375 = vsel %vm3359, 1, 0
    %v3376 = vsel %vm3360, 1, 0
    %v3377 = vsel %vm3361, 1, 0
    %v3378 = vsel %vm3362, 1, 0
    %v3379 = vsel %vm3363, 1, 0
    %3380 = vset.pattern.permute.xlu0 0
    %3381 = vperm.xlu0 %3380, %v3364
    %v3382 = vpop.permute.xlu0 %3381
    %3383 = vset.pattern.permute.xlu0 0
    %3384 = vperm.xlu0 %3383, %v3365
    %v3385 = vpop.permute.xlu0 %3384
    %3386 = vset.pattern.permute.xlu0 0
    %3387 = vperm.xlu0 %3386, %v3366
    %v3388 = vpop.permute.xlu0 %3387
    %3389 = vset.pattern.permute.xlu0 0
    %3390 = vperm.xlu0 %3389, %v3367
    %v3391 = vpop.permute.xlu0 %3390
    %3392 = vset.pattern.permute.xlu0 0
    %3393 = vperm.xlu0 %3392, %v3368
    %v3394 = vpop.permute.xlu0 %3393
    %3395 = vset.pattern.permute.xlu0 0
    %3396 = vperm.xlu0 %3395, %v3369
    %v3397 = vpop.permute.xlu0 %3396
    %3398 = vset.pattern.permute.xlu0 0
    %3399 = vperm.xlu0 %3398, %v3370
    %v3400 = vpop.permute.xlu0 %3399
    %3401 = vset.pattern.permute.xlu0 0
    %3402 = vperm.xlu0 %3401, %v3371
    %v3403 = vpop.permute.xlu0 %3402
    %3404 = vset.pattern.permute.xlu0 0
    %3405 = vperm.xlu0 %3404, %v3372
    %v3406 = vpop.permute.xlu0 %3405
    %3407 = vset.pattern.permute.xlu0 0
    %3408 = vperm.xlu0 %3407, %v3373
    %v3409 = vpop.permute.xlu0 %3408
    %3410 = vset.pattern.permute.xlu0 0
    %3411 = vperm.xlu0 %3410, %v3374
    %v3412 = vpop.permute.xlu0 %3411
    %3413 = vset.pattern.permute.xlu0 0
    %3414 = vperm.xlu0 %3413, %v3375
    %v3415 = vpop.permute.xlu0 %3414
    %3416 = vset.pattern.permute.xlu0 0
    %3417 = vperm.xlu0 %3416, %v3376
    %v3418 = vpop.permute.xlu0 %3417
    %3419 = vset.pattern.permute.xlu0 0
    %3420 = vperm.xlu0 %3419, %v3377
    %v3421 = vpop.permute.xlu0 %3420
    %3422 = vset.pattern.permute.xlu0 0
    %3423 = vperm.xlu0 %3422, %v3378
    %v3424 = vpop.permute.xlu0 %3423
    %3425 = vset.pattern.permute.xlu0 0
    %3426 = vperm.xlu0 %3425, %v3379
    %v3427 = vpop.permute.xlu0 %3426
    %vm3428 = vcmp.eq.s32.totalorder %v3382, 1
    %vm3429 = vcmp.eq.s32.totalorder %v3385, 1
    %vm3430 = vcmp.eq.s32.totalorder %v3388, 1
    %vm3431 = vcmp.eq.s32.totalorder %v3391, 1
    %vm3432 = vcmp.eq.s32.totalorder %v3394, 1
    %vm3433 = vcmp.eq.s32.totalorder %v3397, 1
    %vm3434 = vcmp.eq.s32.totalorder %v3400, 1
    %vm3435 = vcmp.eq.s32.totalorder %v3403, 1
    %vm3436 = vcmp.eq.s32.totalorder %v3406, 1
    %vm3437 = vcmp.eq.s32.totalorder %v3409, 1
    %vm3438 = vcmp.eq.s32.totalorder %v3412, 1
    %vm3439 = vcmp.eq.s32.totalorder %v3415, 1
    %vm3440 = vcmp.eq.s32.totalorder %v3418, 1
    %vm3441 = vcmp.eq.s32.totalorder %v3421, 1
    %vm3442 = vcmp.eq.s32.totalorder %v3424, 1
    %vm3443 = vcmp.eq.s32.totalorder %v3427, 1
    %v3444 = vsel %vm3428, %v1989, 0.0
    %v3445 = vsel %vm3429, %v1990, 0.0
    %v3446 = vsel %vm3430, %v1991, 0.0
    %v3447 = vsel %vm3431, %v1992, 0.0
    %v3448 = vsel %vm3432, %v1993, 0.0
    %v3449 = vsel %vm3433, %v1994, 0.0
    %v3450 = vsel %vm3434, %v1995, 0.0
    %v3451 = vsel %vm3435, %v1996, 0.0
    %v3452 = vsel %vm3436, %v1997, 0.0
    %v3453 = vsel %vm3437, %v1998, 0.0
    %v3454 = vsel %vm3438, %v1999, 0.0
    %v3455 = vsel %vm3439, %v2000, 0.0
    %v3456 = vsel %vm3440, %v2001, 0.0
    %v3457 = vsel %vm3441, %v2002, 0.0
    %v3458 = vsel %vm3442, %v2003, 0.0
    %v3459 = vsel %vm3443, %v2004, 0.0
    %v3460 = vsel %vm3428, %v2261, 0.0
    %v3461 = vsel %vm3429, %v2262, 0.0
    %v3462 = vsel %vm3430, %v2263, 0.0
    %v3463 = vsel %vm3431, %v2264, 0.0
    %v3464 = vsel %vm3432, %v2265, 0.0
    %v3465 = vsel %vm3433, %v2266, 0.0
    %v3466 = vsel %vm3434, %v2267, 0.0
    %v3467 = vsel %vm3435, %v2268, 0.0
    %v3468 = vsel %vm3436, %v2269, 0.0
    %v3469 = vsel %vm3437, %v2270, 0.0
    %v3470 = vsel %vm3438, %v2271, 0.0
    %v3471 = vsel %vm3439, %v2272, 0.0
    %v3472 = vsel %vm3440, %v2273, 0.0
    %v3473 = vsel %vm3441, %v2274, 0.0
    %v3474 = vsel %vm3442, %v2275, 0.0
    %v3475 = vsel %vm3443, %v2276, 0.0
    %v3477 = vsel %vm68, %v3444, 0
    %v3480 = vsel %vm68, %v3445, 0
    %v3483 = vsel %vm68, %v3446, 0
    %v3486 = vsel %vm68, %v3447, 0
    %v3489 = vsel %vm68, %v3448, 0
    %v3492 = vsel %vm68, %v3449, 0
    %v3495 = vsel %vm68, %v3450, 0
    %v3498 = vsel %vm68, %v3451, 0
    %v3501 = vsel %vm68, %v3452, 0
    %v3504 = vsel %vm68, %v3453, 0
    %v3507 = vsel %vm68, %v3454, 0
    %v3510 = vsel %vm68, %v3455, 0
    %v3513 = vsel %vm68, %v3456, 0
    %v3516 = vsel %vm68, %v3457, 0
    %v3519 = vsel %vm68, %v3458, 0
    %v3522 = vsel %vm68, %v3459, 0
    %v3525 = vsel %vm68, %v3460, 0
    %v3528 = vsel %vm68, %v3461, 0
    %v3531 = vsel %vm68, %v3462, 0
    %v3534 = vsel %vm68, %v3463, 0
    %v3537 = vsel %vm68, %v3464, 0
    %v3540 = vsel %vm68, %v3465, 0
    %v3543 = vsel %vm68, %v3466, 0
    %v3546 = vsel %vm68, %v3467, 0
    %v3549 = vsel %vm68, %v3468, 0
    %v3552 = vsel %vm68, %v3469, 0
    %v3555 = vsel %vm68, %v3470, 0
    %v3558 = vsel %vm68, %v3471, 0
    %v3561 = vsel %vm68, %v3472, 0
    %v3564 = vsel %vm68, %v3473, 0
    %v3567 = vsel %vm68, %v3474, 0
    %v3570 = vsel %vm68, %v3475, 0
    %3572 = vmatpush.msra.mxu0 0.0
    %3573 = vmatpush.msra.mxu0 0.0
    %3574 = vmatpush.msra.mxu0 0.0
    %3575 = vmatpush.msra.mxu0 0.0
    %3576 = vmatpush.msra.mxu0 0.0
    %3577 = vmatpush.msra.mxu0 0.0
    %3578 = vmatpush.msra.mxu0 0.0
    %3579 = vmatpush.msra.mxu0 0.0
    %3580 = vmatpush.msra.mxu0 0.0
    %3581 = vmatpush.msra.mxu0 0.0
    %3582 = vmatpush.msra.mxu0 0.0
    %3583 = vmatpush.msra.mxu0 0.0
    %3584 = vmatpush.msra.mxu0 %v3347
    %3585 = vmatpush.msra.mxu0 %v3346
    %3586 = vmatpush.msra.mxu0 %v3345
    %3587 = vmatpush.msra.mxu0 %v3344
    %3588 = vmatmul.f32.gmra.mxu0 %v3477
    %v3589 = vpop.f32.mrf.mxu0
    %v3590 = vadd.f32 0.0, %v3589
    %3591 = vmatmul.f32.gmra.mxu0 %v3480
    %v3592 = vpop.f32.mrf.mxu0
    %v3593 = vadd.f32 0.0, %v3592
    %3594 = vmatmul.f32.gmra.mxu0 %v3483
    %v3595 = vpop.f32.mrf.mxu0
    %v3596 = vadd.f32 0.0, %v3595
    %3597 = vmatmul.f32.gmra.mxu0 %v3486
    %v3598 = vpop.f32.mrf.mxu0
    %v3599 = vadd.f32 0.0, %v3598
    %3600 = vmatmul.f32.gmra.mxu0 %v3489
    %v3601 = vpop.f32.mrf.mxu0
    %v3602 = vadd.f32 0.0, %v3601
    %3603 = vmatmul.f32.gmra.mxu0 %v3492
    %v3604 = vpop.f32.mrf.mxu0
    %v3605 = vadd.f32 0.0, %v3604
    %3606 = vmatmul.f32.gmra.mxu0 %v3495
    %v3607 = vpop.f32.mrf.mxu0
    %v3608 = vadd.f32 0.0, %v3607
    %3609 = vmatmul.f32.gmra.mxu0 %v3498
    %v3610 = vpop.f32.mrf.mxu0
    %v3611 = vadd.f32 0.0, %v3610
    %3612 = vmatmul.f32.gmra.mxu0 %v3501
    %v3613 = vpop.f32.mrf.mxu0
    %v3614 = vadd.f32 0.0, %v3613
    %3615 = vmatmul.f32.gmra.mxu0 %v3504
    %v3616 = vpop.f32.mrf.mxu0
    %v3617 = vadd.f32 0.0, %v3616
    %3618 = vmatmul.f32.gmra.mxu0 %v3507
    %v3619 = vpop.f32.mrf.mxu0
    %v3620 = vadd.f32 0.0, %v3619
    %3621 = vmatmul.f32.gmra.mxu0 %v3510
    %v3622 = vpop.f32.mrf.mxu0
    %v3623 = vadd.f32 0.0, %v3622
    %3624 = vmatmul.f32.gmra.mxu0 %v3513
    %v3625 = vpop.f32.mrf.mxu0
    %v3626 = vadd.f32 0.0, %v3625
    %3627 = vmatmul.f32.gmra.mxu0 %v3516
    %v3628 = vpop.f32.mrf.mxu0
    %v3629 = vadd.f32 0.0, %v3628
    %3630 = vmatmul.f32.gmra.mxu0 %v3519
    %v3631 = vpop.f32.mrf.mxu0
    %v3632 = vadd.f32 0.0, %v3631
    %3633 = vmatmul.f32.gmra.mxu0 %v3522
    %v3634 = vpop.f32.mrf.mxu0
    %v3635 = vadd.f32 0.0, %v3634
    %3636 = vmatmul.f32.gmra.mxu0 %v3525
    %v3637 = vpop.f32.mrf.mxu0
    %v3638 = vadd.f32 0.0, %v3637
    %3639 = vmatmul.f32.gmra.mxu0 %v3528
    %v3640 = vpop.f32.mrf.mxu0
    %v3641 = vadd.f32 0.0, %v3640
    %3642 = vmatmul.f32.gmra.mxu0 %v3531
    %v3643 = vpop.f32.mrf.mxu0
    %v3644 = vadd.f32 0.0, %v3643
    %3645 = vmatmul.f32.gmra.mxu0 %v3534
    %v3646 = vpop.f32.mrf.mxu0
    %v3647 = vadd.f32 0.0, %v3646
    %3648 = vmatmul.f32.gmra.mxu0 %v3537
    %v3649 = vpop.f32.mrf.mxu0
    %v3650 = vadd.f32 0.0, %v3649
    %3651 = vmatmul.f32.gmra.mxu0 %v3540
    %v3652 = vpop.f32.mrf.mxu0
    %v3653 = vadd.f32 0.0, %v3652
    %3654 = vmatmul.f32.gmra.mxu0 %v3543
    %v3655 = vpop.f32.mrf.mxu0
    %v3656 = vadd.f32 0.0, %v3655
    %3657 = vmatmul.f32.gmra.mxu0 %v3546
    %v3658 = vpop.f32.mrf.mxu0
    %v3659 = vadd.f32 0.0, %v3658
    %3660 = vmatmul.f32.gmra.mxu0 %v3549
    %v3661 = vpop.f32.mrf.mxu0
    %v3662 = vadd.f32 0.0, %v3661
    %3663 = vmatmul.f32.gmra.mxu0 %v3552
    %v3664 = vpop.f32.mrf.mxu0
    %v3665 = vadd.f32 0.0, %v3664
    %3666 = vmatmul.f32.gmra.mxu0 %v3555
    %v3667 = vpop.f32.mrf.mxu0
    %v3668 = vadd.f32 0.0, %v3667
    %3669 = vmatmul.f32.gmra.mxu0 %v3558
    %v3670 = vpop.f32.mrf.mxu0
    %v3671 = vadd.f32 0.0, %v3670
    %3672 = vmatmul.f32.gmra.mxu0 %v3561
    %v3673 = vpop.f32.mrf.mxu0
    %v3674 = vadd.f32 0.0, %v3673
    %3675 = vmatmul.f32.gmra.mxu0 %v3564
    %v3676 = vpop.f32.mrf.mxu0
    %v3677 = vadd.f32 0.0, %v3676
    %3678 = vmatmul.f32.gmra.mxu0 %v3567
    %v3679 = vpop.f32.mrf.mxu0
    %v3680 = vadd.f32 0.0, %v3679
    %3681 = vmatmul.f32.gmra.mxu0 %v3570
    %v3682 = vpop.f32.mrf.mxu0
    %v3683 = vadd.f32 0.0, %v3682
    %3684 = vdwg.mxu0
    %v3685 = vadd.f32 %v3312, %v3590
    %v3686 = vadd.f32 %v3313, %v3593
    %v3687 = vadd.f32 %v3314, %v3596
    %v3688 = vadd.f32 %v3315, %v3599
    %v3689 = vadd.f32 %v3316, %v3602
    %v3690 = vadd.f32 %v3317, %v3605
    %v3691 = vadd.f32 %v3318, %v3608
    %v3692 = vadd.f32 %v3319, %v3611
    %v3693 = vadd.f32 %v3320, %v3614
    %v3694 = vadd.f32 %v3321, %v3617
    %v3695 = vadd.f32 %v3322, %v3620
    %v3696 = vadd.f32 %v3323, %v3623
    %v3697 = vadd.f32 %v3324, %v3626
    %v3698 = vadd.f32 %v3325, %v3629
    %v3699 = vadd.f32 %v3326, %v3632
    %v3700 = vadd.f32 %v3327, %v3635
    %v3701 = vadd.f32 %v3328, %v3638
    %v3702 = vadd.f32 %v3329, %v3641
    %v3703 = vadd.f32 %v3330, %v3644
    %v3704 = vadd.f32 %v3331, %v3647
    %v3705 = vadd.f32 %v3332, %v3650
    %v3706 = vadd.f32 %v3333, %v3653
    %v3707 = vadd.f32 %v3334, %v3656
    %v3708 = vadd.f32 %v3335, %v3659
    %v3709 = vadd.f32 %v3336, %v3662
    %v3710 = vadd.f32 %v3337, %v3665
    %v3711 = vadd.f32 %v3338, %v3668
    %v3712 = vadd.f32 %v3339, %v3671
    %v3713 = vadd.f32 %v3340, %v3674
    %v3714 = vadd.f32 %v3341, %v3677
    %v3715 = vadd.f32 %v3342, %v3680
    %v3716 = vadd.f32 %v3343, %v3683
    %v3717 = vmul.f32 %v3344, %v2293
    %v3718 = vmul.f32 %v3345, %v2294
    %v3719 = vmul.f32 %v3346, %v2295
    %v3720 = vmul.f32 %v3347, %v2296
    %vm3721 = vcmp.eq.f32.partialorder %v2277, 4.0
    %vm3722 = vcmp.eq.f32.partialorder %v2278, 4.0
    %vm3723 = vcmp.eq.f32.partialorder %v2279, 4.0
    %vm3724 = vcmp.eq.f32.partialorder %v2280, 4.0
    %vm3725 = vcmp.eq.f32.partialorder %v2281, 4.0
    %vm3726 = vcmp.eq.f32.partialorder %v2282, 4.0
    %vm3727 = vcmp.eq.f32.partialorder %v2283, 4.0
    %vm3728 = vcmp.eq.f32.partialorder %v2284, 4.0
    %vm3729 = vcmp.eq.f32.partialorder %v2285, 4.0
    %vm3730 = vcmp.eq.f32.partialorder %v2286, 4.0
    %vm3731 = vcmp.eq.f32.partialorder %v2287, 4.0
    %vm3732 = vcmp.eq.f32.partialorder %v2288, 4.0
    %vm3733 = vcmp.eq.f32.partialorder %v2289, 4.0
    %vm3734 = vcmp.eq.f32.partialorder %v2290, 4.0
    %vm3735 = vcmp.eq.f32.partialorder %v2291, 4.0
    %vm3736 = vcmp.eq.f32.partialorder %v2292, 4.0
    %v3737 = vsel %vm3721, 1, 0
    %v3738 = vsel %vm3722, 1, 0
    %v3739 = vsel %vm3723, 1, 0
    %v3740 = vsel %vm3724, 1, 0
    %v3741 = vsel %vm3725, 1, 0
    %v3742 = vsel %vm3726, 1, 0
    %v3743 = vsel %vm3727, 1, 0
    %v3744 = vsel %vm3728, 1, 0
    %v3745 = vsel %vm3729, 1, 0
    %v3746 = vsel %vm3730, 1, 0
    %v3747 = vsel %vm3731, 1, 0
    %v3748 = vsel %vm3732, 1, 0
    %v3749 = vsel %vm3733, 1, 0
    %v3750 = vsel %vm3734, 1, 0
    %v3751 = vsel %vm3735, 1, 0
    %v3752 = vsel %vm3736, 1, 0
    %3753 = vset.pattern.permute.xlu0 0
    %3754 = vperm.xlu0 %3753, %v3737
    %v3755 = vpop.permute.xlu0 %3754
    %3756 = vset.pattern.permute.xlu0 0
    %3757 = vperm.xlu0 %3756, %v3738
    %v3758 = vpop.permute.xlu0 %3757
    %3759 = vset.pattern.permute.xlu0 0
    %3760 = vperm.xlu0 %3759, %v3739
    %v3761 = vpop.permute.xlu0 %3760
    %3762 = vset.pattern.permute.xlu0 0
    %3763 = vperm.xlu0 %3762, %v3740
    %v3764 = vpop.permute.xlu0 %3763
    %3765 = vset.pattern.permute.xlu0 0
    %3766 = vperm.xlu0 %3765, %v3741
    %v3767 = vpop.permute.xlu0 %3766
    %3768 = vset.pattern.permute.xlu0 0
    %3769 = vperm.xlu0 %3768, %v3742
    %v3770 = vpop.permute.xlu0 %3769
    %3771 = vset.pattern.permute.xlu0 0
    %3772 = vperm.xlu0 %3771, %v3743
    %v3773 = vpop.permute.xlu0 %3772
    %3774 = vset.pattern.permute.xlu0 0
    %3775 = vperm.xlu0 %3774, %v3744
    %v3776 = vpop.permute.xlu0 %3775
    %3777 = vset.pattern.permute.xlu0 0
    %3778 = vperm.xlu0 %3777, %v3745
    %v3779 = vpop.permute.xlu0 %3778
    %3780 = vset.pattern.permute.xlu0 0
    %3781 = vperm.xlu0 %3780, %v3746
    %v3782 = vpop.permute.xlu0 %3781
    %3783 = vset.pattern.permute.xlu0 0
    %3784 = vperm.xlu0 %3783, %v3747
    %v3785 = vpop.permute.xlu0 %3784
    %3786 = vset.pattern.permute.xlu0 0
    %3787 = vperm.xlu0 %3786, %v3748
    %v3788 = vpop.permute.xlu0 %3787
    %3789 = vset.pattern.permute.xlu0 0
    %3790 = vperm.xlu0 %3789, %v3749
    %v3791 = vpop.permute.xlu0 %3790
    %3792 = vset.pattern.permute.xlu0 0
    %3793 = vperm.xlu0 %3792, %v3750
    %v3794 = vpop.permute.xlu0 %3793
    %3795 = vset.pattern.permute.xlu0 0
    %3796 = vperm.xlu0 %3795, %v3751
    %v3797 = vpop.permute.xlu0 %3796
    %3798 = vset.pattern.permute.xlu0 0
    %3799 = vperm.xlu0 %3798, %v3752
    %v3800 = vpop.permute.xlu0 %3799
    %vm3801 = vcmp.eq.s32.totalorder %v3755, 1
    %vm3802 = vcmp.eq.s32.totalorder %v3758, 1
    %vm3803 = vcmp.eq.s32.totalorder %v3761, 1
    %vm3804 = vcmp.eq.s32.totalorder %v3764, 1
    %vm3805 = vcmp.eq.s32.totalorder %v3767, 1
    %vm3806 = vcmp.eq.s32.totalorder %v3770, 1
    %vm3807 = vcmp.eq.s32.totalorder %v3773, 1
    %vm3808 = vcmp.eq.s32.totalorder %v3776, 1
    %vm3809 = vcmp.eq.s32.totalorder %v3779, 1
    %vm3810 = vcmp.eq.s32.totalorder %v3782, 1
    %vm3811 = vcmp.eq.s32.totalorder %v3785, 1
    %vm3812 = vcmp.eq.s32.totalorder %v3788, 1
    %vm3813 = vcmp.eq.s32.totalorder %v3791, 1
    %vm3814 = vcmp.eq.s32.totalorder %v3794, 1
    %vm3815 = vcmp.eq.s32.totalorder %v3797, 1
    %vm3816 = vcmp.eq.s32.totalorder %v3800, 1
    %v3817 = vsel %vm3801, %v1989, 0.0
    %v3818 = vsel %vm3802, %v1990, 0.0
    %v3819 = vsel %vm3803, %v1991, 0.0
    %v3820 = vsel %vm3804, %v1992, 0.0
    %v3821 = vsel %vm3805, %v1993, 0.0
    %v3822 = vsel %vm3806, %v1994, 0.0
    %v3823 = vsel %vm3807, %v1995, 0.0
    %v3824 = vsel %vm3808, %v1996, 0.0
    %v3825 = vsel %vm3809, %v1997, 0.0
    %v3826 = vsel %vm3810, %v1998, 0.0
    %v3827 = vsel %vm3811, %v1999, 0.0
    %v3828 = vsel %vm3812, %v2000, 0.0
    %v3829 = vsel %vm3813, %v2001, 0.0
    %v3830 = vsel %vm3814, %v2002, 0.0
    %v3831 = vsel %vm3815, %v2003, 0.0
    %v3832 = vsel %vm3816, %v2004, 0.0
    %v3833 = vsel %vm3801, %v2261, 0.0
    %v3834 = vsel %vm3802, %v2262, 0.0
    %v3835 = vsel %vm3803, %v2263, 0.0
    %v3836 = vsel %vm3804, %v2264, 0.0
    %v3837 = vsel %vm3805, %v2265, 0.0
    %v3838 = vsel %vm3806, %v2266, 0.0
    %v3839 = vsel %vm3807, %v2267, 0.0
    %v3840 = vsel %vm3808, %v2268, 0.0
    %v3841 = vsel %vm3809, %v2269, 0.0
    %v3842 = vsel %vm3810, %v2270, 0.0
    %v3843 = vsel %vm3811, %v2271, 0.0
    %v3844 = vsel %vm3812, %v2272, 0.0
    %v3845 = vsel %vm3813, %v2273, 0.0
    %v3846 = vsel %vm3814, %v2274, 0.0
    %v3847 = vsel %vm3815, %v2275, 0.0
    %v3848 = vsel %vm3816, %v2276, 0.0
    %v3850 = vsel %vm68, %v3817, 0
    %v3853 = vsel %vm68, %v3818, 0
    %v3856 = vsel %vm68, %v3819, 0
    %v3859 = vsel %vm68, %v3820, 0
    %v3862 = vsel %vm68, %v3821, 0
    %v3865 = vsel %vm68, %v3822, 0
    %v3868 = vsel %vm68, %v3823, 0
    %v3871 = vsel %vm68, %v3824, 0
    %v3874 = vsel %vm68, %v3825, 0
    %v3877 = vsel %vm68, %v3826, 0
    %v3880 = vsel %vm68, %v3827, 0
    %v3883 = vsel %vm68, %v3828, 0
    %v3886 = vsel %vm68, %v3829, 0
    %v3889 = vsel %vm68, %v3830, 0
    %v3892 = vsel %vm68, %v3831, 0
    %v3895 = vsel %vm68, %v3832, 0
    %v3898 = vsel %vm68, %v3833, 0
    %v3901 = vsel %vm68, %v3834, 0
    %v3904 = vsel %vm68, %v3835, 0
    %v3907 = vsel %vm68, %v3836, 0
    %v3910 = vsel %vm68, %v3837, 0
    %v3913 = vsel %vm68, %v3838, 0
    %v3916 = vsel %vm68, %v3839, 0
    %v3919 = vsel %vm68, %v3840, 0
    %v3922 = vsel %vm68, %v3841, 0
    %v3925 = vsel %vm68, %v3842, 0
    %v3928 = vsel %vm68, %v3843, 0
    %v3931 = vsel %vm68, %v3844, 0
    %v3934 = vsel %vm68, %v3845, 0
    %v3937 = vsel %vm68, %v3846, 0
    %v3940 = vsel %vm68, %v3847, 0
    %v3943 = vsel %vm68, %v3848, 0
    %3945 = vmatpush.msra.mxu0 0.0
    %3946 = vmatpush.msra.mxu0 0.0
    %3947 = vmatpush.msra.mxu0 0.0
    %3948 = vmatpush.msra.mxu0 0.0
    %3949 = vmatpush.msra.mxu0 0.0
    %3950 = vmatpush.msra.mxu0 0.0
    %3951 = vmatpush.msra.mxu0 0.0
    %3952 = vmatpush.msra.mxu0 0.0
    %3953 = vmatpush.msra.mxu0 0.0
    %3954 = vmatpush.msra.mxu0 0.0
    %3955 = vmatpush.msra.mxu0 0.0
    %3956 = vmatpush.msra.mxu0 0.0
    %3957 = vmatpush.msra.mxu0 %v3720
    %3958 = vmatpush.msra.mxu0 %v3719
    %3959 = vmatpush.msra.mxu0 %v3718
    %3960 = vmatpush.msra.mxu0 %v3717
    %3961 = vmatmul.f32.gmra.mxu0 %v3850
    %v3962 = vpop.f32.mrf.mxu0
    %v3963 = vadd.f32 0.0, %v3962
    %3964 = vmatmul.f32.gmra.mxu0 %v3853
    %v3965 = vpop.f32.mrf.mxu0
    %v3966 = vadd.f32 0.0, %v3965
    %3967 = vmatmul.f32.gmra.mxu0 %v3856
    %v3968 = vpop.f32.mrf.mxu0
    %v3969 = vadd.f32 0.0, %v3968
    %3970 = vmatmul.f32.gmra.mxu0 %v3859
    %v3971 = vpop.f32.mrf.mxu0
    %v3972 = vadd.f32 0.0, %v3971
    %3973 = vmatmul.f32.gmra.mxu0 %v3862
    %v3974 = vpop.f32.mrf.mxu0
    %v3975 = vadd.f32 0.0, %v3974
    %3976 = vmatmul.f32.gmra.mxu0 %v3865
    %v3977 = vpop.f32.mrf.mxu0
    %v3978 = vadd.f32 0.0, %v3977
    %3979 = vmatmul.f32.gmra.mxu0 %v3868
    %v3980 = vpop.f32.mrf.mxu0
    %v3981 = vadd.f32 0.0, %v3980
    %3982 = vmatmul.f32.gmra.mxu0 %v3871
    %v3983 = vpop.f32.mrf.mxu0
    %v3984 = vadd.f32 0.0, %v3983
    %3985 = vmatmul.f32.gmra.mxu0 %v3874
    %v3986 = vpop.f32.mrf.mxu0
    %v3987 = vadd.f32 0.0, %v3986
    %3988 = vmatmul.f32.gmra.mxu0 %v3877
    %v3989 = vpop.f32.mrf.mxu0
    %v3990 = vadd.f32 0.0, %v3989
    %3991 = vmatmul.f32.gmra.mxu0 %v3880
    %v3992 = vpop.f32.mrf.mxu0
    %v3993 = vadd.f32 0.0, %v3992
    %3994 = vmatmul.f32.gmra.mxu0 %v3883
    %v3995 = vpop.f32.mrf.mxu0
    %v3996 = vadd.f32 0.0, %v3995
    %3997 = vmatmul.f32.gmra.mxu0 %v3886
    %v3998 = vpop.f32.mrf.mxu0
    %v3999 = vadd.f32 0.0, %v3998
    %4000 = vmatmul.f32.gmra.mxu0 %v3889
    %v4001 = vpop.f32.mrf.mxu0
    %v4002 = vadd.f32 0.0, %v4001
    %4003 = vmatmul.f32.gmra.mxu0 %v3892
    %v4004 = vpop.f32.mrf.mxu0
    %v4005 = vadd.f32 0.0, %v4004
    %4006 = vmatmul.f32.gmra.mxu0 %v3895
    %v4007 = vpop.f32.mrf.mxu0
    %v4008 = vadd.f32 0.0, %v4007
    %4009 = vmatmul.f32.gmra.mxu0 %v3898
    %v4010 = vpop.f32.mrf.mxu0
    %v4011 = vadd.f32 0.0, %v4010
    %4012 = vmatmul.f32.gmra.mxu0 %v3901
    %v4013 = vpop.f32.mrf.mxu0
    %v4014 = vadd.f32 0.0, %v4013
    %4015 = vmatmul.f32.gmra.mxu0 %v3904
    %v4016 = vpop.f32.mrf.mxu0
    %v4017 = vadd.f32 0.0, %v4016
    %4018 = vmatmul.f32.gmra.mxu0 %v3907
    %v4019 = vpop.f32.mrf.mxu0
    %v4020 = vadd.f32 0.0, %v4019
    %4021 = vmatmul.f32.gmra.mxu0 %v3910
    %v4022 = vpop.f32.mrf.mxu0
    %v4023 = vadd.f32 0.0, %v4022
    %4024 = vmatmul.f32.gmra.mxu0 %v3913
    %v4025 = vpop.f32.mrf.mxu0
    %v4026 = vadd.f32 0.0, %v4025
    %4027 = vmatmul.f32.gmra.mxu0 %v3916
    %v4028 = vpop.f32.mrf.mxu0
    %v4029 = vadd.f32 0.0, %v4028
    %4030 = vmatmul.f32.gmra.mxu0 %v3919
    %v4031 = vpop.f32.mrf.mxu0
    %v4032 = vadd.f32 0.0, %v4031
    %4033 = vmatmul.f32.gmra.mxu0 %v3922
    %v4034 = vpop.f32.mrf.mxu0
    %v4035 = vadd.f32 0.0, %v4034
    %4036 = vmatmul.f32.gmra.mxu0 %v3925
    %v4037 = vpop.f32.mrf.mxu0
    %v4038 = vadd.f32 0.0, %v4037
    %4039 = vmatmul.f32.gmra.mxu0 %v3928
    %v4040 = vpop.f32.mrf.mxu0
    %v4041 = vadd.f32 0.0, %v4040
    %4042 = vmatmul.f32.gmra.mxu0 %v3931
    %v4043 = vpop.f32.mrf.mxu0
    %v4044 = vadd.f32 0.0, %v4043
    %4045 = vmatmul.f32.gmra.mxu0 %v3934
    %v4046 = vpop.f32.mrf.mxu0
    %v4047 = vadd.f32 0.0, %v4046
    %4048 = vmatmul.f32.gmra.mxu0 %v3937
    %v4049 = vpop.f32.mrf.mxu0
    %v4050 = vadd.f32 0.0, %v4049
    %4051 = vmatmul.f32.gmra.mxu0 %v3940
    %v4052 = vpop.f32.mrf.mxu0
    %v4053 = vadd.f32 0.0, %v4052
    %4054 = vmatmul.f32.gmra.mxu0 %v3943
    %v4055 = vpop.f32.mrf.mxu0
    %v4056 = vadd.f32 0.0, %v4055
    %4057 = vdwg.mxu0
    %v4058 = vadd.f32 %v3685, %v3963
    %v4059 = vadd.f32 %v3686, %v3966
    %v4060 = vadd.f32 %v3687, %v3969
    %v4061 = vadd.f32 %v3688, %v3972
    %v4062 = vadd.f32 %v3689, %v3975
    %v4063 = vadd.f32 %v3690, %v3978
    %v4064 = vadd.f32 %v3691, %v3981
    %v4065 = vadd.f32 %v3692, %v3984
    %v4066 = vadd.f32 %v3693, %v3987
    %v4067 = vadd.f32 %v3694, %v3990
    %v4068 = vadd.f32 %v3695, %v3993
    %v4069 = vadd.f32 %v3696, %v3996
    %v4070 = vadd.f32 %v3697, %v3999
    %v4071 = vadd.f32 %v3698, %v4002
    %v4072 = vadd.f32 %v3699, %v4005
    %v4073 = vadd.f32 %v3700, %v4008
    %v4074 = vadd.f32 %v3701, %v4011
    %v4075 = vadd.f32 %v3702, %v4014
    %v4076 = vadd.f32 %v3703, %v4017
    %v4077 = vadd.f32 %v3704, %v4020
    %v4078 = vadd.f32 %v3705, %v4023
    %v4079 = vadd.f32 %v3706, %v4026
    %v4080 = vadd.f32 %v3707, %v4029
    %v4081 = vadd.f32 %v3708, %v4032
    %v4082 = vadd.f32 %v3709, %v4035
    %v4083 = vadd.f32 %v3710, %v4038
    %v4084 = vadd.f32 %v3711, %v4041
    %v4085 = vadd.f32 %v3712, %v4044
    %v4086 = vadd.f32 %v3713, %v4047
    %v4087 = vadd.f32 %v3714, %v4050
    %v4088 = vadd.f32 %v3715, %v4053
    %v4089 = vadd.f32 %v3716, %v4056
    %v4090 = vsub.f32 %v4058, %v2261
    %v4091 = vsub.f32 %v4059, %v2262
    %v4092 = vsub.f32 %v4060, %v2263
    %v4093 = vsub.f32 %v4061, %v2264
    %v4094 = vsub.f32 %v4062, %v2265
    %v4095 = vsub.f32 %v4063, %v2266
    %v4096 = vsub.f32 %v4064, %v2267
    %v4097 = vsub.f32 %v4065, %v2268
    %v4098 = vsub.f32 %v4066, %v2269
    %v4099 = vsub.f32 %v4067, %v2270
    %v4100 = vsub.f32 %v4068, %v2271
    %v4101 = vsub.f32 %v4069, %v2272
    %v4102 = vsub.f32 %v4070, %v2273
    %v4103 = vsub.f32 %v4071, %v2274
    %v4104 = vsub.f32 %v4072, %v2275
    %v4105 = vsub.f32 %v4073, %v2276
    %v4106 = vmul.f32 %v4090, %v4090
    %v4107 = vmul.f32 %v4091, %v4091
    %v4108 = vmul.f32 %v4092, %v4092
    %v4109 = vmul.f32 %v4093, %v4093
    %v4110 = vmul.f32 %v4094, %v4094
    %v4111 = vmul.f32 %v4095, %v4095
    %v4112 = vmul.f32 %v4096, %v4096
    %v4113 = vmul.f32 %v4097, %v4097
    %v4114 = vmul.f32 %v4098, %v4098
    %v4115 = vmul.f32 %v4099, %v4099
    %v4116 = vmul.f32 %v4100, %v4100
    %v4117 = vmul.f32 %v4101, %v4101
    %v4118 = vmul.f32 %v4102, %v4102
    %v4119 = vmul.f32 %v4103, %v4103
    %v4120 = vmul.f32 %v4104, %v4104
    %v4121 = vmul.f32 %v4105, %v4105
    %v4122 = vsel %vm68, %v4106, 0.0
    %4123 = vadd.xlane.f32.xlu0 %v4122
    %v4124 = vpop.xlane.xlu0 %4123
    %v4125 = vsel %vm68, %v4107, 0.0
    %4126 = vadd.xlane.f32.xlu0 %v4125
    %v4127 = vpop.xlane.xlu0 %4126
    %v4128 = vsel %vm68, %v4108, 0.0
    %4129 = vadd.xlane.f32.xlu0 %v4128
    %v4130 = vpop.xlane.xlu0 %4129
    %v4131 = vsel %vm68, %v4109, 0.0
    %4132 = vadd.xlane.f32.xlu0 %v4131
    %v4133 = vpop.xlane.xlu0 %4132
    %v4134 = vsel %vm68, %v4110, 0.0
    %4135 = vadd.xlane.f32.xlu0 %v4134
    %v4136 = vpop.xlane.xlu0 %4135
    %v4137 = vsel %vm68, %v4111, 0.0
    %4138 = vadd.xlane.f32.xlu0 %v4137
    %v4139 = vpop.xlane.xlu0 %4138
    %v4140 = vsel %vm68, %v4112, 0.0
    %4141 = vadd.xlane.f32.xlu0 %v4140
    %v4142 = vpop.xlane.xlu0 %4141
    %v4143 = vsel %vm68, %v4113, 0.0
    %4144 = vadd.xlane.f32.xlu0 %v4143
    %v4145 = vpop.xlane.xlu0 %4144
    %v4146 = vsel %vm68, %v4114, 0.0
    %4147 = vadd.xlane.f32.xlu0 %v4146
    %v4148 = vpop.xlane.xlu0 %4147
    %v4149 = vsel %vm68, %v4115, 0.0
    %4150 = vadd.xlane.f32.xlu0 %v4149
    %v4151 = vpop.xlane.xlu0 %4150
    %v4152 = vsel %vm68, %v4116, 0.0
    %4153 = vadd.xlane.f32.xlu0 %v4152
    %v4154 = vpop.xlane.xlu0 %4153
    %v4155 = vsel %vm68, %v4117, 0.0
    %4156 = vadd.xlane.f32.xlu0 %v4155
    %v4157 = vpop.xlane.xlu0 %4156
    %v4158 = vsel %vm68, %v4118, 0.0
    %4159 = vadd.xlane.f32.xlu0 %v4158
    %v4160 = vpop.xlane.xlu0 %4159
    %v4161 = vsel %vm68, %v4119, 0.0
    %4162 = vadd.xlane.f32.xlu0 %v4161
    %v4163 = vpop.xlane.xlu0 %4162
    %v4164 = vsel %vm68, %v4120, 0.0
    %4165 = vadd.xlane.f32.xlu0 %v4164
    %v4166 = vpop.xlane.xlu0 %4165
    %v4167 = vsel %vm68, %v4121, 0.0
    %4168 = vadd.xlane.f32.xlu0 %v4167
    %v4169 = vpop.xlane.xlu0 %4168
    %v4170 = vrsqrt.pop %v4124
    %v4171 = vmul.f32 %v4170, %v4124
    %v4172 = vmul.f32 %v4171, %v4170
    %v4173 = vmul.f32 0.5, %v4172
    %v4174 = vsub.f32 1.5, %v4173
    %v4175 = vmul.f32 %v4170, %v4174
    %v4176 = vmul.f32 %v4124, %v4175
    %vm4177 = vcmp.eq.f32.partialorder %v4124, inf
    %v4178 = vsel %vm4177, %v4124, %v4176
    %vm4179 = vcmp.eq.f32.partialorder %v4124, 0.0
    %v4180 = vand.u32 %v4124, 2147483648
    %v4181 = vsel %vm4179, %v4180, %v4178
    %v4182 = vrsqrt.pop %v4127
    %v4183 = vmul.f32 %v4182, %v4127
    %v4184 = vmul.f32 %v4183, %v4182
    %v4185 = vmul.f32 0.5, %v4184
    %v4186 = vsub.f32 1.5, %v4185
    %v4187 = vmul.f32 %v4182, %v4186
    %v4188 = vmul.f32 %v4127, %v4187
    %vm4189 = vcmp.eq.f32.partialorder %v4127, inf
    %v4190 = vsel %vm4189, %v4127, %v4188
    %vm4191 = vcmp.eq.f32.partialorder %v4127, 0.0
    %v4192 = vand.u32 %v4127, 2147483648
    %v4193 = vsel %vm4191, %v4192, %v4190
    %v4194 = vrsqrt.pop %v4130
    %v4195 = vmul.f32 %v4194, %v4130
    %v4196 = vmul.f32 %v4195, %v4194
    %v4197 = vmul.f32 0.5, %v4196
    %v4198 = vsub.f32 1.5, %v4197
    %v4199 = vmul.f32 %v4194, %v4198
    %v4200 = vmul.f32 %v4130, %v4199
    %vm4201 = vcmp.eq.f32.partialorder %v4130, inf
    %v4202 = vsel %vm4201, %v4130, %v4200
    %vm4203 = vcmp.eq.f32.partialorder %v4130, 0.0
    %v4204 = vand.u32 %v4130, 2147483648
    %v4205 = vsel %vm4203, %v4204, %v4202
    %v4206 = vrsqrt.pop %v4133
    %v4207 = vmul.f32 %v4206, %v4133
    %v4208 = vmul.f32 %v4207, %v4206
    %v4209 = vmul.f32 0.5, %v4208
    %v4210 = vsub.f32 1.5, %v4209
    %v4211 = vmul.f32 %v4206, %v4210
    %v4212 = vmul.f32 %v4133, %v4211
    %vm4213 = vcmp.eq.f32.partialorder %v4133, inf
    %v4214 = vsel %vm4213, %v4133, %v4212
    %vm4215 = vcmp.eq.f32.partialorder %v4133, 0.0
    %v4216 = vand.u32 %v4133, 2147483648
    %v4217 = vsel %vm4215, %v4216, %v4214
    %v4218 = vrsqrt.pop %v4136
    %v4219 = vmul.f32 %v4218, %v4136
    %v4220 = vmul.f32 %v4219, %v4218
    %v4221 = vmul.f32 0.5, %v4220
    %v4222 = vsub.f32 1.5, %v4221
    %v4223 = vmul.f32 %v4218, %v4222
    %v4224 = vmul.f32 %v4136, %v4223
    %vm4225 = vcmp.eq.f32.partialorder %v4136, inf
    %v4226 = vsel %vm4225, %v4136, %v4224
    %vm4227 = vcmp.eq.f32.partialorder %v4136, 0.0
    %v4228 = vand.u32 %v4136, 2147483648
    %v4229 = vsel %vm4227, %v4228, %v4226
    %v4230 = vrsqrt.pop %v4139
    %v4231 = vmul.f32 %v4230, %v4139
    %v4232 = vmul.f32 %v4231, %v4230
    %v4233 = vmul.f32 0.5, %v4232
    %v4234 = vsub.f32 1.5, %v4233
    %v4235 = vmul.f32 %v4230, %v4234
    %v4236 = vmul.f32 %v4139, %v4235
    %vm4237 = vcmp.eq.f32.partialorder %v4139, inf
    %v4238 = vsel %vm4237, %v4139, %v4236
    %vm4239 = vcmp.eq.f32.partialorder %v4139, 0.0
    %v4240 = vand.u32 %v4139, 2147483648
    %v4241 = vsel %vm4239, %v4240, %v4238
    %v4242 = vrsqrt.pop %v4142
    %v4243 = vmul.f32 %v4242, %v4142
    %v4244 = vmul.f32 %v4243, %v4242
    %v4245 = vmul.f32 0.5, %v4244
    %v4246 = vsub.f32 1.5, %v4245
    %v4247 = vmul.f32 %v4242, %v4246
    %v4248 = vmul.f32 %v4142, %v4247
    %vm4249 = vcmp.eq.f32.partialorder %v4142, inf
    %v4250 = vsel %vm4249, %v4142, %v4248
    %vm4251 = vcmp.eq.f32.partialorder %v4142, 0.0
    %v4252 = vand.u32 %v4142, 2147483648
    %v4253 = vsel %vm4251, %v4252, %v4250
    %v4254 = vrsqrt.pop %v4145
    %v4255 = vmul.f32 %v4254, %v4145
    %v4256 = vmul.f32 %v4255, %v4254
    %v4257 = vmul.f32 0.5, %v4256
    %v4258 = vsub.f32 1.5, %v4257
    %v4259 = vmul.f32 %v4254, %v4258
    %v4260 = vmul.f32 %v4145, %v4259
    %vm4261 = vcmp.eq.f32.partialorder %v4145, inf
    %v4262 = vsel %vm4261, %v4145, %v4260
    %vm4263 = vcmp.eq.f32.partialorder %v4145, 0.0
    %v4264 = vand.u32 %v4145, 2147483648
    %v4265 = vsel %vm4263, %v4264, %v4262
    %v4266 = vrsqrt.pop %v4148
    %v4267 = vmul.f32 %v4266, %v4148
    %v4268 = vmul.f32 %v4267, %v4266
    %v4269 = vmul.f32 0.5, %v4268
    %v4270 = vsub.f32 1.5, %v4269
    %v4271 = vmul.f32 %v4266, %v4270
    %v4272 = vmul.f32 %v4148, %v4271
    %vm4273 = vcmp.eq.f32.partialorder %v4148, inf
    %v4274 = vsel %vm4273, %v4148, %v4272
    %vm4275 = vcmp.eq.f32.partialorder %v4148, 0.0
    %v4276 = vand.u32 %v4148, 2147483648
    %v4277 = vsel %vm4275, %v4276, %v4274
    %v4278 = vrsqrt.pop %v4151
    %v4279 = vmul.f32 %v4278, %v4151
    %v4280 = vmul.f32 %v4279, %v4278
    %v4281 = vmul.f32 0.5, %v4280
    %v4282 = vsub.f32 1.5, %v4281
    %v4283 = vmul.f32 %v4278, %v4282
    %v4284 = vmul.f32 %v4151, %v4283
    %vm4285 = vcmp.eq.f32.partialorder %v4151, inf
    %v4286 = vsel %vm4285, %v4151, %v4284
    %vm4287 = vcmp.eq.f32.partialorder %v4151, 0.0
    %v4288 = vand.u32 %v4151, 2147483648
    %v4289 = vsel %vm4287, %v4288, %v4286
    %v4290 = vrsqrt.pop %v4154
    %v4291 = vmul.f32 %v4290, %v4154
    %v4292 = vmul.f32 %v4291, %v4290
    %v4293 = vmul.f32 0.5, %v4292
    %v4294 = vsub.f32 1.5, %v4293
    %v4295 = vmul.f32 %v4290, %v4294
    %v4296 = vmul.f32 %v4154, %v4295
    %vm4297 = vcmp.eq.f32.partialorder %v4154, inf
    %v4298 = vsel %vm4297, %v4154, %v4296
    %vm4299 = vcmp.eq.f32.partialorder %v4154, 0.0
    %v4300 = vand.u32 %v4154, 2147483648
    %v4301 = vsel %vm4299, %v4300, %v4298
    %v4302 = vrsqrt.pop %v4157
    %v4303 = vmul.f32 %v4302, %v4157
    %v4304 = vmul.f32 %v4303, %v4302
    %v4305 = vmul.f32 0.5, %v4304
    %v4306 = vsub.f32 1.5, %v4305
    %v4307 = vmul.f32 %v4302, %v4306
    %v4308 = vmul.f32 %v4157, %v4307
    %vm4309 = vcmp.eq.f32.partialorder %v4157, inf
    %v4310 = vsel %vm4309, %v4157, %v4308
    %vm4311 = vcmp.eq.f32.partialorder %v4157, 0.0
    %v4312 = vand.u32 %v4157, 2147483648
    %v4313 = vsel %vm4311, %v4312, %v4310
    %v4314 = vrsqrt.pop %v4160
    %v4315 = vmul.f32 %v4314, %v4160
    %v4316 = vmul.f32 %v4315, %v4314
    %v4317 = vmul.f32 0.5, %v4316
    %v4318 = vsub.f32 1.5, %v4317
    %v4319 = vmul.f32 %v4314, %v4318
    %v4320 = vmul.f32 %v4160, %v4319
    %vm4321 = vcmp.eq.f32.partialorder %v4160, inf
    %v4322 = vsel %vm4321, %v4160, %v4320
    %vm4323 = vcmp.eq.f32.partialorder %v4160, 0.0
    %v4324 = vand.u32 %v4160, 2147483648
    %v4325 = vsel %vm4323, %v4324, %v4322
    %v4326 = vrsqrt.pop %v4163
    %v4327 = vmul.f32 %v4326, %v4163
    %v4328 = vmul.f32 %v4327, %v4326
    %v4329 = vmul.f32 0.5, %v4328
    %v4330 = vsub.f32 1.5, %v4329
    %v4331 = vmul.f32 %v4326, %v4330
    %v4332 = vmul.f32 %v4163, %v4331
    %vm4333 = vcmp.eq.f32.partialorder %v4163, inf
    %v4334 = vsel %vm4333, %v4163, %v4332
    %vm4335 = vcmp.eq.f32.partialorder %v4163, 0.0
    %v4336 = vand.u32 %v4163, 2147483648
    %v4337 = vsel %vm4335, %v4336, %v4334
    %v4338 = vrsqrt.pop %v4166
    %v4339 = vmul.f32 %v4338, %v4166
    %v4340 = vmul.f32 %v4339, %v4338
    %v4341 = vmul.f32 0.5, %v4340
    %v4342 = vsub.f32 1.5, %v4341
    %v4343 = vmul.f32 %v4338, %v4342
    %v4344 = vmul.f32 %v4166, %v4343
    %vm4345 = vcmp.eq.f32.partialorder %v4166, inf
    %v4346 = vsel %vm4345, %v4166, %v4344
    %vm4347 = vcmp.eq.f32.partialorder %v4166, 0.0
    %v4348 = vand.u32 %v4166, 2147483648
    %v4349 = vsel %vm4347, %v4348, %v4346
    %v4350 = vrsqrt.pop %v4169
    %v4351 = vmul.f32 %v4350, %v4169
    %v4352 = vmul.f32 %v4351, %v4350
    %v4353 = vmul.f32 0.5, %v4352
    %v4354 = vsub.f32 1.5, %v4353
    %v4355 = vmul.f32 %v4350, %v4354
    %v4356 = vmul.f32 %v4169, %v4355
    %vm4357 = vcmp.eq.f32.partialorder %v4169, inf
    %v4358 = vsel %vm4357, %v4169, %v4356
    %vm4359 = vcmp.eq.f32.partialorder %v4169, 0.0
    %v4360 = vand.u32 %v4169, 2147483648
    %v4361 = vsel %vm4359, %v4360, %v4358
    %v4362 = vsub.f32 %v4074, %v1989
    %v4363 = vsub.f32 %v4075, %v1990
    %v4364 = vsub.f32 %v4076, %v1991
    %v4365 = vsub.f32 %v4077, %v1992
    %v4366 = vsub.f32 %v4078, %v1993
    %v4367 = vsub.f32 %v4079, %v1994
    %v4368 = vsub.f32 %v4080, %v1995
    %v4369 = vsub.f32 %v4081, %v1996
    %v4370 = vsub.f32 %v4082, %v1997
    %v4371 = vsub.f32 %v4083, %v1998
    %v4372 = vsub.f32 %v4084, %v1999
    %v4373 = vsub.f32 %v4085, %v2000
    %v4374 = vsub.f32 %v4086, %v2001
    %v4375 = vsub.f32 %v4087, %v2002
    %v4376 = vsub.f32 %v4088, %v2003
    %v4377 = vsub.f32 %v4089, %v2004
    %v4378 = vmul.f32 %v4362, %v4362
    %v4379 = vmul.f32 %v4363, %v4363
    %v4380 = vmul.f32 %v4364, %v4364
    %v4381 = vmul.f32 %v4365, %v4365
    %v4382 = vmul.f32 %v4366, %v4366
    %v4383 = vmul.f32 %v4367, %v4367
    %v4384 = vmul.f32 %v4368, %v4368
    %v4385 = vmul.f32 %v4369, %v4369
    %v4386 = vmul.f32 %v4370, %v4370
    %v4387 = vmul.f32 %v4371, %v4371
    %v4388 = vmul.f32 %v4372, %v4372
    %v4389 = vmul.f32 %v4373, %v4373
    %v4390 = vmul.f32 %v4374, %v4374
    %v4391 = vmul.f32 %v4375, %v4375
    %v4392 = vmul.f32 %v4376, %v4376
    %v4393 = vmul.f32 %v4377, %v4377
    %v4394 = vsel %vm68, %v4378, 0.0
    %4395 = vadd.xlane.f32.xlu0 %v4394
    %v4396 = vpop.xlane.xlu0 %4395
    %v4397 = vsel %vm68, %v4379, 0.0
    %4398 = vadd.xlane.f32.xlu0 %v4397
    %v4399 = vpop.xlane.xlu0 %4398
    %v4400 = vsel %vm68, %v4380, 0.0
    %4401 = vadd.xlane.f32.xlu0 %v4400
    %v4402 = vpop.xlane.xlu0 %4401
    %v4403 = vsel %vm68, %v4381, 0.0
    %4404 = vadd.xlane.f32.xlu0 %v4403
    %v4405 = vpop.xlane.xlu0 %4404
    %v4406 = vsel %vm68, %v4382, 0.0
    %4407 = vadd.xlane.f32.xlu0 %v4406
    %v4408 = vpop.xlane.xlu0 %4407
    %v4409 = vsel %vm68, %v4383, 0.0
    %4410 = vadd.xlane.f32.xlu0 %v4409
    %v4411 = vpop.xlane.xlu0 %4410
    %v4412 = vsel %vm68, %v4384, 0.0
    %4413 = vadd.xlane.f32.xlu0 %v4412
    %v4414 = vpop.xlane.xlu0 %4413
    %v4415 = vsel %vm68, %v4385, 0.0
    %4416 = vadd.xlane.f32.xlu0 %v4415
    %v4417 = vpop.xlane.xlu0 %4416
    %v4418 = vsel %vm68, %v4386, 0.0
    %4419 = vadd.xlane.f32.xlu0 %v4418
    %v4420 = vpop.xlane.xlu0 %4419
    %v4421 = vsel %vm68, %v4387, 0.0
    %4422 = vadd.xlane.f32.xlu0 %v4421
    %v4423 = vpop.xlane.xlu0 %4422
    %v4424 = vsel %vm68, %v4388, 0.0
    %4425 = vadd.xlane.f32.xlu0 %v4424
    %v4426 = vpop.xlane.xlu0 %4425
    %v4427 = vsel %vm68, %v4389, 0.0
    %4428 = vadd.xlane.f32.xlu0 %v4427
    %v4429 = vpop.xlane.xlu0 %4428
    %v4430 = vsel %vm68, %v4390, 0.0
    %4431 = vadd.xlane.f32.xlu0 %v4430
    %v4432 = vpop.xlane.xlu0 %4431
    %v4433 = vsel %vm68, %v4391, 0.0
    %4434 = vadd.xlane.f32.xlu0 %v4433
    %v4435 = vpop.xlane.xlu0 %4434
    %v4436 = vsel %vm68, %v4392, 0.0
    %4437 = vadd.xlane.f32.xlu0 %v4436
    %v4438 = vpop.xlane.xlu0 %4437
    %v4439 = vsel %vm68, %v4393, 0.0
    %4440 = vadd.xlane.f32.xlu0 %v4439
    %v4441 = vpop.xlane.xlu0 %4440
    %v4442 = vrsqrt.pop %v4396
    %v4443 = vmul.f32 %v4442, %v4396
    %v4444 = vmul.f32 %v4443, %v4442
    %v4445 = vmul.f32 0.5, %v4444
    %v4446 = vsub.f32 1.5, %v4445
    %v4447 = vmul.f32 %v4442, %v4446
    %v4448 = vmul.f32 %v4396, %v4447
    %vm4449 = vcmp.eq.f32.partialorder %v4396, inf
    %v4450 = vsel %vm4449, %v4396, %v4448
    %vm4451 = vcmp.eq.f32.partialorder %v4396, 0.0
    %v4452 = vand.u32 %v4396, 2147483648
    %v4453 = vsel %vm4451, %v4452, %v4450
    %v4454 = vrsqrt.pop %v4399
    %v4455 = vmul.f32 %v4454, %v4399
    %v4456 = vmul.f32 %v4455, %v4454
    %v4457 = vmul.f32 0.5, %v4456
    %v4458 = vsub.f32 1.5, %v4457
    %v4459 = vmul.f32 %v4454, %v4458
    %v4460 = vmul.f32 %v4399, %v4459
    %vm4461 = vcmp.eq.f32.partialorder %v4399, inf
    %v4462 = vsel %vm4461, %v4399, %v4460
    %vm4463 = vcmp.eq.f32.partialorder %v4399, 0.0
    %v4464 = vand.u32 %v4399, 2147483648
    %v4465 = vsel %vm4463, %v4464, %v4462
    %v4466 = vrsqrt.pop %v4402
    %v4467 = vmul.f32 %v4466, %v4402
    %v4468 = vmul.f32 %v4467, %v4466
    %v4469 = vmul.f32 0.5, %v4468
    %v4470 = vsub.f32 1.5, %v4469
    %v4471 = vmul.f32 %v4466, %v4470
    %v4472 = vmul.f32 %v4402, %v4471
    %vm4473 = vcmp.eq.f32.partialorder %v4402, inf
    %v4474 = vsel %vm4473, %v4402, %v4472
    %vm4475 = vcmp.eq.f32.partialorder %v4402, 0.0
    %v4476 = vand.u32 %v4402, 2147483648
    %v4477 = vsel %vm4475, %v4476, %v4474
    %v4478 = vrsqrt.pop %v4405
    %v4479 = vmul.f32 %v4478, %v4405
    %v4480 = vmul.f32 %v4479, %v4478
    %v4481 = vmul.f32 0.5, %v4480
    %v4482 = vsub.f32 1.5, %v4481
    %v4483 = vmul.f32 %v4478, %v4482
    %v4484 = vmul.f32 %v4405, %v4483
    %vm4485 = vcmp.eq.f32.partialorder %v4405, inf
    %v4486 = vsel %vm4485, %v4405, %v4484
    %vm4487 = vcmp.eq.f32.partialorder %v4405, 0.0
    %v4488 = vand.u32 %v4405, 2147483648
    %v4489 = vsel %vm4487, %v4488, %v4486
    %v4490 = vrsqrt.pop %v4408
    %v4491 = vmul.f32 %v4490, %v4408
    %v4492 = vmul.f32 %v4491, %v4490
    %v4493 = vmul.f32 0.5, %v4492
    %v4494 = vsub.f32 1.5, %v4493
    %v4495 = vmul.f32 %v4490, %v4494
    %v4496 = vmul.f32 %v4408, %v4495
    %vm4497 = vcmp.eq.f32.partialorder %v4408, inf
    %v4498 = vsel %vm4497, %v4408, %v4496
    %vm4499 = vcmp.eq.f32.partialorder %v4408, 0.0
    %v4500 = vand.u32 %v4408, 2147483648
    %v4501 = vsel %vm4499, %v4500, %v4498
    %v4502 = vrsqrt.pop %v4411
    %v4503 = vmul.f32 %v4502, %v4411
    %v4504 = vmul.f32 %v4503, %v4502
    %v4505 = vmul.f32 0.5, %v4504
    %v4506 = vsub.f32 1.5, %v4505
    %v4507 = vmul.f32 %v4502, %v4506
    %v4508 = vmul.f32 %v4411, %v4507
    %vm4509 = vcmp.eq.f32.partialorder %v4411, inf
    %v4510 = vsel %vm4509, %v4411, %v4508
    %vm4511 = vcmp.eq.f32.partialorder %v4411, 0.0
    %v4512 = vand.u32 %v4411, 2147483648
    %v4513 = vsel %vm4511, %v4512, %v4510
    %v4514 = vrsqrt.pop %v4414
    %v4515 = vmul.f32 %v4514, %v4414
    %v4516 = vmul.f32 %v4515, %v4514
    %v4517 = vmul.f32 0.5, %v4516
    %v4518 = vsub.f32 1.5, %v4517
    %v4519 = vmul.f32 %v4514, %v4518
    %v4520 = vmul.f32 %v4414, %v4519
    %vm4521 = vcmp.eq.f32.partialorder %v4414, inf
    %v4522 = vsel %vm4521, %v4414, %v4520
    %vm4523 = vcmp.eq.f32.partialorder %v4414, 0.0
    %v4524 = vand.u32 %v4414, 2147483648
    %v4525 = vsel %vm4523, %v4524, %v4522
    %v4526 = vrsqrt.pop %v4417
    %v4527 = vmul.f32 %v4526, %v4417
    %v4528 = vmul.f32 %v4527, %v4526
    %v4529 = vmul.f32 0.5, %v4528
    %v4530 = vsub.f32 1.5, %v4529
    %v4531 = vmul.f32 %v4526, %v4530
    %v4532 = vmul.f32 %v4417, %v4531
    %vm4533 = vcmp.eq.f32.partialorder %v4417, inf
    %v4534 = vsel %vm4533, %v4417, %v4532
    %vm4535 = vcmp.eq.f32.partialorder %v4417, 0.0
    %v4536 = vand.u32 %v4417, 2147483648
    %v4537 = vsel %vm4535, %v4536, %v4534
    %v4538 = vrsqrt.pop %v4420
    %v4539 = vmul.f32 %v4538, %v4420
    %v4540 = vmul.f32 %v4539, %v4538
    %v4541 = vmul.f32 0.5, %v4540
    %v4542 = vsub.f32 1.5, %v4541
    %v4543 = vmul.f32 %v4538, %v4542
    %v4544 = vmul.f32 %v4420, %v4543
    %vm4545 = vcmp.eq.f32.partialorder %v4420, inf
    %v4546 = vsel %vm4545, %v4420, %v4544
    %vm4547 = vcmp.eq.f32.partialorder %v4420, 0.0
    %v4548 = vand.u32 %v4420, 2147483648
    %v4549 = vsel %vm4547, %v4548, %v4546
    %v4550 = vrsqrt.pop %v4423
    %v4551 = vmul.f32 %v4550, %v4423
    %v4552 = vmul.f32 %v4551, %v4550
    %v4553 = vmul.f32 0.5, %v4552
    %v4554 = vsub.f32 1.5, %v4553
    %v4555 = vmul.f32 %v4550, %v4554
    %v4556 = vmul.f32 %v4423, %v4555
    %vm4557 = vcmp.eq.f32.partialorder %v4423, inf
    %v4558 = vsel %vm4557, %v4423, %v4556
    %vm4559 = vcmp.eq.f32.partialorder %v4423, 0.0
    %v4560 = vand.u32 %v4423, 2147483648
    %v4561 = vsel %vm4559, %v4560, %v4558
    %v4562 = vrsqrt.pop %v4426
    %v4563 = vmul.f32 %v4562, %v4426
    %v4564 = vmul.f32 %v4563, %v4562
    %v4565 = vmul.f32 0.5, %v4564
    %v4566 = vsub.f32 1.5, %v4565
    %v4567 = vmul.f32 %v4562, %v4566
    %v4568 = vmul.f32 %v4426, %v4567
    %vm4569 = vcmp.eq.f32.partialorder %v4426, inf
    %v4570 = vsel %vm4569, %v4426, %v4568
    %vm4571 = vcmp.eq.f32.partialorder %v4426, 0.0
    %v4572 = vand.u32 %v4426, 2147483648
    %v4573 = vsel %vm4571, %v4572, %v4570
    %v4574 = vrsqrt.pop %v4429
    %v4575 = vmul.f32 %v4574, %v4429
    %v4576 = vmul.f32 %v4575, %v4574
    %v4577 = vmul.f32 0.5, %v4576
    %v4578 = vsub.f32 1.5, %v4577
    %v4579 = vmul.f32 %v4574, %v4578
    %v4580 = vmul.f32 %v4429, %v4579
    %vm4581 = vcmp.eq.f32.partialorder %v4429, inf
    %v4582 = vsel %vm4581, %v4429, %v4580
    %vm4583 = vcmp.eq.f32.partialorder %v4429, 0.0
    %v4584 = vand.u32 %v4429, 2147483648
    %v4585 = vsel %vm4583, %v4584, %v4582
    %v4586 = vrsqrt.pop %v4432
    %v4587 = vmul.f32 %v4586, %v4432
    %v4588 = vmul.f32 %v4587, %v4586
    %v4589 = vmul.f32 0.5, %v4588
    %v4590 = vsub.f32 1.5, %v4589
    %v4591 = vmul.f32 %v4586, %v4590
    %v4592 = vmul.f32 %v4432, %v4591
    %vm4593 = vcmp.eq.f32.partialorder %v4432, inf
    %v4594 = vsel %vm4593, %v4432, %v4592
    %vm4595 = vcmp.eq.f32.partialorder %v4432, 0.0
    %v4596 = vand.u32 %v4432, 2147483648
    %v4597 = vsel %vm4595, %v4596, %v4594
    %v4598 = vrsqrt.pop %v4435
    %v4599 = vmul.f32 %v4598, %v4435
    %v4600 = vmul.f32 %v4599, %v4598
    %v4601 = vmul.f32 0.5, %v4600
    %v4602 = vsub.f32 1.5, %v4601
    %v4603 = vmul.f32 %v4598, %v4602
    %v4604 = vmul.f32 %v4435, %v4603
    %vm4605 = vcmp.eq.f32.partialorder %v4435, inf
    %v4606 = vsel %vm4605, %v4435, %v4604
    %vm4607 = vcmp.eq.f32.partialorder %v4435, 0.0
    %v4608 = vand.u32 %v4435, 2147483648
    %v4609 = vsel %vm4607, %v4608, %v4606
    %v4610 = vrsqrt.pop %v4438
    %v4611 = vmul.f32 %v4610, %v4438
    %v4612 = vmul.f32 %v4611, %v4610
    %v4613 = vmul.f32 0.5, %v4612
    %v4614 = vsub.f32 1.5, %v4613
    %v4615 = vmul.f32 %v4610, %v4614
    %v4616 = vmul.f32 %v4438, %v4615
    %vm4617 = vcmp.eq.f32.partialorder %v4438, inf
    %v4618 = vsel %vm4617, %v4438, %v4616
    %vm4619 = vcmp.eq.f32.partialorder %v4438, 0.0
    %v4620 = vand.u32 %v4438, 2147483648
    %v4621 = vsel %vm4619, %v4620, %v4618
    %v4622 = vrsqrt.pop %v4441
    %v4623 = vmul.f32 %v4622, %v4441
    %v4624 = vmul.f32 %v4623, %v4622
    %v4625 = vmul.f32 0.5, %v4624
    %v4626 = vsub.f32 1.5, %v4625
    %v4627 = vmul.f32 %v4622, %v4626
    %v4628 = vmul.f32 %v4441, %v4627
    %vm4629 = vcmp.eq.f32.partialorder %v4441, inf
    %v4630 = vsel %vm4629, %v4441, %v4628
    %vm4631 = vcmp.eq.f32.partialorder %v4441, 0.0
    %v4632 = vand.u32 %v4441, 2147483648
    %v4633 = vsel %vm4631, %v4632, %v4630
    %vm4634 = vcmask 7168
    %v4635 = vsel %vm4634, %v1248, %v1552
    %v4636 = vsel %vm4634, %v1260, %v1564
    %v4637 = vsel %vm4634, %v1272, %v1576
    %v4638 = vsel %vm4634, %v1284, %v1588
    %v4639 = vsel %vm4634, %v1296, %v1600
    %v4640 = vsel %vm4634, %v1308, %v1612
    %v4641 = vsel %vm4634, %v1320, %v1624
    %v4642 = vsel %vm4634, %v1332, %v1636
    %v4643 = vsel %vm4634, %v1344, %v1648
    %v4644 = vsel %vm4634, %v1356, %v1660
    %v4645 = vsel %vm4634, %v1368, %v1672
    %v4646 = vsel %vm4634, %v1380, %v1684
    %v4647 = vsel %vm4634, %v1392, %v1696
    %v4648 = vsel %vm4634, %v1404, %v1708
    %v4649 = vsel %vm4634, %v1416, %v1720
    %v4650 = vsel %vm4634, %v1428, %v1732
    %vm4651 = vcmask 15360
    %v4652 = vsel %vm4651, %v4635, %v4181
    %v4653 = vsel %vm4651, %v4636, %v4193
    %v4654 = vsel %vm4651, %v4637, %v4205
    %v4655 = vsel %vm4651, %v4638, %v4217
    %v4656 = vsel %vm4651, %v4639, %v4229
    %v4657 = vsel %vm4651, %v4640, %v4241
    %v4658 = vsel %vm4651, %v4641, %v4253
    %v4659 = vsel %vm4651, %v4642, %v4265
    %v4660 = vsel %vm4651, %v4643, %v4277
    %v4661 = vsel %vm4651, %v4644, %v4289
    %v4662 = vsel %vm4651, %v4645, %v4301
    %v4663 = vsel %vm4651, %v4646, %v4313
    %v4664 = vsel %vm4651, %v4647, %v4325
    %v4665 = vsel %vm4651, %v4648, %v4337
    %v4666 = vsel %vm4651, %v4649, %v4349
    %v4667 = vsel %vm4651, %v4650, %v4361
    %vm4668 = vcmask 23552
    %v4669 = vsel %vm4668, %v4652, %v4453
    %v4670 = vsel %vm4668, %v4653, %v4465
    %v4671 = vsel %vm4668, %v4654, %v4477
    %v4672 = vsel %vm4668, %v4655, %v4489
    %v4673 = vsel %vm4668, %v4656, %v4501
    %v4674 = vsel %vm4668, %v4657, %v4513
    %v4675 = vsel %vm4668, %v4658, %v4525
    %v4676 = vsel %vm4668, %v4659, %v4537
    %v4677 = vsel %vm4668, %v4660, %v4549
    %v4678 = vsel %vm4668, %v4661, %v4561
    %v4679 = vsel %vm4668, %v4662, %v4573
    %v4680 = vsel %vm4668, %v4663, %v4585
    %v4681 = vsel %vm4668, %v4664, %v4597
    %v4682 = vsel %vm4668, %v4665, %v4609
    %v4683 = vsel %vm4668, %v4666, %v4621
    %v4684 = vsel %vm4668, %v4667, %v4633
    %vm4685 = vcmask 31744
    %v4686 = vsel %vm4685, %v4669, 0.0
    %v4687 = vsel %vm4685, %v4670, 0.0
    %v4688 = vsel %vm4685, %v4671, 0.0
    %v4689 = vsel %vm4685, %v4672, 0.0
    %v4690 = vsel %vm4685, %v4673, 0.0
    %v4691 = vsel %vm4685, %v4674, 0.0
    %v4692 = vsel %vm4685, %v4675, 0.0
    %v4693 = vsel %vm4685, %v4676, 0.0
    %v4694 = vsel %vm4685, %v4677, 0.0
    %v4695 = vsel %vm4685, %v4678, 0.0
    %v4696 = vsel %vm4685, %v4679, 0.0
    %v4697 = vsel %vm4685, %v4680, 0.0
    %v4698 = vsel %vm4685, %v4681, 0.0
    %v4699 = vsel %vm4685, %v4682, 0.0
    %v4700 = vsel %vm4685, %v4683, 0.0
    %v4701 = vsel %vm4685, %v4684, 0.0
    %4702 = vxpose.xlu0.b32.start [1/16] %v4686, 128
    %4703 = vxpose.xlu0.b32.cont [2/16] %v4687, 128
    %4704 = vxpose.xlu0.b32.cont [3/16] %v4688, 128
    %4705 = vxpose.xlu0.b32.cont [4/16] %v4689, 128
    %4706 = vxpose.xlu0.b32.cont [5/16] %v4690, 128
    %4707 = vxpose.xlu0.b32.cont [6/16] %v4691, 128
    %4708 = vxpose.xlu0.b32.cont [7/16] %v4692, 128
    %4709 = vxpose.xlu0.b32.cont [8/16] %v4693, 128
    %4710 = vxpose.xlu0.b32.cont [9/16] %v4694, 128
    %4711 = vxpose.xlu0.b32.cont [10/16] %v4695, 128
    %4712 = vxpose.xlu0.b32.cont [11/16] %v4696, 128
    %4713 = vxpose.xlu0.b32.cont [12/16] %v4697, 128
    %4714 = vxpose.xlu0.b32.cont [13/16] %v4698, 128
    %4715 = vxpose.xlu0.b32.cont [14/16] %v4699, 128
    %4716 = vxpose.xlu0.b32.cont [15/16] %v4700, 128
    %4717 = vxpose.xlu0.b32.end [16/16] %v4701, 128
    %v4718 = vpop.trf.xlu0
    %v4719 = vpop.trf.xlu0
    %v4720 = vpop.trf.xlu0
    %v4721 = vpop.trf.xlu0
    %v4722 = vpop.trf.xlu0
    %v4723 = vpop.trf.xlu0
    %v4724 = vpop.trf.xlu0
    %v4725 = vpop.trf.xlu0
    %v4726 = vpop.trf.xlu0
    %v4727 = vpop.trf.xlu0
    %v4728 = vpop.trf.xlu0
    %v4729 = vpop.trf.xlu0
    %v4730 = vpop.trf.xlu0
    %v4731 = vpop.trf.xlu0
    %v4732 = vpop.trf.xlu0
    %v4733 = vpop.trf.xlu0
    %4734 = vst [vmem:[#allocation2] sm:$0xff] %v4718
    // Predicated region
    $region42: #{tpu_custom_call.1} parent=1 // pred_check
      _
    $region43: #{tpu_custom_call.1} parent=1 // pred_check_branch
      %4736 = sbr.rel (0) target = $region45
    $region44: #{tpu_custom_call.1} parent=1 // pred_region
      %4738 = vsyncadd [#allocation3], 0
      %s4740 = sshll.u32 [#allocation2], 4
      %s4741 = int_to_ptr.vmem [resolvable:$true] %s4740
      %s4742 = sshll.u32 %s10, 4
      %s4743 = int_to_ptr.hbm [resolvable:$true] %s4742
      %4745 = dma.vmem_to_hbm [thread:$0]  %s4741, 128, %s4743, [#allocation3]
    $region45: #{tpu_custom_call.1} parent=1 // pred_fallthru
      _
    // Predicated region
    $region46: #{tpu_custom_call.1} parent=1 // pred_check
      _
    $region47: #{tpu_custom_call.1} parent=1 // pred_check_branch
      %4747 = sbr.rel (0) target = $region49
    $region48: #{tpu_custom_call.1} parent=1 // pred_region
      %4749 = dma.done [#allocation3], 128
    $region49: #{tpu_custom_call.1} parent=1 // pred_fallthru
      _
    %4750 = vsyncpa [#allocation3], 1

</llo_original>
